<compile_context>
chip_gen: v7x
topology: tpu7x:2x2x1
jax: 0.10.0
libtpu: 0.0.40
codegen_flags: <defaults>
</compile_context>

<pallas_src>
import functools

import jax
import jax.numpy as jnp
from jax import lax
from jax.experimental import pallas as pl
from jax.experimental.pallas import tpu as pltpu


_LANE = 128       # lane width (last-dim tiling)
_SUBLANE = 8      # f32 sublane (second-to-last-dim tiling)
_MAX_CHUNK = 32   # max timesteps folded into one grid step


def _round_up(x, m):
    return ((x + m - 1) // m) * m


def _cdiv(a, b):
    return -(-a // b)


def _pick_chunk(t):
    """Chunk <= _MAX_CHUNK, even (so chunk*B rows stay 16-aligned for bf16),
    chosen so the padded T wastes at most one partial chunk."""
    n = _cdiv(t, _MAX_CHUNK)
    c = _cdiv(t, n)
    return c + (c % 2)


# ---------------------------------------------------------------------------
# Shared per-timestep gate math (gate order i, f, o, g; fused sigmoid).
# The h @ W_hh matmul is the only matmul left on the serial chain.
# ---------------------------------------------------------------------------
def _gate_step(xw_row, h, c, w_hh, hidden):
    gates = xw_row + jnp.dot(h.astype(w_hh.dtype), w_hh,
                             preferred_element_type=jnp.float32)   # (B, 4H) f32
    sig = jax.nn.sigmoid(gates[:, :3 * hidden])                    # one EUP pass
    i_g = sig[:, :hidden]
    f_g = sig[:, hidden:2 * hidden]
    o_g = sig[:, 2 * hidden:]
    g_g = jnp.tanh(gates[:, 3 * hidden:])
    c_new = f_g * c + i_g * g_g
    h_new = o_g * jnp.tanh(c_new)
    return h_new, c_new


# ---------------------------------------------------------------------------
# Encoder kernel: time-chunked LSTM, emits only the final (hidden, cell).
# ---------------------------------------------------------------------------
def _lstm_encoder_kernel(x_ref, wih_ref, whh_ref, b_ref,
                         hfin_ref, cfin_ref, h_sc, c_sc, xw_sc, *,
                         chunk, hidden, t_valid):
    ci = pl.program_id(0)
    nb = h_sc.shape[0]

    @pl.when(ci == 0)
    def _():
        h_sc[...] = jnp.zeros_like(h_sc)
        c_sc[...] = jnp.zeros_like(c_sc)

    # Chunk-batched input projection: one M = chunk*B matmul instead of
    # `chunk` M=B matmuls inside the recurrence (fills the MXU rows and pulls
    # half the LSTM FLOPs + the bias add off the serial h->h chain).
    xw_sc[...] = (jnp.dot(x_ref[...], wih_ref[...],
                          preferred_element_type=jnp.float32) + b_ref[...])

    w_hh = whh_ref[...]

    def step(i, carry):
        h, c = carry
        row = pl.multiple_of(i * nb, nb)
        h_new, c_new = _gate_step(xw_sc[pl.ds(row, nb), :], h, c, w_hh, hidden)
        # Mask padded tail timesteps (T was padded up to a chunk multiple).
        valid = (ci * chunk + i) < t_valid
        return jnp.where(valid, h_new, h), jnp.where(valid, c_new, c)

    h, c = lax.fori_loop(0, chunk, step, (h_sc[...], c_sc[...]), unroll=True)
    h_sc[...] = h
    c_sc[...] = c

    @pl.when(ci == pl.num_programs(0) - 1)
    def _():
        hfin_ref[...] = h
        cfin_ref[...] = c


def lstm_encoder(x_tbe, w_ih, w_hh, bias):
    """x_tbe: [T,B,E] bf16; w_ih/w_hh bf16 [E,4H]/[H,4H]; bias [1,4H] f32.
    Returns final (hidden, cell) as two [B,H] f32 arrays (no sequence out)."""
    T, B, E = x_tbe.shape
    H = w_hh.shape[0]
    chunk = _pick_chunk(T)
    n_chunks = _cdiv(T, chunk)
    Tp = n_chunks * chunk
    if Tp != T:
        x_tbe = jnp.pad(x_tbe, ((0, Tp - T), (0, 0), (0, 0)))
    x2d = x_tbe.reshape(Tp * B, E)        # free reshape; flat lane-dense input

    kernel = functools.partial(_lstm_encoder_kernel, chunk=chunk, hidden=H,
                               t_valid=T)
    flops = 2 * B * (E + H) * 4 * H * Tp
    bytes_accessed = (x2d.size * 2 + ((E + H) * 4 * H) * 2
                      + 4 * H * 4 + 2 * B * H * 4)
    return pl.pallas_call(
        kernel,
        out_shape=(jax.ShapeDtypeStruct((B, H), jnp.float32),
                   jax.ShapeDtypeStruct((B, H), jnp.float32)),
        grid_spec=pltpu.PrefetchScalarGridSpec(
            num_scalar_prefetch=0,
            grid=(n_chunks,),
            in_specs=[
                pl.BlockSpec((chunk * B, E), lambda c: (c, 0)),
                pl.BlockSpec((E, 4 * H), lambda c: (0, 0)),
                pl.BlockSpec((H, 4 * H), lambda c: (0, 0)),
                pl.BlockSpec((1, 4 * H), lambda c: (0, 0)),
            ],
            out_specs=[
                pl.BlockSpec((B, H), lambda c: (0, 0)),
                pl.BlockSpec((B, H), lambda c: (0, 0)),
            ],
            scratch_shapes=[pltpu.VMEM((B, H), jnp.float32),
                            pltpu.VMEM((B, H), jnp.float32),
                            pltpu.VMEM((chunk * B, 4 * H), jnp.float32)],
        ),
        compiler_params=pltpu.CompilerParams(
            dimension_semantics=("arbitrary",)),       # recurrence is sequential
        cost_estimate=pl.CostEstimate(
            flops=flops, transcendentals=10 * B * H * Tp,
            bytes_accessed=bytes_accessed),
    )(x2d, w_ih, w_hh, bias)


# ---------------------------------------------------------------------------
# Decoder kernel: time-chunked LSTM; h_t staged in VMEM and projected to the
# vocab with one chunk-batched matmul after the recurrence.
# ---------------------------------------------------------------------------
def _lstm_decoder_proj_kernel(x_ref, h0_ref, c0_ref, wih_ref, whh_ref, b_ref,
                              wout_ref, bout_ref, logits_ref,
                              h_sc, c_sc, xw_sc, hseq_sc, *, chunk, hidden):
    ci = pl.program_id(0)
    nb = h_sc.shape[0]

    @pl.when(ci == 0)
    def _():
        h_sc[...] = h0_ref[...]
        c_sc[...] = c0_ref[...]

    xw_sc[...] = (jnp.dot(x_ref[...], wih_ref[...],
                          preferred_element_type=jnp.float32) + b_ref[...])

    w_hh = whh_ref[...]

    def step(i, carry):
        h, c = carry
        row = pl.multiple_of(i * nb, nb)
        h_new, c_new = _gate_step(xw_sc[pl.ds(row, nb), :], h, c, w_hh, hidden)
        hseq_sc[pl.ds(row, nb), :] = h_new
        return h_new, c_new

    h, c = lax.fori_loop(0, chunk, step, (h_sc[...], c_sc[...]), unroll=True)
    h_sc[...] = h
    c_sc[...] = c

    # Chunk-batched vocab projection (M = chunk*B), off the serial chain.
    logits_ref[...] = (jnp.dot(hseq_sc[...].astype(wout_ref.dtype),
                               wout_ref[...],
                               preferred_element_type=jnp.float32)
                       + bout_ref[...])


def lstm_decoder_project(x_tbe, h0, c0, w_ih, w_hh, bias, w_out, b_out):
    """Decoder LSTM + fused output projection.  Returns logits [T, B, V] f32."""
    T, B, E = x_tbe.shape
    H = w_hh.shape[0]
    V = w_out.shape[-1]
    chunk = _pick_chunk(T)
    n_chunks = _cdiv(T, chunk)
    Tp = n_chunks * chunk
    if Tp != T:
        x_tbe = jnp.pad(x_tbe, ((0, Tp - T), (0, 0), (0, 0)))
    x2d = x_tbe.reshape(Tp * B, E)

    kernel = functools.partial(_lstm_decoder_proj_kernel, chunk=chunk, hidden=H)
    flops = (2 * B * (E + H) * 4 * H + 2 * B * H * V) * Tp
    bytes_accessed = (x2d.size * 2 + ((E + H) * 4 * H + H * V) * 2
                      + (4 * H + V) * 4 + Tp * B * V * 4)
    logits2d = pl.pallas_call(
        kernel,
        out_shape=jax.ShapeDtypeStruct((Tp * B, V), jnp.float32),
        grid_spec=pltpu.PrefetchScalarGridSpec(
            num_scalar_prefetch=0,
            grid=(n_chunks,),
            in_specs=[
                pl.BlockSpec((chunk * B, E), lambda c: (c, 0)),
                pl.BlockSpec((B, H), lambda c: (0, 0)),
                pl.BlockSpec((B, H), lambda c: (0, 0)),
                pl.BlockSpec((E, 4 * H), lambda c: (0, 0)),
                pl.BlockSpec((H, 4 * H), lambda c: (0, 0)),
                pl.BlockSpec((1, 4 * H), lambda c: (0, 0)),
                pl.BlockSpec((H, V), lambda c: (0, 0)),
                pl.BlockSpec((1, V), lambda c: (0, 0)),
            ],
            out_specs=pl.BlockSpec((chunk * B, V), lambda c: (c, 0)),
            scratch_shapes=[pltpu.VMEM((B, H), jnp.float32),
                            pltpu.VMEM((B, H), jnp.float32),
                            pltpu.VMEM((chunk * B, 4 * H), jnp.float32),
                            pltpu.VMEM((chunk * B, H), jnp.float32)],
        ),
        compiler_params=pltpu.CompilerParams(
            dimension_semantics=("arbitrary",)),
        cost_estimate=pl.CostEstimate(
            flops=flops, transcendentals=10 * B * H * Tp,
            bytes_accessed=bytes_accessed),
    )(x2d, h0, c0, w_ih, w_hh, bias, w_out, b_out)
    # Padded tail timesteps (if any) are simply discarded.
    return logits2d.reshape(Tp, B, V)[:T]


# ---------------------------------------------------------------------------
# Parameters: PyTorch-style f32 layout, then a one-time pad/reorder/cast prep.
# ---------------------------------------------------------------------------
def init_params(key, en_vocab, de_vocab, embed_dim, hidden_dim):
    ks = jax.random.split(key, 10)
    s = 0.1
    return {
        "en_embed": jax.random.normal(ks[0], (en_vocab, embed_dim), jnp.float32) * s,
        "en_w_ih": jax.random.normal(ks[1], (embed_dim, 4 * hidden_dim), jnp.float32) * s,
        "en_w_hh": jax.random.normal(ks[2], (hidden_dim, 4 * hidden_dim), jnp.float32) * s,
        "en_b":    jax.random.normal(ks[3], (1, 4 * hidden_dim), jnp.float32) * s,
        "de_embed": jax.random.normal(ks[4], (de_vocab, embed_dim), jnp.float32) * s,
        "de_w_ih": jax.random.normal(ks[5], (embed_dim, 4 * hidden_dim), jnp.float32) * s,
        "de_w_hh": jax.random.normal(ks[6], (hidden_dim, 4 * hidden_dim), jnp.float32) * s,
        "de_b":    jax.random.normal(ks[7], (1, 4 * hidden_dim), jnp.float32) * s,
        "out_w":   jax.random.normal(ks[8], (hidden_dim, de_vocab), jnp.float32) * s,
        "out_b":   jax.random.normal(ks[9], (1, de_vocab), jnp.float32) * s,
    }


def prepare_params(params):
    """One-time prep: zero-pad E/H/V to multiples of 128, reorder the LSTM
    gates from PyTorch (i,f,g,o) to (i,f,o,g) so the three sigmoid gates are
    contiguous, and cast matmul operands to bf16.  Zero padding keeps padded
    hidden/vocab lanes exactly 0, so real lanes are unaffected (up to bf16
    rounding of the real weights)."""
    E = params["en_embed"].shape[1]
    H = params["en_w_hh"].shape[0]
    V = params["out_w"].shape[1]
    Ep, Hp, Vp = _round_up(E, _LANE), _round_up(H, _LANE), _round_up(V, _LANE)

    def pad2(a, rows, cols):
        return jnp.pad(a, ((0, rows - a.shape[0]), (0, cols - a.shape[1])))

    def prep_gates(w, rows_to):
        # [rows, 4H] (i,f,g,o) -> [rows_to, 4Hp] reordered to (i,f,o,g),
        # padding each gate block separately.
        rows = w.shape[0]
        w4 = w.reshape(rows, 4, H)[:, (0, 1, 3, 2), :]
        w4 = jnp.pad(w4, ((0, rows_to - rows), (0, 0), (0, Hp - H)))
        return w4.reshape(rows_to, 4 * Hp)

    return {
        "en_embed": pad2(params["en_embed"], params["en_embed"].shape[0], Ep).astype(jnp.bfloat16),
        "de_embed": pad2(params["de_embed"], params["de_embed"].shape[0], Ep).astype(jnp.bfloat16),
        "en_w_ih": prep_gates(params["en_w_ih"], Ep).astype(jnp.bfloat16),
        "en_w_hh": prep_gates(params["en_w_hh"], Hp).astype(jnp.bfloat16),
        "en_b":    prep_gates(params["en_b"], 1),
        "de_w_ih": prep_gates(params["de_w_ih"], Ep).astype(jnp.bfloat16),
        "de_w_hh": prep_gates(params["de_w_hh"], Hp).astype(jnp.bfloat16),
        "de_b":    prep_gates(params["de_b"], 1),
        "out_w":   pad2(params["out_w"], Hp, Vp).astype(jnp.bfloat16),
        "out_b":   pad2(params["out_b"], 1, Vp),
    }


# ---------------------------------------------------------------------------
# Seq2Seq forward (embedding gathers are JAX glue; recurrences and all
# matmuls run inside the Pallas kernels).
# ---------------------------------------------------------------------------
@functools.partial(jax.jit, static_argnames=("out_vocab",))
def seq2seq_forward(prepped, en_input_seq, de_input_seq, *, out_vocab):
    """en/de_input_seq: int32 token ids [B, T] -> [B, T_de, out_vocab] f32."""
    B, _ = en_input_seq.shape
    Bp = _round_up(B, _SUBLANE)
    en_ids = jnp.pad(en_input_seq, ((0, Bp - B), (0, 0)))
    de_ids = jnp.pad(de_input_seq, ((0, Bp - B), (0, 0)))

    # Time-major embedding gather: a [T, Bp] index array yields [T, Bp, Ep]
    # directly (no [B,T,E] -> [T,B,E] transpose of the big activation tensor).
    en_emb = jnp.take(prepped["en_embed"], en_ids.T, axis=0)        # [T, Bp, Ep] bf16
    hidden, cell = lstm_encoder(en_emb, prepped["en_w_ih"],
                                prepped["en_w_hh"], prepped["en_b"])

    de_emb = jnp.take(prepped["de_embed"], de_ids.T, axis=0)        # [T, Bp, Ep] bf16
    logits_tbv = lstm_decoder_project(de_emb, hidden, cell,
                                      prepped["de_w_ih"], prepped["de_w_hh"],
                                      prepped["de_b"],
                                      prepped["out_w"], prepped["out_b"])

    decoder_output = jnp.transpose(logits_tbv, (1, 0, 2))[:B, :, :out_vocab]
    return decoder_output


# Pure-JAX f32 reference of the same forward pass (for the numeric check).
def seq2seq_reference(params, en_input_seq, de_input_seq):
    H = params["en_w_hh"].shape[0]

    def lstm(x_tbe, h, c, w_ih, w_hh, b):
        def step(carry, x_t):
            h, c = carry
            gates = x_t @ w_ih + h @ w_hh + b
            i = jax.nn.sigmoid(gates[:, :H])
            f = jax.nn.sigmoid(gates[:, H:2 * H])
            g = jnp.tanh(gates[:, 2 * H:3 * H])
            o = jax.nn.sigmoid(gates[:, 3 * H:])
            c = f * c + i * g
            h = o * jnp.tanh(c)
            return (h, c), h
        (h, c), hs = jax.lax.scan(step, (h, c), x_tbe)
        return hs, h, c

    B = en_input_seq.shape[0]
    z = jnp.zeros((B, H), jnp.float32)
    en_emb = jnp.transpose(jnp.take(params["en_embed"], en_input_seq, axis=0), (1, 0, 2))
    _, hid, cel = lstm(en_emb, z, z, params["en_w_ih"], params["en_w_hh"], params["en_b"])
    de_emb = jnp.transpose(jnp.take(params["de_embed"], de_input_seq, axis=0), (1, 0, 2))
    hs, _, _ = lstm(de_emb, hid, cel, params["de_w_ih"], params["de_w_hh"], params["de_b"])
    logits = hs @ params["out_w"] + params["out_b"]                 # [T, B, V]
    return jnp.transpose(logits, (1, 0, 2))


if __name__ == "__main__":
    key = jax.random.PRNGKey(0)
    k_param, k_en, k_de = jax.random.split(key, 3)

    B = 2
    T_EN = 8
    T_DE = 8
    EN_VOCAB = 32
    DE_VOCAB = 32
    EMBED = 32
    HIDDEN = 32

    params = init_params(k_param, EN_VOCAB, DE_VOCAB, EMBED, HIDDEN)
    prepped = prepare_params(params)

    en_input_seq = jax.random.randint(k_en, (B, T_EN), 0, EN_VOCAB, jnp.int32)
    de_input_seq = jax.random.randint(k_de, (B, T_DE), 0, DE_VOCAB, jnp.int32)

    out = seq2seq_forward(prepped, en_input_seq, de_input_seq, out_vocab=DE_VOCAB)
    jax.block_until_ready(out)

    assert out.shape == (B, T_DE, DE_VOCAB)
    assert out.dtype == jnp.float32
    assert bool(jnp.all(jnp.isfinite(out)))

    # Numerical check against the pure-JAX f32 reference (bf16-matmul tolerance).
    ref = seq2seq_reference(params, en_input_seq, de_input_seq)
    assert bool(jnp.allclose(out, ref, atol=7.5e-2, rtol=7.5e-2)), (
        "max abs err = %f" % float(jnp.max(jnp.abs(out - ref))))

    print("KERNEL_OK")
</pallas_src>

<mosaic_0001>
module attributes {stable_mosaic.version = 11 : i64} {
  func.func @_lstm_encoder_kernel(%arg0: i32, %arg1: memref<64x128xbf16, #tpu.memory_space<vmem>>, %arg2: memref<128x512xbf16, #tpu.memory_space<vmem>>, %arg3: memref<128x512xbf16, #tpu.memory_space<vmem>>, %arg4: memref<1x512xf32, #tpu.memory_space<vmem>>, %arg5: memref<8x128xf32, #tpu.memory_space<vmem>>, %arg6: memref<8x128xf32, #tpu.memory_space<vmem>>, %arg7: memref<8x128xf32, #tpu.memory_space<vmem>>, %arg8: memref<8x128xf32, #tpu.memory_space<vmem>>, %arg9: memref<64x512xf32, #tpu.memory_space<vmem>>) attributes {dimension_semantics = [#tpu.dimension_semantics<arbitrary>], iteration_bounds = array<i64: 1>, scalar_prefetch = 0 : i64, scratch_operands = 3 : i64, tpu.core_type = #tpu.core_type<tc>, window_params = [{transform_indices = @transform_0, window_bounds = array<i64: 64, 128>}, {pipeline_mode = #tpu.pipeline_mode<synchronous>, transform_indices = @transform_1, window_bounds = array<i64: 128, 512>}, {pipeline_mode = #tpu.pipeline_mode<synchronous>, transform_indices = @transform_2, window_bounds = array<i64: 128, 512>}, {pipeline_mode = #tpu.pipeline_mode<synchronous>, transform_indices = @transform_3, window_bounds = array<i64: 1, 512>}, {pipeline_mode = #tpu.pipeline_mode<synchronous>, transform_indices = @transform_4, window_bounds = array<i64: 8, 128>}, {pipeline_mode = #tpu.pipeline_mode<synchronous>, transform_indices = @transform_5, window_bounds = array<i64: 8, 128>}]} {
    %c0_i32 = arith.constant 0 : i32
    %0 = arith.cmpi eq, %arg0, %c0_i32 : i32
    %1 = arith.extui %0 : i1 to i32
    %c0_i32_0 = arith.constant 0 : i32
    %2 = arith.cmpi ne, %1, %c0_i32_0 : i32
    scf.if %2 {
      %cst_69 = arith.constant 0.000000e+00 : f32
      %242 = vector.broadcast %cst_69 : f32 to vector<8x128xf32>
      %c0_70 = arith.constant 0 : index
      %c0_71 = arith.constant 0 : index
      %243 = vector.load %arg7[%c0_70, %c0_71] : memref<8x128xf32, #tpu.memory_space<vmem>>, vector<8x128xf32>
      tpu.vector_store %arg7[%c0_70, %c0_71], %242 {strides = array<i32>} : memref<8x128xf32, #tpu.memory_space<vmem>>, vector<8x128xf32>,
      %cst_72 = arith.constant 0.000000e+00 : f32
      %244 = vector.broadcast %cst_72 : f32 to vector<8x128xf32>
      %c0_73 = arith.constant 0 : index
      %c0_74 = arith.constant 0 : index
      %245 = vector.load %arg8[%c0_73, %c0_74] : memref<8x128xf32, #tpu.memory_space<vmem>>, vector<8x128xf32>
      tpu.vector_store %arg8[%c0_73, %c0_74], %244 {strides = array<i32>} : memref<8x128xf32, #tpu.memory_space<vmem>>, vector<8x128xf32>,
    } else {
    }
    %c0 = arith.constant 0 : index
    %c0_1 = arith.constant 0 : index
    %3 = vector.load %arg1[%c0, %c0_1] : memref<64x128xbf16, #tpu.memory_space<vmem>>, vector<64x128xbf16>
    %c0_2 = arith.constant 0 : index
    %c0_3 = arith.constant 0 : index
    %4 = vector.load %arg2[%c0_2, %c0_3] : memref<128x512xbf16, #tpu.memory_space<vmem>>, vector<128x512xbf16>
    %cst = arith.constant dense<0.000000e+00> : vector<64x512xf32>
    %5 = tpu.matmul %3, %4, %cst {dimension_numbers = #tpu.dot_dimension_numbers<[1], [0], [0], [1], [0, 0, 1, 1], [], []>} : vector<64x128xbf16>, vector<128x512xbf16>, vector<64x512xf32> -> vector<64x512xf32>
    %c0_4 = arith.constant 0 : index
    %c0_5 = arith.constant 0 : index
    %6 = vector.load %arg4[%c0_4, %c0_5] : memref<1x512xf32, #tpu.memory_space<vmem>>, vector<1x512xf32>
    %7 = vector.broadcast %6 : vector<1x512xf32> to vector<64x512xf32>
    %8 = arith.addf %5, %7 : vector<64x512xf32>
    %c0_6 = arith.constant 0 : index
    %c0_7 = arith.constant 0 : index
    %9 = vector.load %arg9[%c0_6, %c0_7] : memref<64x512xf32, #tpu.memory_space<vmem>>, vector<64x512xf32>
    tpu.vector_store %arg9[%c0_6, %c0_7], %8 {strides = array<i32>} : memref<64x512xf32, #tpu.memory_space<vmem>>, vector<64x512xf32>,
    %c0_8 = arith.constant 0 : index
    %c0_9 = arith.constant 0 : index
    %10 = vector.load %arg3[%c0_8, %c0_9] : memref<128x512xbf16, #tpu.memory_space<vmem>>, vector<128x512xbf16>
    %c0_10 = arith.constant 0 : index
    %c0_11 = arith.constant 0 : index
    %11 = vector.load %arg7[%c0_10, %c0_11] : memref<8x128xf32, #tpu.memory_space<vmem>>, vector<8x128xf32>
    %c0_12 = arith.constant 0 : index
    %c0_13 = arith.constant 0 : index
    %12 = vector.load %arg8[%c0_12, %c0_13] : memref<8x128xf32, #tpu.memory_space<vmem>>, vector<8x128xf32>
    %c0_i32_14 = arith.constant 0 : i32
    %c8_i32 = arith.constant 8 : i32
    %13 = arith.muli %c0_i32_14, %c8_i32 : i32
    %14 = tpu.assume_multiple %13, 8 : i32
    %15 = arith.index_cast %14 : i32 to index
    %c0_15 = arith.constant 0 : index
    %16 = vector.load %arg9[%15, %c0_15] : memref<64x512xf32, #tpu.memory_space<vmem>>, vector<8x512xf32>
    %17 = arith.truncf %11 : vector<8x128xf32> to vector<8x128xbf16>
    %cst_16 = arith.constant dense<0.000000e+00> : vector<8x512xf32>
    %18 = tpu.matmul %17, %10, %cst_16 {dimension_numbers = #tpu.dot_dimension_numbers<[1], [0], [0], [1], [0, 0, 1, 1], [], []>} : vector<8x128xbf16>, vector<128x512xbf16>, vector<8x512xf32> -> vector<8x512xf32>
    %19 = arith.addf %16, %18 : vector<8x512xf32>
    %20 = vector.extract_strided_slice %19 {offsets = [0, 0], sizes = [8, 384], strides = [1, 1]} : vector<8x512xf32> to vector<8x384xf32>
    %21 = arith.negf %20 : vector<8x384xf32>
    %22 = math.exp %21 : vector<8x384xf32>
    %cst_17 = arith.constant 1.000000e+00 : f32
    %23 = vector.broadcast %cst_17 : f32 to vector<8x384xf32>
    %24 = arith.addf %23, %22 : vector<8x384xf32>
    %25 = arith.divf %23, %24 : vector<8x384xf32>
    %26 = vector.extract_strided_slice %25 {offsets = [0, 0], sizes = [8, 128], strides = [1, 1]} : vector<8x384xf32> to vector<8x128xf32>
    %27 = vector.extract_strided_slice %25 {offsets = [0, 128], sizes = [8, 128], strides = [1, 1]} : vector<8x384xf32> to vector<8x128xf32>
    %28 = vector.extract_strided_slice %25 {offsets = [0, 256], sizes = [8, 128], strides = [1, 1]} : vector<8x384xf32> to vector<8x128xf32>
    %29 = vector.extract_strided_slice %19 {offsets = [0, 384], sizes = [8, 128], strides = [1, 1]} : vector<8x512xf32> to vector<8x128xf32>
    %30 = math.tanh %29 : vector<8x128xf32>
    %31 = arith.mulf %27, %12 : vector<8x128xf32>
    %32 = arith.mulf %26, %30 : vector<8x128xf32>
    %33 = arith.addf %31, %32 : vector<8x128xf32>
    %34 = math.tanh %33 : vector<8x128xf32>
    %35 = arith.mulf %28, %34 : vector<8x128xf32>
    %c8_i32_18 = arith.constant 8 : i32
    %36 = arith.muli %arg0, %c8_i32_18 : i32
    %37 = arith.addi %36, %c0_i32_14 : i32
    %c8_i32_19 = arith.constant 8 : i32
    %38 = arith.cmpi slt, %37, %c8_i32_19 : i32
    %39 = arith.select %38, %35, %11 : vector<8x128xf32>
    %40 = arith.select %38, %33, %12 : vector<8x128xf32>
    %c1_i32 = arith.constant 1 : i32
    %c8_i32_20 = arith.constant 8 : i32
    %41 = arith.muli %c1_i32, %c8_i32_20 : i32
    %42 = tpu.assume_multiple %41, 8 : i32
    %43 = arith.index_cast %42 : i32 to index
    %c0_21 = arith.constant 0 : index
    %44 = vector.load %arg9[%43, %c0_21] : memref<64x512xf32, #tpu.memory_space<vmem>>, vector<8x512xf32>
    %45 = arith.truncf %39 : vector<8x128xf32> to vector<8x128xbf16>
    %cst_22 = arith.constant dense<0.000000e+00> : vector<8x512xf32>
    %46 = tpu.matmul %45, %10, %cst_22 {dimension_numbers = #tpu.dot_dimension_numbers<[1], [0], [0], [1], [0, 0, 1, 1], [], []>} : vector<8x128xbf16>, vector<128x512xbf16>, vector<8x512xf32> -> vector<8x512xf32>
    %47 = arith.addf %44, %46 : vector<8x512xf32>
    %48 = vector.extract_strided_slice %47 {offsets = [0, 0], sizes = [8, 384], strides = [1, 1]} : vector<8x512xf32> to vector<8x384xf32>
    %49 = arith.negf %48 : vector<8x384xf32>
    %50 = math.exp %49 : vector<8x384xf32>
    %cst_23 = arith.constant 1.000000e+00 : f32
    %51 = vector.broadcast %cst_23 : f32 to vector<8x384xf32>
    %52 = arith.addf %51, %50 : vector<8x384xf32>
    %53 = arith.divf %51, %52 : vector<8x384xf32>
    %54 = vector.extract_strided_slice %53 {offsets = [0, 0], sizes = [8, 128], strides = [1, 1]} : vector<8x384xf32> to vector<8x128xf32>
    %55 = vector.extract_strided_slice %53 {offsets = [0, 128], sizes = [8, 128], strides = [1, 1]} : vector<8x384xf32> to vector<8x128xf32>
    %56 = vector.extract_strided_slice %53 {offsets = [0, 256], sizes = [8, 128], strides = [1, 1]} : vector<8x384xf32> to vector<8x128xf32>
    %57 = vector.extract_strided_slice %47 {offsets = [0, 384], sizes = [8, 128], strides = [1, 1]} : vector<8x512xf32> to vector<8x128xf32>
    %58 = math.tanh %57 : vector<8x128xf32>
    %59 = arith.mulf %55, %40 : vector<8x128xf32>
    %60 = arith.mulf %54, %58 : vector<8x128xf32>
    %61 = arith.addf %59, %60 : vector<8x128xf32>
    %62 = math.tanh %61 : vector<8x128xf32>
    %63 = arith.mulf %56, %62 : vector<8x128xf32>
    %c8_i32_24 = arith.constant 8 : i32
    %64 = arith.muli %arg0, %c8_i32_24 : i32
    %65 = arith.addi %64, %c1_i32 : i32
    %c8_i32_25 = arith.constant 8 : i32
    %66 = arith.cmpi slt, %65, %c8_i32_25 : i32
    %67 = arith.select %66, %63, %39 : vector<8x128xf32>
    %68 = arith.select %66, %61, %40 : vector<8x128xf32>
    %c2_i32 = arith.constant 2 : i32
    %c8_i32_26 = arith.constant 8 : i32
    %69 = arith.muli %c2_i32, %c8_i32_26 : i32
    %70 = tpu.assume_multiple %69, 8 : i32
    %71 = arith.index_cast %70 : i32 to index
    %c0_27 = arith.constant 0 : index
    %72 = vector.load %arg9[%71, %c0_27] : memref<64x512xf32, #tpu.memory_space<vmem>>, vector<8x512xf32>
    %73 = arith.truncf %67 : vector<8x128xf32> to vector<8x128xbf16>
    %cst_28 = arith.constant dense<0.000000e+00> : vector<8x512xf32>
    %74 = tpu.matmul %73, %10, %cst_28 {dimension_numbers = #tpu.dot_dimension_numbers<[1], [0], [0], [1], [0, 0, 1, 1], [], []>} : vector<8x128xbf16>, vector<128x512xbf16>, vector<8x512xf32> -> vector<8x512xf32>
    %75 = arith.addf %72, %74 : vector<8x512xf32>
    %76 = vector.extract_strided_slice %75 {offsets = [0, 0], sizes = [8, 384], strides = [1, 1]} : vector<8x512xf32> to vector<8x384xf32>
    %77 = arith.negf %76 : vector<8x384xf32>
    %78 = math.exp %77 : vector<8x384xf32>
    %cst_29 = arith.constant 1.000000e+00 : f32
    %79 = vector.broadcast %cst_29 : f32 to vector<8x384xf32>
    %80 = arith.addf %79, %78 : vector<8x384xf32>
    %81 = arith.divf %79, %80 : vector<8x384xf32>
    %82 = vector.extract_strided_slice %81 {offsets = [0, 0], sizes = [8, 128], strides = [1, 1]} : vector<8x384xf32> to vector<8x128xf32>
    %83 = vector.extract_strided_slice %81 {offsets = [0, 128], sizes = [8, 128], strides = [1, 1]} : vector<8x384xf32> to vector<8x128xf32>
    %84 = vector.extract_strided_slice %81 {offsets = [0, 256], sizes = [8, 128], strides = [1, 1]} : vector<8x384xf32> to vector<8x128xf32>
    %85 = vector.extract_strided_slice %75 {offsets = [0, 384], sizes = [8, 128], strides = [1, 1]} : vector<8x512xf32> to vector<8x128xf32>
    %86 = math.tanh %85 : vector<8x128xf32>
    %87 = arith.mulf %83, %68 : vector<8x128xf32>
    %88 = arith.mulf %82, %86 : vector<8x128xf32>
    %89 = arith.addf %87, %88 : vector<8x128xf32>
    %90 = math.tanh %89 : vector<8x128xf32>
    %91 = arith.mulf %84, %90 : vector<8x128xf32>
    %c8_i32_30 = arith.constant 8 : i32
    %92 = arith.muli %arg0, %c8_i32_30 : i32
    %93 = arith.addi %92, %c2_i32 : i32
    %c8_i32_31 = arith.constant 8 : i32
    %94 = arith.cmpi slt, %93, %c8_i32_31 : i32
    %95 = arith.select %94, %91, %67 : vector<8x128xf32>
    %96 = arith.select %94, %89, %68 : vector<8x128xf32>
    %c3_i32 = arith.constant 3 : i32
    %c8_i32_32 = arith.constant 8 : i32
    %97 = arith.muli %c3_i32, %c8_i32_32 : i32
    %98 = tpu.assume_multiple %97, 8 : i32
    %99 = arith.index_cast %98 : i32 to index
    %c0_33 = arith.constant 0 : index
    %100 = vector.load %arg9[%99, %c0_33] : memref<64x512xf32, #tpu.memory_space<vmem>>, vector<8x512xf32>
    %101 = arith.truncf %95 : vector<8x128xf32> to vector<8x128xbf16>
    %cst_34 = arith.constant dense<0.000000e+00> : vector<8x512xf32>
    %102 = tpu.matmul %101, %10, %cst_34 {dimension_numbers = #tpu.dot_dimension_numbers<[1], [0], [0], [1], [0, 0, 1, 1], [], []>} : vector<8x128xbf16>, vector<128x512xbf16>, vector<8x512xf32> -> vector<8x512xf32>
    %103 = arith.addf %100, %102 : vector<8x512xf32>
    %104 = vector.extract_strided_slice %103 {offsets = [0, 0], sizes = [8, 384], strides = [1, 1]} : vector<8x512xf32> to vector<8x384xf32>
    %105 = arith.negf %104 : vector<8x384xf32>
    %106 = math.exp %105 : vector<8x384xf32>
    %cst_35 = arith.constant 1.000000e+00 : f32
    %107 = vector.broadcast %cst_35 : f32 to vector<8x384xf32>
    %108 = arith.addf %107, %106 : vector<8x384xf32>
    %109 = arith.divf %107, %108 : vector<8x384xf32>
    %110 = vector.extract_strided_slice %109 {offsets = [0, 0], sizes = [8, 128], strides = [1, 1]} : vector<8x384xf32> to vector<8x128xf32>
    %111 = vector.extract_strided_slice %109 {offsets = [0, 128], sizes = [8, 128], strides = [1, 1]} : vector<8x384xf32> to vector<8x128xf32>
    %112 = vector.extract_strided_slice %109 {offsets = [0, 256], sizes = [8, 128], strides = [1, 1]} : vector<8x384xf32> to vector<8x128xf32>
    %113 = vector.extract_strided_slice %103 {offsets = [0, 384], sizes = [8, 128], strides = [1, 1]} : vector<8x512xf32> to vector<8x128xf32>
    %114 = math.tanh %113 : vector<8x128xf32>
    %115 = arith.mulf %111, %96 : vector<8x128xf32>
    %116 = arith.mulf %110, %114 : vector<8x128xf32>
    %117 = arith.addf %115, %116 : vector<8x128xf32>
    %118 = math.tanh %117 : vector<8x128xf32>
    %119 = arith.mulf %112, %118 : vector<8x128xf32>
    %c8_i32_36 = arith.constant 8 : i32
    %120 = arith.muli %arg0, %c8_i32_36 : i32
    %121 = arith.addi %120, %c3_i32 : i32
    %c8_i32_37 = arith.constant 8 : i32
    %122 = arith.cmpi slt, %121, %c8_i32_37 : i32
    %123 = arith.select %122, %119, %95 : vector<8x128xf32>
    %124 = arith.select %122, %117, %96 : vector<8x128xf32>
    %c4_i32 = arith.constant 4 : i32
    %c8_i32_38 = arith.constant 8 : i32
    %125 = arith.muli %c4_i32, %c8_i32_38 : i32
    %126 = tpu.assume_multiple %125, 8 : i32
    %127 = arith.index_cast %126 : i32 to index
    %c0_39 = arith.constant 0 : index
    %128 = vector.load %arg9[%127, %c0_39] : memref<64x512xf32, #tpu.memory_space<vmem>>, vector<8x512xf32>
    %129 = arith.truncf %123 : vector<8x128xf32> to vector<8x128xbf16>
    %cst_40 = arith.constant dense<0.000000e+00> : vector<8x512xf32>
    %130 = tpu.matmul %129, %10, %cst_40 {dimension_numbers = #tpu.dot_dimension_numbers<[1], [0], [0], [1], [0, 0, 1, 1], [], []>} : vector<8x128xbf16>, vector<128x512xbf16>, vector<8x512xf32> -> vector<8x512xf32>
    %131 = arith.addf %128, %130 : vector<8x512xf32>
    %132 = vector.extract_strided_slice %131 {offsets = [0, 0], sizes = [8, 384], strides = [1, 1]} : vector<8x512xf32> to vector<8x384xf32>
    %133 = arith.negf %132 : vector<8x384xf32>
    %134 = math.exp %133 : vector<8x384xf32>
    %cst_41 = arith.constant 1.000000e+00 : f32
    %135 = vector.broadcast %cst_41 : f32 to vector<8x384xf32>
    %136 = arith.addf %135, %134 : vector<8x384xf32>
    %137 = arith.divf %135, %136 : vector<8x384xf32>
    %138 = vector.extract_strided_slice %137 {offsets = [0, 0], sizes = [8, 128], strides = [1, 1]} : vector<8x384xf32> to vector<8x128xf32>
    %139 = vector.extract_strided_slice %137 {offsets = [0, 128], sizes = [8, 128], strides = [1, 1]} : vector<8x384xf32> to vector<8x128xf32>
    %140 = vector.extract_strided_slice %137 {offsets = [0, 256], sizes = [8, 128], strides = [1, 1]} : vector<8x384xf32> to vector<8x128xf32>
    %141 = vector.extract_strided_slice %131 {offsets = [0, 384], sizes = [8, 128], strides = [1, 1]} : vector<8x512xf32> to vector<8x128xf32>
    %142 = math.tanh %141 : vector<8x128xf32>
    %143 = arith.mulf %139, %124 : vector<8x128xf32>
    %144 = arith.mulf %138, %142 : vector<8x128xf32>
    %145 = arith.addf %143, %144 : vector<8x128xf32>
    %146 = math.tanh %145 : vector<8x128xf32>
    %147 = arith.mulf %140, %146 : vector<8x128xf32>
    %c8_i32_42 = arith.constant 8 : i32
    %148 = arith.muli %arg0, %c8_i32_42 : i32
    %149 = arith.addi %148, %c4_i32 : i32
    %c8_i32_43 = arith.constant 8 : i32
    %150 = arith.cmpi slt, %149, %c8_i32_43 : i32
    %151 = arith.select %150, %147, %123 : vector<8x128xf32>
    %152 = arith.select %150, %145, %124 : vector<8x128xf32>
    %c5_i32 = arith.constant 5 : i32
    %c8_i32_44 = arith.constant 8 : i32
    %153 = arith.muli %c5_i32, %c8_i32_44 : i32
    %154 = tpu.assume_multiple %153, 8 : i32
    %155 = arith.index_cast %154 : i32 to index
    %c0_45 = arith.constant 0 : index
    %156 = vector.load %arg9[%155, %c0_45] : memref<64x512xf32, #tpu.memory_space<vmem>>, vector<8x512xf32>
    %157 = arith.truncf %151 : vector<8x128xf32> to vector<8x128xbf16>
    %cst_46 = arith.constant dense<0.000000e+00> : vector<8x512xf32>
    %158 = tpu.matmul %157, %10, %cst_46 {dimension_numbers = #tpu.dot_dimension_numbers<[1], [0], [0], [1], [0, 0, 1, 1], [], []>} : vector<8x128xbf16>, vector<128x512xbf16>, vector<8x512xf32> -> vector<8x512xf32>
    %159 = arith.addf %156, %158 : vector<8x512xf32>
    %160 = vector.extract_strided_slice %159 {offsets = [0, 0], sizes = [8, 384], strides = [1, 1]} : vector<8x512xf32> to vector<8x384xf32>
    %161 = arith.negf %160 : vector<8x384xf32>
    %162 = math.exp %161 : vector<8x384xf32>
    %cst_47 = arith.constant 1.000000e+00 : f32
    %163 = vector.broadcast %cst_47 : f32 to vector<8x384xf32>
    %164 = arith.addf %163, %162 : vector<8x384xf32>
    %165 = arith.divf %163, %164 : vector<8x384xf32>
    %166 = vector.extract_strided_slice %165 {offsets = [0, 0], sizes = [8, 128], strides = [1, 1]} : vector<8x384xf32> to vector<8x128xf32>
    %167 = vector.extract_strided_slice %165 {offsets = [0, 128], sizes = [8, 128], strides = [1, 1]} : vector<8x384xf32> to vector<8x128xf32>
    %168 = vector.extract_strided_slice %165 {offsets = [0, 256], sizes = [8, 128], strides = [1, 1]} : vector<8x384xf32> to vector<8x128xf32>
    %169 = vector.extract_strided_slice %159 {offsets = [0, 384], sizes = [8, 128], strides = [1, 1]} : vector<8x512xf32> to vector<8x128xf32>
    %170 = math.tanh %169 : vector<8x128xf32>
    %171 = arith.mulf %167, %152 : vector<8x128xf32>
    %172 = arith.mulf %166, %170 : vector<8x128xf32>
    %173 = arith.addf %171, %172 : vector<8x128xf32>
    %174 = math.tanh %173 : vector<8x128xf32>
    %175 = arith.mulf %168, %174 : vector<8x128xf32>
    %c8_i32_48 = arith.constant 8 : i32
    %176 = arith.muli %arg0, %c8_i32_48 : i32
    %177 = arith.addi %176, %c5_i32 : i32
    %c8_i32_49 = arith.constant 8 : i32
    %178 = arith.cmpi slt, %177, %c8_i32_49 : i32
    %179 = arith.select %178, %175, %151 : vector<8x128xf32>
    %180 = arith.select %178, %173, %152 : vector<8x128xf32>
    %c6_i32 = arith.constant 6 : i32
    %c8_i32_50 = arith.constant 8 : i32
    %181 = arith.muli %c6_i32, %c8_i32_50 : i32
    %182 = tpu.assume_multiple %181, 8 : i32
    %183 = arith.index_cast %182 : i32 to index
    %c0_51 = arith.constant 0 : index
    %184 = vector.load %arg9[%183, %c0_51] : memref<64x512xf32, #tpu.memory_space<vmem>>, vector<8x512xf32>
    %185 = arith.truncf %179 : vector<8x128xf32> to vector<8x128xbf16>
    %cst_52 = arith.constant dense<0.000000e+00> : vector<8x512xf32>
    %186 = tpu.matmul %185, %10, %cst_52 {dimension_numbers = #tpu.dot_dimension_numbers<[1], [0], [0], [1], [0, 0, 1, 1], [], []>} : vector<8x128xbf16>, vector<128x512xbf16>, vector<8x512xf32> -> vector<8x512xf32>
    %187 = arith.addf %184, %186 : vector<8x512xf32>
    %188 = vector.extract_strided_slice %187 {offsets = [0, 0], sizes = [8, 384], strides = [1, 1]} : vector<8x512xf32> to vector<8x384xf32>
    %189 = arith.negf %188 : vector<8x384xf32>
    %190 = math.exp %189 : vector<8x384xf32>
    %cst_53 = arith.constant 1.000000e+00 : f32
    %191 = vector.broadcast %cst_53 : f32 to vector<8x384xf32>
    %192 = arith.addf %191, %190 : vector<8x384xf32>
    %193 = arith.divf %191, %192 : vector<8x384xf32>
    %194 = vector.extract_strided_slice %193 {offsets = [0, 0], sizes = [8, 128], strides = [1, 1]} : vector<8x384xf32> to vector<8x128xf32>
    %195 = vector.extract_strided_slice %193 {offsets = [0, 128], sizes = [8, 128], strides = [1, 1]} : vector<8x384xf32> to vector<8x128xf32>
    %196 = vector.extract_strided_slice %193 {offsets = [0, 256], sizes = [8, 128], strides = [1, 1]} : vector<8x384xf32> to vector<8x128xf32>
    %197 = vector.extract_strided_slice %187 {offsets = [0, 384], sizes = [8, 128], strides = [1, 1]} : vector<8x512xf32> to vector<8x128xf32>
    %198 = math.tanh %197 : vector<8x128xf32>
    %199 = arith.mulf %195, %180 : vector<8x128xf32>
    %200 = arith.mulf %194, %198 : vector<8x128xf32>
    %201 = arith.addf %199, %200 : vector<8x128xf32>
    %202 = math.tanh %201 : vector<8x128xf32>
    %203 = arith.mulf %196, %202 : vector<8x128xf32>
    %c8_i32_54 = arith.constant 8 : i32
    %204 = arith.muli %arg0, %c8_i32_54 : i32
    %205 = arith.addi %204, %c6_i32 : i32
    %c8_i32_55 = arith.constant 8 : i32
    %206 = arith.cmpi slt, %205, %c8_i32_55 : i32
    %207 = arith.select %206, %203, %179 : vector<8x128xf32>
    %208 = arith.select %206, %201, %180 : vector<8x128xf32>
    %c7_i32 = arith.constant 7 : i32
    %c8_i32_56 = arith.constant 8 : i32
    %209 = arith.muli %c7_i32, %c8_i32_56 : i32
    %210 = tpu.assume_multiple %209, 8 : i32
    %211 = arith.index_cast %210 : i32 to index
    %c0_57 = arith.constant 0 : index
    %212 = vector.load %arg9[%211, %c0_57] : memref<64x512xf32, #tpu.memory_space<vmem>>, vector<8x512xf32>
    %213 = arith.truncf %207 : vector<8x128xf32> to vector<8x128xbf16>
    %cst_58 = arith.constant dense<0.000000e+00> : vector<8x512xf32>
    %214 = tpu.matmul %213, %10, %cst_58 {dimension_numbers = #tpu.dot_dimension_numbers<[1], [0], [0], [1], [0, 0, 1, 1], [], []>} : vector<8x128xbf16>, vector<128x512xbf16>, vector<8x512xf32> -> vector<8x512xf32>
    %215 = arith.addf %212, %214 : vector<8x512xf32>
    %216 = vector.extract_strided_slice %215 {offsets = [0, 0], sizes = [8, 384], strides = [1, 1]} : vector<8x512xf32> to vector<8x384xf32>
    %217 = arith.negf %216 : vector<8x384xf32>
    %218 = math.exp %217 : vector<8x384xf32>
    %cst_59 = arith.constant 1.000000e+00 : f32
    %219 = vector.broadcast %cst_59 : f32 to vector<8x384xf32>
    %220 = arith.addf %219, %218 : vector<8x384xf32>
    %221 = arith.divf %219, %220 : vector<8x384xf32>
    %222 = vector.extract_strided_slice %221 {offsets = [0, 0], sizes = [8, 128], strides = [1, 1]} : vector<8x384xf32> to vector<8x128xf32>
    %223 = vector.extract_strided_slice %221 {offsets = [0, 128], sizes = [8, 128], strides = [1, 1]} : vector<8x384xf32> to vector<8x128xf32>
    %224 = vector.extract_strided_slice %221 {offsets = [0, 256], sizes = [8, 128], strides = [1, 1]} : vector<8x384xf32> to vector<8x128xf32>
    %225 = vector.extract_strided_slice %215 {offsets = [0, 384], sizes = [8, 128], strides = [1, 1]} : vector<8x512xf32> to vector<8x128xf32>
    %226 = math.tanh %225 : vector<8x128xf32>
    %227 = arith.mulf %223, %208 : vector<8x128xf32>
    %228 = arith.mulf %222, %226 : vector<8x128xf32>
    %229 = arith.addf %227, %228 : vector<8x128xf32>
    %230 = math.tanh %229 : vector<8x128xf32>
    %231 = arith.mulf %224, %230 : vector<8x128xf32>
    %c8_i32_60 = arith.constant 8 : i32
    %232 = arith.muli %arg0, %c8_i32_60 : i32
    %233 = arith.addi %232, %c7_i32 : i32
    %c8_i32_61 = arith.constant 8 : i32
    %234 = arith.cmpi slt, %233, %c8_i32_61 : i32
    %235 = arith.select %234, %231, %207 : vector<8x128xf32>
    %236 = arith.select %234, %229, %208 : vector<8x128xf32>
    %c8_i32_62 = arith.constant 8 : i32
    %c0_63 = arith.constant 0 : index
    %c0_64 = arith.constant 0 : index
    %237 = vector.load %arg7[%c0_63, %c0_64] : memref<8x128xf32, #tpu.memory_space<vmem>>, vector<8x128xf32>
    tpu.vector_store %arg7[%c0_63, %c0_64], %235 {strides = array<i32>} : memref<8x128xf32, #tpu.memory_space<vmem>>, vector<8x128xf32>,
    %c0_65 = arith.constant 0 : index
    %c0_66 = arith.constant 0 : index
    %238 = vector.load %arg8[%c0_65, %c0_66] : memref<8x128xf32, #tpu.memory_space<vmem>>, vector<8x128xf32>
    tpu.vector_store %arg8[%c0_65, %c0_66], %236 {strides = array<i32>} : memref<8x128xf32, #tpu.memory_space<vmem>>, vector<8x128xf32>,
    %c0_i32_67 = arith.constant 0 : i32
    %239 = arith.cmpi eq, %arg0, %c0_i32_67 : i32
    %240 = arith.extui %239 : i1 to i32
    %c0_i32_68 = arith.constant 0 : i32
    %241 = arith.cmpi ne, %240, %c0_i32_68 : i32
    scf.if %241 {
      %c0_69 = arith.constant 0 : index
      %c0_70 = arith.constant 0 : index
      %242 = vector.load %arg5[%c0_69, %c0_70] : memref<8x128xf32, #tpu.memory_space<vmem>>, vector<8x128xf32>
      tpu.vector_store %arg5[%c0_69, %c0_70], %235 {strides = array<i32>} : memref<8x128xf32, #tpu.memory_space<vmem>>, vector<8x128xf32>,
      %c0_71 = arith.constant 0 : index
      %c0_72 = arith.constant 0 : index
      %243 = vector.load %arg6[%c0_71, %c0_72] : memref<8x128xf32, #tpu.memory_space<vmem>>, vector<8x128xf32>
      tpu.vector_store %arg6[%c0_71, %c0_72], %236 {strides = array<i32>} : memref<8x128xf32, #tpu.memory_space<vmem>>, vector<8x128xf32>,
    } else {
    }
    return
  }
  func.func @transform_0(%arg0: i32) -> (i32, i32) {
    %c0_i32 = arith.constant 0 : i32
    %c0_i32_0 = arith.constant 0 : i32
    return %arg0, %c0_i32 : i32, i32
  }
  func.func @transform_1(%arg0: i32) -> (i32, i32) {
    %c0_i32 = arith.constant 0 : i32
    %c0_i32_0 = arith.constant 0 : i32
    %c0_i32_1 = arith.constant 0 : i32
    return %c0_i32, %c0_i32_0 : i32, i32
  }
  func.func @transform_2(%arg0: i32) -> (i32, i32) {
    %c0_i32 = arith.constant 0 : i32
    %c0_i32_0 = arith.constant 0 : i32
    %c0_i32_1 = arith.constant 0 : i32
    return %c0_i32, %c0_i32_0 : i32, i32
  }
  func.func @transform_3(%arg0: i32) -> (i32, i32) {
    %c0_i32 = arith.constant 0 : i32
    %c0_i32_0 = arith.constant 0 : i32
    %c0_i32_1 = arith.constant 0 : i32
    return %c0_i32, %c0_i32_0 : i32, i32
  }
  func.func @transform_4(%arg0: i32) -> (i32, i32) {
    %c0_i32 = arith.constant 0 : i32
    %c0_i32_0 = arith.constant 0 : i32
    %c0_i32_1 = arith.constant 0 : i32
    return %c0_i32, %c0_i32_0 : i32, i32
  }
  func.func @transform_5(%arg0: i32) -> (i32, i32) {
    %c0_i32 = arith.constant 0 : i32
    %c0_i32_0 = arith.constant 0 : i32
    %c0_i32_1 = arith.constant 0 : i32
    return %c0_i32, %c0_i32_0 : i32, i32
  }
}

module attributes {stable_mosaic.version = 11 : i64} {
  func.func @_lstm_decoder_proj_kernel(%arg0: i32, %arg1: memref<64x128xbf16, #tpu.memory_space<vmem>>, %arg2: memref<8x128xf32, #tpu.memory_space<vmem>>, %arg3: memref<8x128xf32, #tpu.memory_space<vmem>>, %arg4: memref<128x512xbf16, #tpu.memory_space<vmem>>, %arg5: memref<128x512xbf16, #tpu.memory_space<vmem>>, %arg6: memref<1x512xf32, #tpu.memory_space<vmem>>, %arg7: memref<128x128xbf16, #tpu.memory_space<vmem>>, %arg8: memref<1x128xf32, #tpu.memory_space<vmem>>, %arg9: memref<64x128xf32, #tpu.memory_space<vmem>>, %arg10: memref<8x128xf32, #tpu.memory_space<vmem>>, %arg11: memref<8x128xf32, #tpu.memory_space<vmem>>, %arg12: memref<64x512xf32, #tpu.memory_space<vmem>>, %arg13: memref<64x128xf32, #tpu.memory_space<vmem>>) attributes {dimension_semantics = [#tpu.dimension_semantics<arbitrary>], iteration_bounds = array<i64: 1>, scalar_prefetch = 0 : i64, scratch_operands = 4 : i64, tpu.core_type = #tpu.core_type<tc>, window_params = [{transform_indices = @transform_0, window_bounds = array<i64: 64, 128>}, {pipeline_mode = #tpu.pipeline_mode<synchronous>, transform_indices = @transform_1, window_bounds = array<i64: 8, 128>}, {pipeline_mode = #tpu.pipeline_mode<synchronous>, transform_indices = @transform_2, window_bounds = array<i64: 8, 128>}, {pipeline_mode = #tpu.pipeline_mode<synchronous>, transform_indices = @transform_3, window_bounds = array<i64: 128, 512>}, {pipeline_mode = #tpu.pipeline_mode<synchronous>, transform_indices = @transform_4, window_bounds = array<i64: 128, 512>}, {pipeline_mode = #tpu.pipeline_mode<synchronous>, transform_indices = @transform_5, window_bounds = array<i64: 1, 512>}, {pipeline_mode = #tpu.pipeline_mode<synchronous>, transform_indices = @transform_6, window_bounds = array<i64: 128, 128>}, {pipeline_mode = #tpu.pipeline_mode<synchronous>, transform_indices = @transform_7, window_bounds = array<i64: 1, 128>}, {transform_indices = @transform_8, window_bounds = array<i64: 64, 128>}]} {
    %c0_i32 = arith.constant 0 : i32
    %0 = arith.cmpi eq, %arg0, %c0_i32 : i32
    %1 = arith.extui %0 : i1 to i32
    %c0_i32_0 = arith.constant 0 : i32
    %2 = arith.cmpi ne, %1, %c0_i32_0 : i32
    scf.if %2 {
      %c0_68 = arith.constant 0 : index
      %c0_69 = arith.constant 0 : index
      %223 = vector.load %arg2[%c0_68, %c0_69] : memref<8x128xf32, #tpu.memory_space<vmem>>, vector<8x128xf32>
      %c0_70 = arith.constant 0 : index
      %c0_71 = arith.constant 0 : index
      %224 = vector.load %arg10[%c0_70, %c0_71] : memref<8x128xf32, #tpu.memory_space<vmem>>, vector<8x128xf32>
      tpu.vector_store %arg10[%c0_70, %c0_71], %223 {strides = array<i32>} : memref<8x128xf32, #tpu.memory_space<vmem>>, vector<8x128xf32>,
      %c0_72 = arith.constant 0 : index
      %c0_73 = arith.constant 0 : index
      %225 = vector.load %arg3[%c0_72, %c0_73] : memref<8x128xf32, #tpu.memory_space<vmem>>, vector<8x128xf32>
      %c0_74 = arith.constant 0 : index
      %c0_75 = arith.constant 0 : index
      %226 = vector.load %arg11[%c0_74, %c0_75] : memref<8x128xf32, #tpu.memory_space<vmem>>, vector<8x128xf32>
      tpu.vector_store %arg11[%c0_74, %c0_75], %225 {strides = array<i32>} : memref<8x128xf32, #tpu.memory_space<vmem>>, vector<8x128xf32>,
    } else {
    }
    %c0 = arith.constant 0 : index
    %c0_1 = arith.constant 0 : index
    %3 = vector.load %arg1[%c0, %c0_1] : memref<64x128xbf16, #tpu.memory_space<vmem>>, vector<64x128xbf16>
    %c0_2 = arith.constant 0 : index
    %c0_3 = arith.constant 0 : index
    %4 = vector.load %arg4[%c0_2, %c0_3] : memref<128x512xbf16, #tpu.memory_space<vmem>>, vector<128x512xbf16>
    %cst = arith.constant dense<0.000000e+00> : vector<64x512xf32>
    %5 = tpu.matmul %3, %4, %cst {dimension_numbers = #tpu.dot_dimension_numbers<[1], [0], [0], [1], [0, 0, 1, 1], [], []>} : vector<64x128xbf16>, vector<128x512xbf16>, vector<64x512xf32> -> vector<64x512xf32>
    %c0_4 = arith.constant 0 : index
    %c0_5 = arith.constant 0 : index
    %6 = vector.load %arg6[%c0_4, %c0_5] : memref<1x512xf32, #tpu.memory_space<vmem>>, vector<1x512xf32>
    %7 = vector.broadcast %6 : vector<1x512xf32> to vector<64x512xf32>
    %8 = arith.addf %5, %7 : vector<64x512xf32>
    %c0_6 = arith.constant 0 : index
    %c0_7 = arith.constant 0 : index
    %9 = vector.load %arg12[%c0_6, %c0_7] : memref<64x512xf32, #tpu.memory_space<vmem>>, vector<64x512xf32>
    tpu.vector_store %arg12[%c0_6, %c0_7], %8 {strides = array<i32>} : memref<64x512xf32, #tpu.memory_space<vmem>>, vector<64x512xf32>,
    %c0_8 = arith.constant 0 : index
    %c0_9 = arith.constant 0 : index
    %10 = vector.load %arg5[%c0_8, %c0_9] : memref<128x512xbf16, #tpu.memory_space<vmem>>, vector<128x512xbf16>
    %c0_10 = arith.constant 0 : index
    %c0_11 = arith.constant 0 : index
    %11 = vector.load %arg10[%c0_10, %c0_11] : memref<8x128xf32, #tpu.memory_space<vmem>>, vector<8x128xf32>
    %c0_12 = arith.constant 0 : index
    %c0_13 = arith.constant 0 : index
    %12 = vector.load %arg11[%c0_12, %c0_13] : memref<8x128xf32, #tpu.memory_space<vmem>>, vector<8x128xf32>
    %c0_i32_14 = arith.constant 0 : i32
    %c8_i32 = arith.constant 8 : i32
    %13 = arith.muli %c0_i32_14, %c8_i32 : i32
    %14 = tpu.assume_multiple %13, 8 : i32
    %15 = arith.index_cast %14 : i32 to index
    %c0_15 = arith.constant 0 : index
    %16 = vector.load %arg12[%15, %c0_15] : memref<64x512xf32, #tpu.memory_space<vmem>>, vector<8x512xf32>
    %17 = arith.truncf %11 : vector<8x128xf32> to vector<8x128xbf16>
    %cst_16 = arith.constant dense<0.000000e+00> : vector<8x512xf32>
    %18 = tpu.matmul %17, %10, %cst_16 {dimension_numbers = #tpu.dot_dimension_numbers<[1], [0], [0], [1], [0, 0, 1, 1], [], []>} : vector<8x128xbf16>, vector<128x512xbf16>, vector<8x512xf32> -> vector<8x512xf32>
    %19 = arith.addf %16, %18 : vector<8x512xf32>
    %20 = vector.extract_strided_slice %19 {offsets = [0, 0], sizes = [8, 384], strides = [1, 1]} : vector<8x512xf32> to vector<8x384xf32>
    %21 = arith.negf %20 : vector<8x384xf32>
    %22 = math.exp %21 : vector<8x384xf32>
    %cst_17 = arith.constant 1.000000e+00 : f32
    %23 = vector.broadcast %cst_17 : f32 to vector<8x384xf32>
    %24 = arith.addf %23, %22 : vector<8x384xf32>
    %25 = arith.divf %23, %24 : vector<8x384xf32>
    %26 = vector.extract_strided_slice %25 {offsets = [0, 0], sizes = [8, 128], strides = [1, 1]} : vector<8x384xf32> to vector<8x128xf32>
    %27 = vector.extract_strided_slice %25 {offsets = [0, 128], sizes = [8, 128], strides = [1, 1]} : vector<8x384xf32> to vector<8x128xf32>
    %28 = vector.extract_strided_slice %25 {offsets = [0, 256], sizes = [8, 128], strides = [1, 1]} : vector<8x384xf32> to vector<8x128xf32>
    %29 = vector.extract_strided_slice %19 {offsets = [0, 384], sizes = [8, 128], strides = [1, 1]} : vector<8x512xf32> to vector<8x128xf32>
    %30 = math.tanh %29 : vector<8x128xf32>
    %31 = arith.mulf %27, %12 : vector<8x128xf32>
    %32 = arith.mulf %26, %30 : vector<8x128xf32>
    %33 = arith.addf %31, %32 : vector<8x128xf32>
    %34 = math.tanh %33 : vector<8x128xf32>
    %35 = arith.mulf %28, %34 : vector<8x128xf32>
    %36 = arith.index_cast %14 : i32 to index
    %c0_18 = arith.constant 0 : index
    %37 = vector.load %arg13[%36, %c0_18] : memref<64x128xf32, #tpu.memory_space<vmem>>, vector<8x128xf32>
    tpu.vector_store %arg13[%36, %c0_18], %35 {strides = array<i32>} : memref<64x128xf32, #tpu.memory_space<vmem>>, vector<8x128xf32>,
    %c1_i32 = arith.constant 1 : i32
    %c8_i32_19 = arith.constant 8 : i32
    %38 = arith.muli %c1_i32, %c8_i32_19 : i32
    %39 = tpu.assume_multiple %38, 8 : i32
    %40 = arith.index_cast %39 : i32 to index
    %c0_20 = arith.constant 0 : index
    %41 = vector.load %arg12[%40, %c0_20] : memref<64x512xf32, #tpu.memory_space<vmem>>, vector<8x512xf32>
    %42 = arith.truncf %35 : vector<8x128xf32> to vector<8x128xbf16>
    %cst_21 = arith.constant dense<0.000000e+00> : vector<8x512xf32>
    %43 = tpu.matmul %42, %10, %cst_21 {dimension_numbers = #tpu.dot_dimension_numbers<[1], [0], [0], [1], [0, 0, 1, 1], [], []>} : vector<8x128xbf16>, vector<128x512xbf16>, vector<8x512xf32> -> vector<8x512xf32>
    %44 = arith.addf %41, %43 : vector<8x512xf32>
    %45 = vector.extract_strided_slice %44 {offsets = [0, 0], sizes = [8, 384], strides = [1, 1]} : vector<8x512xf32> to vector<8x384xf32>
    %46 = arith.negf %45 : vector<8x384xf32>
    %47 = math.exp %46 : vector<8x384xf32>
    %cst_22 = arith.constant 1.000000e+00 : f32
    %48 = vector.broadcast %cst_22 : f32 to vector<8x384xf32>
    %49 = arith.addf %48, %47 : vector<8x384xf32>
    %50 = arith.divf %48, %49 : vector<8x384xf32>
    %51 = vector.extract_strided_slice %50 {offsets = [0, 0], sizes = [8, 128], strides = [1, 1]} : vector<8x384xf32> to vector<8x128xf32>
    %52 = vector.extract_strided_slice %50 {offsets = [0, 128], sizes = [8, 128], strides = [1, 1]} : vector<8x384xf32> to vector<8x128xf32>
    %53 = vector.extract_strided_slice %50 {offsets = [0, 256], sizes = [8, 128], strides = [1, 1]} : vector<8x384xf32> to vector<8x128xf32>
    %54 = vector.extract_strided_slice %44 {offsets = [0, 384], sizes = [8, 128], strides = [1, 1]} : vector<8x512xf32> to vector<8x128xf32>
    %55 = math.tanh %54 : vector<8x128xf32>
    %56 = arith.mulf %52, %33 : vector<8x128xf32>
    %57 = arith.mulf %51, %55 : vector<8x128xf32>
    %58 = arith.addf %56, %57 : vector<8x128xf32>
    %59 = math.tanh %58 : vector<8x128xf32>
    %60 = arith.mulf %53, %59 : vector<8x128xf32>
    %61 = arith.index_cast %39 : i32 to index
    %c0_23 = arith.constant 0 : index
    %62 = vector.load %arg13[%61, %c0_23] : memref<64x128xf32, #tpu.memory_space<vmem>>, vector<8x128xf32>
    tpu.vector_store %arg13[%61, %c0_23], %60 {strides = array<i32>} : memref<64x128xf32, #tpu.memory_space<vmem>>, vector<8x128xf32>,
    %c2_i32 = arith.constant 2 : i32
    %c8_i32_24 = arith.constant 8 : i32
    %63 = arith.muli %c2_i32, %c8_i32_24 : i32
    %64 = tpu.assume_multiple %63, 8 : i32
    %65 = arith.index_cast %64 : i32 to index
    %c0_25 = arith.constant 0 : index
    %66 = vector.load %arg12[%65, %c0_25] : memref<64x512xf32, #tpu.memory_space<vmem>>, vector<8x512xf32>
    %67 = arith.truncf %60 : vector<8x128xf32> to vector<8x128xbf16>
    %cst_26 = arith.constant dense<0.000000e+00> : vector<8x512xf32>
    %68 = tpu.matmul %67, %10, %cst_26 {dimension_numbers = #tpu.dot_dimension_numbers<[1], [0], [0], [1], [0, 0, 1, 1], [], []>} : vector<8x128xbf16>, vector<128x512xbf16>, vector<8x512xf32> -> vector<8x512xf32>
    %69 = arith.addf %66, %68 : vector<8x512xf32>
    %70 = vector.extract_strided_slice %69 {offsets = [0, 0], sizes = [8, 384], strides = [1, 1]} : vector<8x512xf32> to vector<8x384xf32>
    %71 = arith.negf %70 : vector<8x384xf32>
    %72 = math.exp %71 : vector<8x384xf32>
    %cst_27 = arith.constant 1.000000e+00 : f32
    %73 = vector.broadcast %cst_27 : f32 to vector<8x384xf32>
    %74 = arith.addf %73, %72 : vector<8x384xf32>
    %75 = arith.divf %73, %74 : vector<8x384xf32>
    %76 = vector.extract_strided_slice %75 {offsets = [0, 0], sizes = [8, 128], strides = [1, 1]} : vector<8x384xf32> to vector<8x128xf32>
    %77 = vector.extract_strided_slice %75 {offsets = [0, 128], sizes = [8, 128], strides = [1, 1]} : vector<8x384xf32> to vector<8x128xf32>
    %78 = vector.extract_strided_slice %75 {offsets = [0, 256], sizes = [8, 128], strides = [1, 1]} : vector<8x384xf32> to vector<8x128xf32>
    %79 = vector.extract_strided_slice %69 {offsets = [0, 384], sizes = [8, 128], strides = [1, 1]} : vector<8x512xf32> to vector<8x128xf32>
    %80 = math.tanh %79 : vector<8x128xf32>
    %81 = arith.mulf %77, %58 : vector<8x128xf32>
    %82 = arith.mulf %76, %80 : vector<8x128xf32>
    %83 = arith.addf %81, %82 : vector<8x128xf32>
    %84 = math.tanh %83 : vector<8x128xf32>
    %85 = arith.mulf %78, %84 : vector<8x128xf32>
    %86 = arith.index_cast %64 : i32 to index
    %c0_28 = arith.constant 0 : index
    %87 = vector.load %arg13[%86, %c0_28] : memref<64x128xf32, #tpu.memory_space<vmem>>, vector<8x128xf32>
    tpu.vector_store %arg13[%86, %c0_28], %85 {strides = array<i32>} : memref<64x128xf32, #tpu.memory_space<vmem>>, vector<8x128xf32>,
    %c3_i32 = arith.constant 3 : i32
    %c8_i32_29 = arith.constant 8 : i32
    %88 = arith.muli %c3_i32, %c8_i32_29 : i32
    %89 = tpu.assume_multiple %88, 8 : i32
    %90 = arith.index_cast %89 : i32 to index
    %c0_30 = arith.constant 0 : index
    %91 = vector.load %arg12[%90, %c0_30] : memref<64x512xf32, #tpu.memory_space<vmem>>, vector<8x512xf32>
    %92 = arith.truncf %85 : vector<8x128xf32> to vector<8x128xbf16>
    %cst_31 = arith.constant dense<0.000000e+00> : vector<8x512xf32>
    %93 = tpu.matmul %92, %10, %cst_31 {dimension_numbers = #tpu.dot_dimension_numbers<[1], [0], [0], [1], [0, 0, 1, 1], [], []>} : vector<8x128xbf16>, vector<128x512xbf16>, vector<8x512xf32> -> vector<8x512xf32>
    %94 = arith.addf %91, %93 : vector<8x512xf32>
    %95 = vector.extract_strided_slice %94 {offsets = [0, 0], sizes = [8, 384], strides = [1, 1]} : vector<8x512xf32> to vector<8x384xf32>
    %96 = arith.negf %95 : vector<8x384xf32>
    %97 = math.exp %96 : vector<8x384xf32>
    %cst_32 = arith.constant 1.000000e+00 : f32
    %98 = vector.broadcast %cst_32 : f32 to vector<8x384xf32>
    %99 = arith.addf %98, %97 : vector<8x384xf32>
    %100 = arith.divf %98, %99 : vector<8x384xf32>
    %101 = vector.extract_strided_slice %100 {offsets = [0, 0], sizes = [8, 128], strides = [1, 1]} : vector<8x384xf32> to vector<8x128xf32>
    %102 = vector.extract_strided_slice %100 {offsets = [0, 128], sizes = [8, 128], strides = [1, 1]} : vector<8x384xf32> to vector<8x128xf32>
    %103 = vector.extract_strided_slice %100 {offsets = [0, 256], sizes = [8, 128], strides = [1, 1]} : vector<8x384xf32> to vector<8x128xf32>
    %104 = vector.extract_strided_slice %94 {offsets = [0, 384], sizes = [8, 128], strides = [1, 1]} : vector<8x512xf32> to vector<8x128xf32>
    %105 = math.tanh %104 : vector<8x128xf32>
    %106 = arith.mulf %102, %83 : vector<8x128xf32>
    %107 = arith.mulf %101, %105 : vector<8x128xf32>
    %108 = arith.addf %106, %107 : vector<8x128xf32>
    %109 = math.tanh %108 : vector<8x128xf32>
    %110 = arith.mulf %103, %109 : vector<8x128xf32>
    %111 = arith.index_cast %89 : i32 to index
    %c0_33 = arith.constant 0 : index
    %112 = vector.load %arg13[%111, %c0_33] : memref<64x128xf32, #tpu.memory_space<vmem>>, vector<8x128xf32>
    tpu.vector_store %arg13[%111, %c0_33], %110 {strides = array<i32>} : memref<64x128xf32, #tpu.memory_space<vmem>>, vector<8x128xf32>,
    %c4_i32 = arith.constant 4 : i32
    %c8_i32_34 = arith.constant 8 : i32
    %113 = arith.muli %c4_i32, %c8_i32_34 : i32
    %114 = tpu.assume_multiple %113, 8 : i32
    %115 = arith.index_cast %114 : i32 to index
    %c0_35 = arith.constant 0 : index
    %116 = vector.load %arg12[%115, %c0_35] : memref<64x512xf32, #tpu.memory_space<vmem>>, vector<8x512xf32>
    %117 = arith.truncf %110 : vector<8x128xf32> to vector<8x128xbf16>
    %cst_36 = arith.constant dense<0.000000e+00> : vector<8x512xf32>
    %118 = tpu.matmul %117, %10, %cst_36 {dimension_numbers = #tpu.dot_dimension_numbers<[1], [0], [0], [1], [0, 0, 1, 1], [], []>} : vector<8x128xbf16>, vector<128x512xbf16>, vector<8x512xf32> -> vector<8x512xf32>
    %119 = arith.addf %116, %118 : vector<8x512xf32>
    %120 = vector.extract_strided_slice %119 {offsets = [0, 0], sizes = [8, 384], strides = [1, 1]} : vector<8x512xf32> to vector<8x384xf32>
    %121 = arith.negf %120 : vector<8x384xf32>
    %122 = math.exp %121 : vector<8x384xf32>
    %cst_37 = arith.constant 1.000000e+00 : f32
    %123 = vector.broadcast %cst_37 : f32 to vector<8x384xf32>
    %124 = arith.addf %123, %122 : vector<8x384xf32>
    %125 = arith.divf %123, %124 : vector<8x384xf32>
    %126 = vector.extract_strided_slice %125 {offsets = [0, 0], sizes = [8, 128], strides = [1, 1]} : vector<8x384xf32> to vector<8x128xf32>
    %127 = vector.extract_strided_slice %125 {offsets = [0, 128], sizes = [8, 128], strides = [1, 1]} : vector<8x384xf32> to vector<8x128xf32>
    %128 = vector.extract_strided_slice %125 {offsets = [0, 256], sizes = [8, 128], strides = [1, 1]} : vector<8x384xf32> to vector<8x128xf32>
    %129 = vector.extract_strided_slice %119 {offsets = [0, 384], sizes = [8, 128], strides = [1, 1]} : vector<8x512xf32> to vector<8x128xf32>
    %130 = math.tanh %129 : vector<8x128xf32>
    %131 = arith.mulf %127, %108 : vector<8x128xf32>
    %132 = arith.mulf %126, %130 : vector<8x128xf32>
    %133 = arith.addf %131, %132 : vector<8x128xf32>
    %134 = math.tanh %133 : vector<8x128xf32>
    %135 = arith.mulf %128, %134 : vector<8x128xf32>
    %136 = arith.index_cast %114 : i32 to index
    %c0_38 = arith.constant 0 : index
    %137 = vector.load %arg13[%136, %c0_38] : memref<64x128xf32, #tpu.memory_space<vmem>>, vector<8x128xf32>
    tpu.vector_store %arg13[%136, %c0_38], %135 {strides = array<i32>} : memref<64x128xf32, #tpu.memory_space<vmem>>, vector<8x128xf32>,
    %c5_i32 = arith.constant 5 : i32
    %c8_i32_39 = arith.constant 8 : i32
    %138 = arith.muli %c5_i32, %c8_i32_39 : i32
    %139 = tpu.assume_multiple %138, 8 : i32
    %140 = arith.index_cast %139 : i32 to index
    %c0_40 = arith.constant 0 : index
    %141 = vector.load %arg12[%140, %c0_40] : memref<64x512xf32, #tpu.memory_space<vmem>>, vector<8x512xf32>
    %142 = arith.truncf %135 : vector<8x128xf32> to vector<8x128xbf16>
    %cst_41 = arith.constant dense<0.000000e+00> : vector<8x512xf32>
    %143 = tpu.matmul %142, %10, %cst_41 {dimension_numbers = #tpu.dot_dimension_numbers<[1], [0], [0], [1], [0, 0, 1, 1], [], []>} : vector<8x128xbf16>, vector<128x512xbf16>, vector<8x512xf32> -> vector<8x512xf32>
    %144 = arith.addf %141, %143 : vector<8x512xf32>
    %145 = vector.extract_strided_slice %144 {offsets = [0, 0], sizes = [8, 384], strides = [1, 1]} : vector<8x512xf32> to vector<8x384xf32>
    %146 = arith.negf %145 : vector<8x384xf32>
    %147 = math.exp %146 : vector<8x384xf32>
    %cst_42 = arith.constant 1.000000e+00 : f32
    %148 = vector.broadcast %cst_42 : f32 to vector<8x384xf32>
    %149 = arith.addf %148, %147 : vector<8x384xf32>
    %150 = arith.divf %148, %149 : vector<8x384xf32>
    %151 = vector.extract_strided_slice %150 {offsets = [0, 0], sizes = [8, 128], strides = [1, 1]} : vector<8x384xf32> to vector<8x128xf32>
    %152 = vector.extract_strided_slice %150 {offsets = [0, 128], sizes = [8, 128], strides = [1, 1]} : vector<8x384xf32> to vector<8x128xf32>
    %153 = vector.extract_strided_slice %150 {offsets = [0, 256], sizes = [8, 128], strides = [1, 1]} : vector<8x384xf32> to vector<8x128xf32>
    %154 = vector.extract_strided_slice %144 {offsets = [0, 384], sizes = [8, 128], strides = [1, 1]} : vector<8x512xf32> to vector<8x128xf32>
    %155 = math.tanh %154 : vector<8x128xf32>
    %156 = arith.mulf %152, %133 : vector<8x128xf32>
    %157 = arith.mulf %151, %155 : vector<8x128xf32>
    %158 = arith.addf %156, %157 : vector<8x128xf32>
    %159 = math.tanh %158 : vector<8x128xf32>
    %160 = arith.mulf %153, %159 : vector<8x128xf32>
    %161 = arith.index_cast %139 : i32 to index
    %c0_43 = arith.constant 0 : index
    %162 = vector.load %arg13[%161, %c0_43] : memref<64x128xf32, #tpu.memory_space<vmem>>, vector<8x128xf32>
    tpu.vector_store %arg13[%161, %c0_43], %160 {strides = array<i32>} : memref<64x128xf32, #tpu.memory_space<vmem>>, vector<8x128xf32>,
    %c6_i32 = arith.constant 6 : i32
    %c8_i32_44 = arith.constant 8 : i32
    %163 = arith.muli %c6_i32, %c8_i32_44 : i32
    %164 = tpu.assume_multiple %163, 8 : i32
    %165 = arith.index_cast %164 : i32 to index
    %c0_45 = arith.constant 0 : index
    %166 = vector.load %arg12[%165, %c0_45] : memref<64x512xf32, #tpu.memory_space<vmem>>, vector<8x512xf32>
    %167 = arith.truncf %160 : vector<8x128xf32> to vector<8x128xbf16>
    %cst_46 = arith.constant dense<0.000000e+00> : vector<8x512xf32>
    %168 = tpu.matmul %167, %10, %cst_46 {dimension_numbers = #tpu.dot_dimension_numbers<[1], [0], [0], [1], [0, 0, 1, 1], [], []>} : vector<8x128xbf16>, vector<128x512xbf16>, vector<8x512xf32> -> vector<8x512xf32>
    %169 = arith.addf %166, %168 : vector<8x512xf32>
    %170 = vector.extract_strided_slice %169 {offsets = [0, 0], sizes = [8, 384], strides = [1, 1]} : vector<8x512xf32> to vector<8x384xf32>
    %171 = arith.negf %170 : vector<8x384xf32>
    %172 = math.exp %171 : vector<8x384xf32>
    %cst_47 = arith.constant 1.000000e+00 : f32
    %173 = vector.broadcast %cst_47 : f32 to vector<8x384xf32>
    %174 = arith.addf %173, %172 : vector<8x384xf32>
    %175 = arith.divf %173, %174 : vector<8x384xf32>
    %176 = vector.extract_strided_slice %175 {offsets = [0, 0], sizes = [8, 128], strides = [1, 1]} : vector<8x384xf32> to vector<8x128xf32>
    %177 = vector.extract_strided_slice %175 {offsets = [0, 128], sizes = [8, 128], strides = [1, 1]} : vector<8x384xf32> to vector<8x128xf32>
    %178 = vector.extract_strided_slice %175 {offsets = [0, 256], sizes = [8, 128], strides = [1, 1]} : vector<8x384xf32> to vector<8x128xf32>
    %179 = vector.extract_strided_slice %169 {offsets = [0, 384], sizes = [8, 128], strides = [1, 1]} : vector<8x512xf32> to vector<8x128xf32>
    %180 = math.tanh %179 : vector<8x128xf32>
    %181 = arith.mulf %177, %158 : vector<8x128xf32>
    %182 = arith.mulf %176, %180 : vector<8x128xf32>
    %183 = arith.addf %181, %182 : vector<8x128xf32>
    %184 = math.tanh %183 : vector<8x128xf32>
    %185 = arith.mulf %178, %184 : vector<8x128xf32>
    %186 = arith.index_cast %164 : i32 to index
    %c0_48 = arith.constant 0 : index
    %187 = vector.load %arg13[%186, %c0_48] : memref<64x128xf32, #tpu.memory_space<vmem>>, vector<8x128xf32>
    tpu.vector_store %arg13[%186, %c0_48], %185 {strides = array<i32>} : memref<64x128xf32, #tpu.memory_space<vmem>>, vector<8x128xf32>,
    %c7_i32 = arith.constant 7 : i32
    %c8_i32_49 = arith.constant 8 : i32
    %188 = arith.muli %c7_i32, %c8_i32_49 : i32
    %189 = tpu.assume_multiple %188, 8 : i32
    %190 = arith.index_cast %189 : i32 to index
    %c0_50 = arith.constant 0 : index
    %191 = vector.load %arg12[%190, %c0_50] : memref<64x512xf32, #tpu.memory_space<vmem>>, vector<8x512xf32>
    %192 = arith.truncf %185 : vector<8x128xf32> to vector<8x128xbf16>
    %cst_51 = arith.constant dense<0.000000e+00> : vector<8x512xf32>
    %193 = tpu.matmul %192, %10, %cst_51 {dimension_numbers = #tpu.dot_dimension_numbers<[1], [0], [0], [1], [0, 0, 1, 1], [], []>} : vector<8x128xbf16>, vector<128x512xbf16>, vector<8x512xf32> -> vector<8x512xf32>
    %194 = arith.addf %191, %193 : vector<8x512xf32>
    %195 = vector.extract_strided_slice %194 {offsets = [0, 0], sizes = [8, 384], strides = [1, 1]} : vector<8x512xf32> to vector<8x384xf32>
    %196 = arith.negf %195 : vector<8x384xf32>
    %197 = math.exp %196 : vector<8x384xf32>
    %cst_52 = arith.constant 1.000000e+00 : f32
    %198 = vector.broadcast %cst_52 : f32 to vector<8x384xf32>
    %199 = arith.addf %198, %197 : vector<8x384xf32>
    %200 = arith.divf %198, %199 : vector<8x384xf32>
    %201 = vector.extract_strided_slice %200 {offsets = [0, 0], sizes = [8, 128], strides = [1, 1]} : vector<8x384xf32> to vector<8x128xf32>
    %202 = vector.extract_strided_slice %200 {offsets = [0, 128], sizes = [8, 128], strides = [1, 1]} : vector<8x384xf32> to vector<8x128xf32>
    %203 = vector.extract_strided_slice %200 {offsets = [0, 256], sizes = [8, 128], strides = [1, 1]} : vector<8x384xf32> to vector<8x128xf32>
    %204 = vector.extract_strided_slice %194 {offsets = [0, 384], sizes = [8, 128], strides = [1, 1]} : vector<8x512xf32> to vector<8x128xf32>
    %205 = math.tanh %204 : vector<8x128xf32>
    %206 = arith.mulf %202, %183 : vector<8x128xf32>
    %207 = arith.mulf %201, %205 : vector<8x128xf32>
    %208 = arith.addf %206, %207 : vector<8x128xf32>
    %209 = math.tanh %208 : vector<8x128xf32>
    %210 = arith.mulf %203, %209 : vector<8x128xf32>
    %211 = arith.index_cast %189 : i32 to index
    %c0_53 = arith.constant 0 : index
    %212 = vector.load %arg13[%211, %c0_53] : memref<64x128xf32, #tpu.memory_space<vmem>>, vector<8x128xf32>
    tpu.vector_store %arg13[%211, %c0_53], %210 {strides = array<i32>} : memref<64x128xf32, #tpu.memory_space<vmem>>, vector<8x128xf32>,
    %c8_i32_54 = arith.constant 8 : i32
    %c0_55 = arith.constant 0 : index
    %c0_56 = arith.constant 0 : index
    %213 = vector.load %arg10[%c0_55, %c0_56] : memref<8x128xf32, #tpu.memory_space<vmem>>, vector<8x128xf32>
    tpu.vector_store %arg10[%c0_55, %c0_56], %210 {strides = array<i32>} : memref<8x128xf32, #tpu.memory_space<vmem>>, vector<8x128xf32>,
    %c0_57 = arith.constant 0 : index
    %c0_58 = arith.constant 0 : index
    %214 = vector.load %arg11[%c0_57, %c0_58] : memref<8x128xf32, #tpu.memory_space<vmem>>, vector<8x128xf32>
    tpu.vector_store %arg11[%c0_57, %c0_58], %208 {strides = array<i32>} : memref<8x128xf32, #tpu.memory_space<vmem>>, vector<8x128xf32>,
    %c0_59 = arith.constant 0 : index
    %c0_60 = arith.constant 0 : index
    %215 = vector.load %arg13[%c0_59, %c0_60] : memref<64x128xf32, #tpu.memory_space<vmem>>, vector<64x128xf32>
    %216 = arith.truncf %215 : vector<64x128xf32> to vector<64x128xbf16>
    %c0_61 = arith.constant 0 : index
    %c0_62 = arith.constant 0 : index
    %217 = vector.load %arg7[%c0_61, %c0_62] : memref<128x128xbf16, #tpu.memory_space<vmem>>, vector<128x128xbf16>
    %cst_63 = arith.constant dense<0.000000e+00> : vector<64x128xf32>
    %218 = tpu.matmul %216, %217, %cst_63 {dimension_numbers = #tpu.dot_dimension_numbers<[1], [0], [0], [1], [0, 0, 1, 1], [], []>} : vector<64x128xbf16>, vector<128x128xbf16>, vector<64x128xf32> -> vector<64x128xf32>
    %c0_64 = arith.constant 0 : index
    %c0_65 = arith.constant 0 : index
    %219 = vector.load %arg8[%c0_64, %c0_65] : memref<1x128xf32, #tpu.memory_space<vmem>>, vector<1x128xf32>
    %220 = vector.broadcast %219 : vector<1x128xf32> to vector<64x128xf32>
    %221 = arith.addf %218, %220 : vector<64x128xf32>
    %c0_66 = arith.constant 0 : index
    %c0_67 = arith.constant 0 : index
    %222 = vector.load %arg9[%c0_66, %c0_67] : memref<64x128xf32, #tpu.memory_space<vmem>>, vector<64x128xf32>
    tpu.vector_store %arg9[%c0_66, %c0_67], %221 {strides = array<i32>} : memref<64x128xf32, #tpu.memory_space<vmem>>, vector<64x128xf32>,
    return
  }
  func.func @transform_0(%arg0: i32) -> (i32, i32) {
    %c0_i32 = arith.constant 0 : i32
    %c0_i32_0 = arith.constant 0 : i32
    return %arg0, %c0_i32 : i32, i32
  }
  func.func @transform_1(%arg0: i32) -> (i32, i32) {
    %c0_i32 = arith.constant 0 : i32
    %c0_i32_0 = arith.constant 0 : i32
    %c0_i32_1 = arith.constant 0 : i32
    return %c0_i32, %c0_i32_0 : i32, i32
  }
  func.func @transform_2(%arg0: i32) -> (i32, i32) {
    %c0_i32 = arith.constant 0 : i32
    %c0_i32_0 = arith.constant 0 : i32
    %c0_i32_1 = arith.constant 0 : i32
    return %c0_i32, %c0_i32_0 : i32, i32
  }
  func.func @transform_3(%arg0: i32) -> (i32, i32) {
    %c0_i32 = arith.constant 0 : i32
    %c0_i32_0 = arith.constant 0 : i32
    %c0_i32_1 = arith.constant 0 : i32
    return %c0_i32, %c0_i32_0 : i32, i32
  }
  func.func @transform_4(%arg0: i32) -> (i32, i32) {
    %c0_i32 = arith.constant 0 : i32
    %c0_i32_0 = arith.constant 0 : i32
    %c0_i32_1 = arith.constant 0 : i32
    return %c0_i32, %c0_i32_0 : i32, i32
  }
  func.func @transform_5(%arg0: i32) -> (i32, i32) {
    %c0_i32 = arith.constant 0 : i32
    %c0_i32_0 = arith.constant 0 : i32
    %c0_i32_1 = arith.constant 0 : i32
    return %c0_i32, %c0_i32_0 : i32, i32
  }
  func.func @transform_6(%arg0: i32) -> (i32, i32) {
    %c0_i32 = arith.constant 0 : i32
    %c0_i32_0 = arith.constant 0 : i32
    %c0_i32_1 = arith.constant 0 : i32
    return %c0_i32, %c0_i32_0 : i32, i32
  }
  func.func @transform_7(%arg0: i32) -> (i32, i32) {
    %c0_i32 = arith.constant 0 : i32
    %c0_i32_0 = arith.constant 0 : i32
    %c0_i32_1 = arith.constant 0 : i32
    return %c0_i32, %c0_i32_0 : i32, i32
  }
  func.func @transform_8(%arg0: i32) -> (i32, i32) {
    %c0_i32 = arith.constant 0 : i32
    %c0_i32_0 = arith.constant 0 : i32
    return %arg0, %c0_i32 : i32, i32
  }
}

</mosaic_0001>

<llo_original>
// kernel: seq2seq_forward.2
$region0: #{seq2seq_forward.2}
  #allocation0 [shape = 'u32[]', space=smem, size = 0x4, offset = 0x4, fixed_abs, tag = 'smem constant byte address 0x4 - core index']
  #allocation1 [shape = 'u32[144,128]{1,0:T(1,128)}', space=vmem, size = 0x12000, scoped, tag = 'internal scratch']
  #allocation2 [shape = 'f32[8,128]{1,0:T(8,128)}', space=vmem, size = 0x1000, scoped, tag = 'scratch operand']
  #allocation3 [shape = 'f32[8,128]{1,0:T(8,128)}', space=vmem, size = 0x1000, scoped, tag = 'scratch operand']
  #allocation4 [shape = 'f32[64,512]{1,0:T(8,128)}', space=vmem, size = 0x20000, scoped, tag = 'scratch operand']
  %s0 = inlined_call_operand.vmem [shape: bf16[64,128], index: 0, kind: input, shape index: {}]
  %s1 = inlined_call_operand.vmem [shape: bf16[128,512], index: 1, kind: input, shape index: {}]
  %s2 = inlined_call_operand.vmem [shape: bf16[128,512], index: 2, kind: input, shape index: {}]
  %s3 = inlined_call_operand.vmem [shape: f32[1,512], index: 3, kind: input, shape index: {}]
  %s4 = inlined_call_operand.vmem [shape: f32[8,128], index: 4, kind: output, shape index: {0}]
  %s5 = inlined_call_operand.vmem [shape: f32[8,128], index: 5, kind: output, shape index: {1}]
  %6 = xla_tuple %s4, %s5
  %s7 = sld [smem:[#allocation0]]
  $region42: #{seq2seq_forward.2} parent=0
    _
  %s9 = ssub.s32 1, %s7
  %s10 = scalar_select 0, %s9, %s7
  // Predicated region
  $region2: #{seq2seq_forward.2} parent=0 // pred_check
    _
  $region3: #{seq2seq_forward.2} parent=0 // pred_check_branch
    %12 = sbr.rel (0) target = $region5
  $region4: #{seq2seq_forward.2} parent=0 // pred_region
    _
  $region5: #{seq2seq_forward.2} parent=0 // pred_fallthru
    _
  // Predicated region
  $region6: #{seq2seq_forward.2} parent=0 // pred_check
    _
  $region7: #{seq2seq_forward.2} parent=0 // pred_check_branch
    %14 = sbr.rel (0) target = $region9
  $region8: #{seq2seq_forward.2} parent=0 // pred_region
    _
  $region9: #{seq2seq_forward.2} parent=0 // pred_fallthru
    _
  // Predicated region
  $region10: #{seq2seq_forward.2} parent=0 // pred_check
    _
  $region11: #{seq2seq_forward.2} parent=0 // pred_check_branch
    %16 = sbr.rel (0) target = $region13
  $region12: #{seq2seq_forward.2} parent=0 // pred_region
    _
  $region13: #{seq2seq_forward.2} parent=0 // pred_fallthru
    _
  // Predicated region
  $region14: #{seq2seq_forward.2} parent=0 // pred_check
    _
  $region15: #{seq2seq_forward.2} parent=0 // pred_check_branch
    %18 = sbr.rel (0) target = $region17
  $region16: #{seq2seq_forward.2} parent=0 // pred_region
    _
  $region17: #{seq2seq_forward.2} parent=0 // pred_fallthru
    _
  %p20 = scmp.eq.s32.totalorder 0, 0
  // Predicated region
  $region18: #{seq2seq_forward.2} parent=0 // pred_check
    %p21 = pneg %p20
  $region19: #{seq2seq_forward.2} parent=0 // pred_check_branch
    %23 = sbr.rel (%p21) target = $region21
  $region20: #{seq2seq_forward.2} parent=0 // pred_region
    %24 = vst [vmem:[#allocation2] sm:$0xff] 0.0
    %25 = vst [vmem:[#allocation3] sm:$0xff] 0.0
  $region21: #{seq2seq_forward.2} parent=0 // pred_fallthru
    _
  %v26 = vld [vmem:[%s0] sm:$0xf]
  %v27 = vld [vmem:[%s0 + $0x4] sm:$0xf]
  %v28 = vld [vmem:[%s0 + $0x8] sm:$0xf]
  %v29 = vld [vmem:[%s0 + $0xc] sm:$0xf]
  %v30 = vld [vmem:[%s0 + $0x10] sm:$0xf]
  %v31 = vld [vmem:[%s0 + $0x14] sm:$0xf]
  %v32 = vld [vmem:[%s0 + $0x18] sm:$0xf]
  %v33 = vld [vmem:[%s0 + $0x1c] sm:$0xf]
  %v34 = vld [vmem:[%s1] sm:$0xff]
  %v35 = vld [vmem:[%s1 + $0x8] sm:$0xff]
  %v36 = vld [vmem:[%s1 + $0x10] sm:$0xff]
  %v37 = vld [vmem:[%s1 + $0x18] sm:$0xff]
  %v38 = vld [vmem:[%s1 + $0x20] sm:$0xff]
  %v39 = vld [vmem:[%s1 + $0x28] sm:$0xff]
  %v40 = vld [vmem:[%s1 + $0x30] sm:$0xff]
  %v41 = vld [vmem:[%s1 + $0x38] sm:$0xff]
  %v42 = vld [vmem:[%s1 + $0x40] sm:$0xff]
  %v43 = vld [vmem:[%s1 + $0x48] sm:$0xff]
  %v44 = vld [vmem:[%s1 + $0x50] sm:$0xff]
  %v45 = vld [vmem:[%s1 + $0x58] sm:$0xff]
  %v46 = vld [vmem:[%s1 + $0x60] sm:$0xff]
  %v47 = vld [vmem:[%s1 + $0x68] sm:$0xff]
  %v48 = vld [vmem:[%s1 + $0x70] sm:$0xff]
  %v49 = vld [vmem:[%s1 + $0x78] sm:$0xff]
  %v50 = vld [vmem:[%s1 + $0x80] sm:$0xff]
  %v51 = vld [vmem:[%s1 + $0x88] sm:$0xff]
  %v52 = vld [vmem:[%s1 + $0x90] sm:$0xff]
  %v53 = vld [vmem:[%s1 + $0x98] sm:$0xff]
  %v54 = vld [vmem:[%s1 + $0xa0] sm:$0xff]
  %v55 = vld [vmem:[%s1 + $0xa8] sm:$0xff]
  %v56 = vld [vmem:[%s1 + $0xb0] sm:$0xff]
  %v57 = vld [vmem:[%s1 + $0xb8] sm:$0xff]
  %v58 = vld [vmem:[%s1 + $0xc0] sm:$0xff]
  %v59 = vld [vmem:[%s1 + $0xc8] sm:$0xff]
  %v60 = vld [vmem:[%s1 + $0xd0] sm:$0xff]
  %v61 = vld [vmem:[%s1 + $0xd8] sm:$0xff]
  %v62 = vld [vmem:[%s1 + $0xe0] sm:$0xff]
  %v63 = vld [vmem:[%s1 + $0xe8] sm:$0xff]
  %v64 = vld [vmem:[%s1 + $0xf0] sm:$0xff]
  %v65 = vld [vmem:[%s1 + $0xf8] sm:$0xff]
  %v66 = vld [vmem:[%s3] sm:$0xf]
  %v68 = vlaneseq
  %v69 = vshrl.u32 %v68, 7
  %v70 = vsub.s32 0, %v69
  %v71 = vrot.slane %v66, %v70
  %v72 = vlaneseq
  %v73 = vshrl.u32 %v72, 7
  %v74 = vsub.s32 1, %v73
  %v75 = vrot.slane %v66, %v74
  %v76 = vlaneseq
  %v77 = vshrl.u32 %v76, 7
  %v78 = vsub.s32 2, %v77
  %v79 = vrot.slane %v66, %v78
  %v80 = vlaneseq
  %v81 = vshrl.u32 %v80, 7
  %v82 = vsub.s32 3, %v81
  %v83 = vrot.slane %v66, %v82
  %v96 = vunpack.c.l.b16 %v26
  %v97 = vunpack.c.l.b16 %v27
  %v98 = vunpack.c.l.b16 %v28
  %v99 = vunpack.c.l.b16 %v29
  %v100 = vunpack.c.l.b16 %v30
  %v101 = vunpack.c.l.b16 %v31
  %v102 = vunpack.c.l.b16 %v32
  %v103 = vunpack.c.l.b16 %v33
  %v104 = vpack.c.b16 %v97, %v96
  %v105 = vpack.c.b16 %v99, %v98
  %v106 = vpack.c.b16 %v101, %v100
  %v107 = vpack.c.b16 %v103, %v102
  %v144 = vunpack.c.l.b16 %v34
  %v145 = vunpack.c.h.b16 %v34
  %v146 = vunpack.c.l.b16 %v35
  %v147 = vunpack.c.h.b16 %v35
  %v148 = vunpack.c.l.b16 %v36
  %v149 = vunpack.c.h.b16 %v36
  %v150 = vunpack.c.l.b16 %v37
  %v151 = vunpack.c.h.b16 %v37
  %v152 = vunpack.c.l.b16 %v38
  %v153 = vunpack.c.h.b16 %v38
  %v154 = vunpack.c.l.b16 %v39
  %v155 = vunpack.c.h.b16 %v39
  %v156 = vunpack.c.l.b16 %v40
  %v157 = vunpack.c.h.b16 %v40
  %v158 = vunpack.c.l.b16 %v41
  %v159 = vunpack.c.h.b16 %v41
  %v160 = vunpack.c.l.b16 %v42
  %v161 = vunpack.c.h.b16 %v42
  %v162 = vunpack.c.l.b16 %v43
  %v163 = vunpack.c.h.b16 %v43
  %v164 = vunpack.c.l.b16 %v44
  %v165 = vunpack.c.h.b16 %v44
  %v166 = vunpack.c.l.b16 %v45
  %v167 = vunpack.c.h.b16 %v45
  %v168 = vunpack.c.l.b16 %v46
  %v169 = vunpack.c.h.b16 %v46
  %v170 = vunpack.c.l.b16 %v47
  %v171 = vunpack.c.h.b16 %v47
  %v172 = vunpack.c.l.b16 %v48
  %v173 = vunpack.c.h.b16 %v48
  %v174 = vunpack.c.l.b16 %v49
  %v175 = vunpack.c.h.b16 %v49
  %v176 = vunpack.c.l.b16 %v50
  %v177 = vunpack.c.h.b16 %v50
  %v178 = vunpack.c.l.b16 %v51
  %v179 = vunpack.c.h.b16 %v51
  %v180 = vunpack.c.l.b16 %v52
  %v181 = vunpack.c.h.b16 %v52
  %v182 = vunpack.c.l.b16 %v53
  %v183 = vunpack.c.h.b16 %v53
  %v184 = vunpack.c.l.b16 %v54
  %v185 = vunpack.c.h.b16 %v54
  %v186 = vunpack.c.l.b16 %v55
  %v187 = vunpack.c.h.b16 %v55
  %v188 = vunpack.c.l.b16 %v56
  %v189 = vunpack.c.h.b16 %v56
  %v190 = vunpack.c.l.b16 %v57
  %v191 = vunpack.c.h.b16 %v57
  %v192 = vunpack.c.l.b16 %v58
  %v193 = vunpack.c.h.b16 %v58
  %v194 = vunpack.c.l.b16 %v59
  %v195 = vunpack.c.h.b16 %v59
  %v196 = vunpack.c.l.b16 %v60
  %v197 = vunpack.c.h.b16 %v60
  %v198 = vunpack.c.l.b16 %v61
  %v199 = vunpack.c.h.b16 %v61
  %v200 = vunpack.c.l.b16 %v62
  %v201 = vunpack.c.h.b16 %v62
  %v202 = vunpack.c.l.b16 %v63
  %v203 = vunpack.c.h.b16 %v63
  %v204 = vunpack.c.l.b16 %v64
  %v205 = vunpack.c.h.b16 %v64
  %v206 = vunpack.c.l.b16 %v65
  %v207 = vunpack.c.h.b16 %v65
  %v208 = vpack.c.b16 %v148, %v144
  %v209 = vpack.c.b16 %v149, %v145
  %v210 = vpack.c.b16 %v150, %v146
  %v211 = vpack.c.b16 %v151, %v147
  %v212 = vpack.c.b16 %v156, %v152
  %v213 = vpack.c.b16 %v157, %v153
  %v214 = vpack.c.b16 %v158, %v154
  %v215 = vpack.c.b16 %v159, %v155
  %v216 = vpack.c.b16 %v164, %v160
  %v217 = vpack.c.b16 %v165, %v161
  %v218 = vpack.c.b16 %v166, %v162
  %v219 = vpack.c.b16 %v167, %v163
  %v220 = vpack.c.b16 %v172, %v168
  %v221 = vpack.c.b16 %v173, %v169
  %v222 = vpack.c.b16 %v174, %v170
  %v223 = vpack.c.b16 %v175, %v171
  %v224 = vpack.c.b16 %v180, %v176
  %v225 = vpack.c.b16 %v181, %v177
  %v226 = vpack.c.b16 %v182, %v178
  %v227 = vpack.c.b16 %v183, %v179
  %v228 = vpack.c.b16 %v188, %v184
  %v229 = vpack.c.b16 %v189, %v185
  %v230 = vpack.c.b16 %v190, %v186
  %v231 = vpack.c.b16 %v191, %v187
  %v232 = vpack.c.b16 %v196, %v192
  %v233 = vpack.c.b16 %v197, %v193
  %v234 = vpack.c.b16 %v198, %v194
  %v235 = vpack.c.b16 %v199, %v195
  %v236 = vpack.c.b16 %v204, %v200
  %v237 = vpack.c.b16 %v205, %v201
  %v238 = vpack.c.b16 %v206, %v202
  %v239 = vpack.c.b16 %v207, %v203
  %272 = vmatprep.subr.bf16.mxu0 %v209
  %273 = vmatpush1.bf16.msra.mxu0 %v208
  %274 = vmatprep.subr.bf16.mxu0 %v213
  %275 = vmatpush1.bf16.msra.mxu0 %v212
  %276 = vmatprep.subr.bf16.mxu0 %v217
  %277 = vmatpush1.bf16.msra.mxu0 %v216
  %278 = vmatprep.subr.bf16.mxu0 %v221
  %279 = vmatpush1.bf16.msra.mxu0 %v220
  %280 = vmatprep.subr.bf16.mxu0 %v225
  %281 = vmatpush1.bf16.msra.mxu0 %v224
  %282 = vmatprep.subr.bf16.mxu0 %v229
  %283 = vmatpush1.bf16.msra.mxu0 %v228
  %284 = vmatprep.subr.bf16.mxu0 %v233
  %285 = vmatpush1.bf16.msra.mxu0 %v232
  %286 = vmatprep.subr.bf16.mxu0 %v237
  %287 = vmatpush1.bf16.msra.mxu0 %v236
  %288 = vmatprep.subr.bf16.mxu0 0
  %289 = vmatpush1.bf16.msra.mxu0 0
  %290 = vmatprep.subr.bf16.mxu0 0
  %291 = vmatpush1.bf16.msra.mxu0 0
  %292 = vmatprep.subr.bf16.mxu0 0
  %293 = vmatpush1.bf16.msra.mxu0 0
  %294 = vmatprep.subr.bf16.mxu0 0
  %295 = vmatpush1.bf16.msra.mxu0 0
  %296 = vmatprep.subr.bf16.mxu0 0
  %297 = vmatpush1.bf16.msra.mxu0 0
  %298 = vmatprep.subr.bf16.mxu0 0
  %299 = vmatpush1.bf16.msra.mxu0 0
  %300 = vmatprep.subr.bf16.mxu0 0
  %301 = vmatpush1.bf16.msra.mxu0 0
  %302 = vmatprep.subr.bf16.mxu0 0
  %303 = vmatpush1.bf16.msra.mxu0 0
  %304 = vmatprep.mubr.bf16.mxu0 0
  %305 = vmatmul.mubr.bf16.gmra.mrb[0].mxu0 %v104
  %v306 = vpop.f32.mrb[0].mxu0
  %v307 = vadd.f32 %v71, %v306
  %v308 = vpop.f32.mrb[0].mxu0
  %v309 = vadd.f32 %v75, %v308
  %v310 = vpop.f32.mrb[0].mxu0
  %v311 = vadd.f32 %v71, %v310
  %v312 = vpop.f32.mrb[0].mxu0
  %v313 = vadd.f32 %v75, %v312
  %314 = vmatprep.mubr.bf16.mxu0 0
  %315 = vmatmul.mubr.bf16.gmra.mrb[0].mxu0 %v105
  %v316 = vpop.f32.mrb[0].mxu0
  %v317 = vadd.f32 %v71, %v316
  %v318 = vpop.f32.mrb[0].mxu0
  %v319 = vadd.f32 %v75, %v318
  %v320 = vpop.f32.mrb[0].mxu0
  %v321 = vadd.f32 %v71, %v320
  %v322 = vpop.f32.mrb[0].mxu0
  %v323 = vadd.f32 %v75, %v322
  %324 = vmatprep.mubr.bf16.mxu0 0
  %325 = vmatmul.mubr.bf16.gmra.mrb[0].mxu0 %v106
  %v326 = vpop.f32.mrb[0].mxu0
  %v327 = vadd.f32 %v71, %v326
  %v328 = vpop.f32.mrb[0].mxu0
  %v329 = vadd.f32 %v75, %v328
  %v330 = vpop.f32.mrb[0].mxu0
  %v331 = vadd.f32 %v71, %v330
  %v332 = vpop.f32.mrb[0].mxu0
  %v333 = vadd.f32 %v75, %v332
  %334 = vmatprep.mubr.bf16.mxu0 0
  %335 = vmatmul.mubr.bf16.gmra.mrb[0].mxu0 %v107
  %v336 = vpop.f32.mrb[0].mxu0
  %v337 = vadd.f32 %v71, %v336
  %v338 = vpop.f32.mrb[0].mxu0
  %v339 = vadd.f32 %v75, %v338
  %v340 = vpop.f32.mrb[0].mxu0
  %v341 = vadd.f32 %v71, %v340
  %v342 = vpop.f32.mrb[0].mxu0
  %v343 = vadd.f32 %v75, %v342
  %344 = vdwg.mxu0
  %345 = vmatprep.subr.bf16.mxu0 %v211
  %346 = vmatpush1.bf16.msra.mxu0 %v210
  %347 = vmatprep.subr.bf16.mxu0 %v215
  %348 = vmatpush1.bf16.msra.mxu0 %v214
  %349 = vmatprep.subr.bf16.mxu0 %v219
  %350 = vmatpush1.bf16.msra.mxu0 %v218
  %351 = vmatprep.subr.bf16.mxu0 %v223
  %352 = vmatpush1.bf16.msra.mxu0 %v222
  %353 = vmatprep.subr.bf16.mxu0 %v227
  %354 = vmatpush1.bf16.msra.mxu0 %v226
  %355 = vmatprep.subr.bf16.mxu0 %v231
  %356 = vmatpush1.bf16.msra.mxu0 %v230
  %357 = vmatprep.subr.bf16.mxu0 %v235
  %358 = vmatpush1.bf16.msra.mxu0 %v234
  %359 = vmatprep.subr.bf16.mxu0 %v239
  %360 = vmatpush1.bf16.msra.mxu0 %v238
  %361 = vmatprep.subr.bf16.mxu0 0
  %362 = vmatpush1.bf16.msra.mxu0 0
  %363 = vmatprep.subr.bf16.mxu0 0
  %364 = vmatpush1.bf16.msra.mxu0 0
  %365 = vmatprep.subr.bf16.mxu0 0
  %366 = vmatpush1.bf16.msra.mxu0 0
  %367 = vmatprep.subr.bf16.mxu0 0
  %368 = vmatpush1.bf16.msra.mxu0 0
  %369 = vmatprep.subr.bf16.mxu0 0
  %370 = vmatpush1.bf16.msra.mxu0 0
  %371 = vmatprep.subr.bf16.mxu0 0
  %372 = vmatpush1.bf16.msra.mxu0 0
  %373 = vmatprep.subr.bf16.mxu0 0
  %374 = vmatpush1.bf16.msra.mxu0 0
  %375 = vmatprep.subr.bf16.mxu0 0
  %376 = vmatpush1.bf16.msra.mxu0 0
  %377 = vmatprep.mubr.bf16.mxu0 0
  %378 = vmatmul.mubr.bf16.gmra.mrb[0].mxu0 %v104
  %v379 = vpop.f32.mrb[0].mxu0
  %v380 = vadd.f32 %v79, %v379
  %v381 = vpop.f32.mrb[0].mxu0
  %v382 = vadd.f32 %v83, %v381
  %v383 = vpop.f32.mrb[0].mxu0
  %v384 = vadd.f32 %v79, %v383
  %v385 = vpop.f32.mrb[0].mxu0
  %v386 = vadd.f32 %v83, %v385
  %387 = vmatprep.mubr.bf16.mxu0 0
  %388 = vmatmul.mubr.bf16.gmra.mrb[0].mxu0 %v105
  %v389 = vpop.f32.mrb[0].mxu0
  %v390 = vadd.f32 %v79, %v389
  %v391 = vpop.f32.mrb[0].mxu0
  %v392 = vadd.f32 %v83, %v391
  %v393 = vpop.f32.mrb[0].mxu0
  %v394 = vadd.f32 %v79, %v393
  %v395 = vpop.f32.mrb[0].mxu0
  %v396 = vadd.f32 %v83, %v395
  %397 = vmatprep.mubr.bf16.mxu0 0
  %398 = vmatmul.mubr.bf16.gmra.mrb[0].mxu0 %v106
  %v399 = vpop.f32.mrb[0].mxu0
  %v400 = vadd.f32 %v79, %v399
  %v401 = vpop.f32.mrb[0].mxu0
  %v402 = vadd.f32 %v83, %v401
  %v403 = vpop.f32.mrb[0].mxu0
  %v404 = vadd.f32 %v79, %v403
  %v405 = vpop.f32.mrb[0].mxu0
  %v406 = vadd.f32 %v83, %v405
  %407 = vmatprep.mubr.bf16.mxu0 0
  %408 = vmatmul.mubr.bf16.gmra.mrb[0].mxu0 %v107
  %v409 = vpop.f32.mrb[0].mxu0
  %v410 = vadd.f32 %v79, %v409
  %v411 = vpop.f32.mrb[0].mxu0
  %v412 = vadd.f32 %v83, %v411
  %v413 = vpop.f32.mrb[0].mxu0
  %v414 = vadd.f32 %v79, %v413
  %v415 = vpop.f32.mrb[0].mxu0
  %v416 = vadd.f32 %v83, %v415
  %417 = vdwg.mxu0
  %418 = vst [vmem:[#allocation4] sm:$0xff] %v307
  %419 = vst [vmem:[#allocation4 + $0x8] sm:$0xff] %v309
  %420 = vst [vmem:[#allocation4 + $0x10] sm:$0xff] %v380
  %421 = vst [vmem:[#allocation4 + $0x18] sm:$0xff] %v382
  %422 = vst [vmem:[#allocation4 + $0x20] sm:$0xff] %v311
  %423 = vst [vmem:[#allocation4 + $0x28] sm:$0xff] %v313
  %424 = vst [vmem:[#allocation4 + $0x30] sm:$0xff] %v384
  %425 = vst [vmem:[#allocation4 + $0x38] sm:$0xff] %v386
  %426 = vst [vmem:[#allocation4 + $0x40] sm:$0xff] %v317
  %427 = vst [vmem:[#allocation4 + $0x48] sm:$0xff] %v319
  %428 = vst [vmem:[#allocation4 + $0x50] sm:$0xff] %v390
  %429 = vst [vmem:[#allocation4 + $0x58] sm:$0xff] %v392
  %430 = vst [vmem:[#allocation4 + $0x60] sm:$0xff] %v321
  %431 = vst [vmem:[#allocation4 + $0x68] sm:$0xff] %v323
  %432 = vst [vmem:[#allocation4 + $0x70] sm:$0xff] %v394
  %433 = vst [vmem:[#allocation4 + $0x78] sm:$0xff] %v396
  %434 = vst [vmem:[#allocation4 + $0x80] sm:$0xff] %v327
  %435 = vst [vmem:[#allocation4 + $0x88] sm:$0xff] %v329
  %436 = vst [vmem:[#allocation4 + $0x90] sm:$0xff] %v400
  %437 = vst [vmem:[#allocation4 + $0x98] sm:$0xff] %v402
  %438 = vst [vmem:[#allocation4 + $0xa0] sm:$0xff] %v331
  %439 = vst [vmem:[#allocation4 + $0xa8] sm:$0xff] %v333
  %440 = vst [vmem:[#allocation4 + $0xb0] sm:$0xff] %v404
  %441 = vst [vmem:[#allocation4 + $0xb8] sm:$0xff] %v406
  %442 = vst [vmem:[#allocation4 + $0xc0] sm:$0xff] %v337
  %443 = vst [vmem:[#allocation4 + $0xc8] sm:$0xff] %v339
  %444 = vst [vmem:[#allocation4 + $0xd0] sm:$0xff] %v410
  %445 = vst [vmem:[#allocation4 + $0xd8] sm:$0xff] %v412
  %446 = vst [vmem:[#allocation4 + $0xe0] sm:$0xff] %v341
  %447 = vst [vmem:[#allocation4 + $0xe8] sm:$0xff] %v343
  %448 = vst [vmem:[#allocation4 + $0xf0] sm:$0xff] %v414
  %449 = vst [vmem:[#allocation4 + $0xf8] sm:$0xff] %v416
  %v450 = vld [vmem:[%s2] sm:$0xff]
  %v451 = vld [vmem:[%s2 + $0x8] sm:$0xff]
  %v452 = vld [vmem:[%s2 + $0x10] sm:$0xff]
  %v453 = vld [vmem:[%s2 + $0x18] sm:$0xff]
  %v454 = vld [vmem:[%s2 + $0x20] sm:$0xff]
  %v455 = vld [vmem:[%s2 + $0x28] sm:$0xff]
  %v456 = vld [vmem:[%s2 + $0x30] sm:$0xff]
  %v457 = vld [vmem:[%s2 + $0x38] sm:$0xff]
  %v458 = vld [vmem:[%s2 + $0x40] sm:$0xff]
  %v459 = vld [vmem:[%s2 + $0x48] sm:$0xff]
  %v460 = vld [vmem:[%s2 + $0x50] sm:$0xff]
  %v461 = vld [vmem:[%s2 + $0x58] sm:$0xff]
  %v462 = vld [vmem:[%s2 + $0x60] sm:$0xff]
  %v463 = vld [vmem:[%s2 + $0x68] sm:$0xff]
  %v464 = vld [vmem:[%s2 + $0x70] sm:$0xff]
  %v465 = vld [vmem:[%s2 + $0x78] sm:$0xff]
  %v466 = vld [vmem:[%s2 + $0x80] sm:$0xff]
  %v467 = vld [vmem:[%s2 + $0x88] sm:$0xff]
  %v468 = vld [vmem:[%s2 + $0x90] sm:$0xff]
  %v469 = vld [vmem:[%s2 + $0x98] sm:$0xff]
  %v470 = vld [vmem:[%s2 + $0xa0] sm:$0xff]
  %v471 = vld [vmem:[%s2 + $0xa8] sm:$0xff]
  %v472 = vld [vmem:[%s2 + $0xb0] sm:$0xff]
  %v473 = vld [vmem:[%s2 + $0xb8] sm:$0xff]
  %v474 = vld [vmem:[%s2 + $0xc0] sm:$0xff]
  %v475 = vld [vmem:[%s2 + $0xc8] sm:$0xff]
  %v476 = vld [vmem:[%s2 + $0xd0] sm:$0xff]
  %v477 = vld [vmem:[%s2 + $0xd8] sm:$0xff]
  %v478 = vld [vmem:[%s2 + $0xe0] sm:$0xff]
  %v479 = vld [vmem:[%s2 + $0xe8] sm:$0xff]
  %v480 = vld [vmem:[%s2 + $0xf0] sm:$0xff]
  %v481 = vld [vmem:[%s2 + $0xf8] sm:$0xff]
  %v482 = vld [vmem:[#allocation2] sm:$0xff]
  %v483 = vld [vmem:[#allocation3] sm:$0xff]
  %s484 = smul.u32 0, 4
  %s485 = smul.addr %s484, 8
  %s486 = scalar_lea.vmem [#allocation4], %s485
  %v487 = vld [vmem:[%s486] sm:$0xff]
  %v488 = vld [vmem:[%s486 + $0x8] sm:$0xff]
  %v489 = vld [vmem:[%s486 + $0x10] sm:$0xff]
  %v490 = vld [vmem:[%s486 + $0x18] sm:$0xff]
  %v491 = vpack.c.bf16 %v482, %v482
  %v524 = vunpack.c.l.b16 %v450
  %v525 = vunpack.c.h.b16 %v450
  %v526 = vunpack.c.l.b16 %v451
  %v527 = vunpack.c.h.b16 %v451
  %v528 = vunpack.c.l.b16 %v452
  %v529 = vunpack.c.h.b16 %v452
  %v530 = vunpack.c.l.b16 %v453
  %v531 = vunpack.c.h.b16 %v453
  %v532 = vunpack.c.l.b16 %v454
  %v533 = vunpack.c.h.b16 %v454
  %v534 = vunpack.c.l.b16 %v455
  %v535 = vunpack.c.h.b16 %v455
  %v536 = vunpack.c.l.b16 %v456
  %v537 = vunpack.c.h.b16 %v456
  %v538 = vunpack.c.l.b16 %v457
  %v539 = vunpack.c.h.b16 %v457
  %v540 = vunpack.c.l.b16 %v458
  %v541 = vunpack.c.h.b16 %v458
  %v542 = vunpack.c.l.b16 %v459
  %v543 = vunpack.c.h.b16 %v459
  %v544 = vunpack.c.l.b16 %v460
  %v545 = vunpack.c.h.b16 %v460
  %v546 = vunpack.c.l.b16 %v461
  %v547 = vunpack.c.h.b16 %v461
  %v548 = vunpack.c.l.b16 %v462
  %v549 = vunpack.c.h.b16 %v462
  %v550 = vunpack.c.l.b16 %v463
  %v551 = vunpack.c.h.b16 %v463
  %v552 = vunpack.c.l.b16 %v464
  %v553 = vunpack.c.h.b16 %v464
  %v554 = vunpack.c.l.b16 %v465
  %v555 = vunpack.c.h.b16 %v465
  %v556 = vunpack.c.l.b16 %v466
  %v557 = vunpack.c.h.b16 %v466
  %v558 = vunpack.c.l.b16 %v467
  %v559 = vunpack.c.h.b16 %v467
  %v560 = vunpack.c.l.b16 %v468
  %v561 = vunpack.c.h.b16 %v468
  %v562 = vunpack.c.l.b16 %v469
  %v563 = vunpack.c.h.b16 %v469
  %v564 = vunpack.c.l.b16 %v470
  %v565 = vunpack.c.h.b16 %v470
  %v566 = vunpack.c.l.b16 %v471
  %v567 = vunpack.c.h.b16 %v471
  %v568 = vunpack.c.l.b16 %v472
  %v569 = vunpack.c.h.b16 %v472
  %v570 = vunpack.c.l.b16 %v473
  %v571 = vunpack.c.h.b16 %v473
  %v572 = vunpack.c.l.b16 %v474
  %v573 = vunpack.c.h.b16 %v474
  %v574 = vunpack.c.l.b16 %v475
  %v575 = vunpack.c.h.b16 %v475
  %v576 = vunpack.c.l.b16 %v476
  %v577 = vunpack.c.h.b16 %v476
  %v578 = vunpack.c.l.b16 %v477
  %v579 = vunpack.c.h.b16 %v477
  %v580 = vunpack.c.l.b16 %v478
  %v581 = vunpack.c.h.b16 %v478
  %v582 = vunpack.c.l.b16 %v479
  %v583 = vunpack.c.h.b16 %v479
  %v584 = vunpack.c.l.b16 %v480
  %v585 = vunpack.c.h.b16 %v480
  %v586 = vunpack.c.l.b16 %v481
  %v587 = vunpack.c.h.b16 %v481
  %v588 = vpack.c.b16 %v528, %v524
  %v589 = vpack.c.b16 %v529, %v525
  %v590 = vpack.c.b16 %v530, %v526
  %v591 = vpack.c.b16 %v531, %v527
  %v592 = vpack.c.b16 %v536, %v532
  %v593 = vpack.c.b16 %v537, %v533
  %v594 = vpack.c.b16 %v538, %v534
  %v595 = vpack.c.b16 %v539, %v535
  %v596 = vpack.c.b16 %v544, %v540
  %v597 = vpack.c.b16 %v545, %v541
  %v598 = vpack.c.b16 %v546, %v542
  %v599 = vpack.c.b16 %v547, %v543
  %v600 = vpack.c.b16 %v552, %v548
  %v601 = vpack.c.b16 %v553, %v549
  %v602 = vpack.c.b16 %v554, %v550
  %v603 = vpack.c.b16 %v555, %v551
  %v604 = vpack.c.b16 %v560, %v556
  %v605 = vpack.c.b16 %v561, %v557
  %v606 = vpack.c.b16 %v562, %v558
  %v607 = vpack.c.b16 %v563, %v559
  %v608 = vpack.c.b16 %v568, %v564
  %v609 = vpack.c.b16 %v569, %v565
  %v610 = vpack.c.b16 %v570, %v566
  %v611 = vpack.c.b16 %v571, %v567
  %v612 = vpack.c.b16 %v576, %v572
  %v613 = vpack.c.b16 %v577, %v573
  %v614 = vpack.c.b16 %v578, %v574
  %v615 = vpack.c.b16 %v579, %v575
  %v616 = vpack.c.b16 %v584, %v580
  %v617 = vpack.c.b16 %v585, %v581
  %v618 = vpack.c.b16 %v586, %v582
  %v619 = vpack.c.b16 %v587, %v583
  %652 = vmatprep.subr.bf16.mxu0 %v589
  %653 = vmatpush1.bf16.msra.mxu0 %v588
  %654 = vmatprep.subr.bf16.mxu0 %v593
  %655 = vmatpush1.bf16.msra.mxu0 %v592
  %656 = vmatprep.subr.bf16.mxu0 %v597
  %657 = vmatpush1.bf16.msra.mxu0 %v596
  %658 = vmatprep.subr.bf16.mxu0 %v601
  %659 = vmatpush1.bf16.msra.mxu0 %v600
  %660 = vmatprep.subr.bf16.mxu0 %v605
  %661 = vmatpush1.bf16.msra.mxu0 %v604
  %662 = vmatprep.subr.bf16.mxu0 %v609
  %663 = vmatpush1.bf16.msra.mxu0 %v608
  %664 = vmatprep.subr.bf16.mxu0 %v613
  %665 = vmatpush1.bf16.msra.mxu0 %v612
  %666 = vmatprep.subr.bf16.mxu0 %v617
  %667 = vmatpush1.bf16.msra.mxu0 %v616
  %668 = vmatprep.subr.bf16.mxu0 0
  %669 = vmatpush1.bf16.msra.mxu0 0
  %670 = vmatprep.subr.bf16.mxu0 0
  %671 = vmatpush1.bf16.msra.mxu0 0
  %672 = vmatprep.subr.bf16.mxu0 0
  %673 = vmatpush1.bf16.msra.mxu0 0
  %674 = vmatprep.subr.bf16.mxu0 0
  %675 = vmatpush1.bf16.msra.mxu0 0
  %676 = vmatprep.subr.bf16.mxu0 0
  %677 = vmatpush1.bf16.msra.mxu0 0
  %678 = vmatprep.subr.bf16.mxu0 0
  %679 = vmatpush1.bf16.msra.mxu0 0
  %680 = vmatprep.subr.bf16.mxu0 0
  %681 = vmatpush1.bf16.msra.mxu0 0
  %682 = vmatprep.subr.bf16.mxu0 0
  %683 = vmatpush1.bf16.msra.mxu0 0
  %684 = vmatprep.mubr.bf16.mxu0 0
  %685 = vmatmul.mubr.bf16.gmra.mrb[0].mxu0 %v491
  %v686 = vpop.f32.mrb[0].mxu0
  %v687 = vadd.f32 0.0, %v686
  %v688 = vpop.f32.mrb[0].mxu0
  %v689 = vadd.f32 0.0, %v688
  %v690 = vpop.f32.mrb[0].mxu0
  %v691 = vpop.f32.mrb[0].mxu0
  %692 = vdwg.mxu0
  %693 = vmatprep.subr.bf16.mxu0 %v591
  %694 = vmatpush1.bf16.msra.mxu0 %v590
  %695 = vmatprep.subr.bf16.mxu0 %v595
  %696 = vmatpush1.bf16.msra.mxu0 %v594
  %697 = vmatprep.subr.bf16.mxu0 %v599
  %698 = vmatpush1.bf16.msra.mxu0 %v598
  %699 = vmatprep.subr.bf16.mxu0 %v603
  %700 = vmatpush1.bf16.msra.mxu0 %v602
  %701 = vmatprep.subr.bf16.mxu0 %v607
  %702 = vmatpush1.bf16.msra.mxu0 %v606
  %703 = vmatprep.subr.bf16.mxu0 %v611
  %704 = vmatpush1.bf16.msra.mxu0 %v610
  %705 = vmatprep.subr.bf16.mxu0 %v615
  %706 = vmatpush1.bf16.msra.mxu0 %v614
  %707 = vmatprep.subr.bf16.mxu0 %v619
  %708 = vmatpush1.bf16.msra.mxu0 %v618
  %709 = vmatprep.subr.bf16.mxu0 0
  %710 = vmatpush1.bf16.msra.mxu0 0
  %711 = vmatprep.subr.bf16.mxu0 0
  %712 = vmatpush1.bf16.msra.mxu0 0
  %713 = vmatprep.subr.bf16.mxu0 0
  %714 = vmatpush1.bf16.msra.mxu0 0
  %715 = vmatprep.subr.bf16.mxu0 0
  %716 = vmatpush1.bf16.msra.mxu0 0
  %717 = vmatprep.subr.bf16.mxu0 0
  %718 = vmatpush1.bf16.msra.mxu0 0
  %719 = vmatprep.subr.bf16.mxu0 0
  %720 = vmatpush1.bf16.msra.mxu0 0
  %721 = vmatprep.subr.bf16.mxu0 0
  %722 = vmatpush1.bf16.msra.mxu0 0
  %723 = vmatprep.subr.bf16.mxu0 0
  %724 = vmatpush1.bf16.msra.mxu0 0
  %725 = vmatprep.mubr.bf16.mxu0 0
  %726 = vmatmul.mubr.bf16.gmra.mrb[0].mxu0 %v491
  %v727 = vpop.f32.mrb[0].mxu0
  %v728 = vadd.f32 0.0, %v727
  %v729 = vpop.f32.mrb[0].mxu0
  %v730 = vadd.f32 0.0, %v729
  %v731 = vpop.f32.mrb[0].mxu0
  %v732 = vpop.f32.mrb[0].mxu0
  %733 = vdwg.mxu0
  %v734 = vadd.f32 %v487, %v687
  %v735 = vadd.f32 %v488, %v689
  %v736 = vadd.f32 %v489, %v728
  %v737 = vadd.f32 %v490, %v730
  %v738 = vxor.u32 %v734, 2147483648
  %v739 = vxor.u32 %v735, 2147483648
  %v740 = vxor.u32 %v736, 2147483648
  %v741 = vmul.f32 %v738, 1.442695
  %v742 = vpow.pop %v741
  %v743 = vmul.f32 %v739, 1.442695
  %v744 = vpow.pop %v743
  %v745 = vmul.f32 %v740, 1.442695
  %v746 = vpow.pop %v745
  %v747 = vadd.f32 %v742, 1.0
  %v748 = vadd.f32 %v744, 1.0
  %v749 = vadd.f32 %v746, 1.0
  %v750 = vrcp.pop %v747
  %v751 = vmul.f32 1.0, %v750
  %v752 = vrcp.pop %v748
  %v753 = vmul.f32 1.0, %v752
  %v754 = vrcp.pop %v749
  %v755 = vmul.f32 1.0, %v754
  %v756 = vtanh.pop %v737
  %v757 = vmul.f32 %v753, %v483
  %v758 = vmul.f32 %v751, %v756
  %v759 = vadd.f32 %v757, %v758
  %v760 = vtanh.pop %v759
  %v761 = vmul.f32 %v755, %v760
  %s762 = smul.u32 0, 8
  %p763 = scmp.lt.s32.totalorder %s762, 8
  %s764 = scalar_select %p763, 1, 0
  %v765 = vstv %s764
  %vm766 = vcmp.eq.s32.totalorder %v765, 1
  %v767 = vsel %vm766, %v761, %v482
  %v768 = vsel %vm766, %v759, %v483
  %s769 = smul.u32 1, 4
  %s770 = smul.addr %s769, 8
  %s771 = scalar_lea.vmem [#allocation4], %s770
  %v772 = vld [vmem:[%s771] sm:$0xff]
  %v773 = vld [vmem:[%s771 + $0x8] sm:$0xff]
  %v774 = vld [vmem:[%s771 + $0x10] sm:$0xff]
  %v775 = vld [vmem:[%s771 + $0x18] sm:$0xff]
  %v776 = vpack.c.bf16 %v767, %v767
  %777 = vmatprep.subr.bf16.mxu0 %v589
  %778 = vmatpush1.bf16.msra.mxu0 %v588
  %779 = vmatprep.subr.bf16.mxu0 %v593
  %780 = vmatpush1.bf16.msra.mxu0 %v592
  %781 = vmatprep.subr.bf16.mxu0 %v597
  %782 = vmatpush1.bf16.msra.mxu0 %v596
  %783 = vmatprep.subr.bf16.mxu0 %v601
  %784 = vmatpush1.bf16.msra.mxu0 %v600
  %785 = vmatprep.subr.bf16.mxu0 %v605
  %786 = vmatpush1.bf16.msra.mxu0 %v604
  %787 = vmatprep.subr.bf16.mxu0 %v609
  %788 = vmatpush1.bf16.msra.mxu0 %v608
  %789 = vmatprep.subr.bf16.mxu0 %v613
  %790 = vmatpush1.bf16.msra.mxu0 %v612
  %791 = vmatprep.subr.bf16.mxu0 %v617
  %792 = vmatpush1.bf16.msra.mxu0 %v616
  %793 = vmatprep.subr.bf16.mxu0 0
  %794 = vmatpush1.bf16.msra.mxu0 0
  %795 = vmatprep.subr.bf16.mxu0 0
  %796 = vmatpush1.bf16.msra.mxu0 0
  %797 = vmatprep.subr.bf16.mxu0 0
  %798 = vmatpush1.bf16.msra.mxu0 0
  %799 = vmatprep.subr.bf16.mxu0 0
  %800 = vmatpush1.bf16.msra.mxu0 0
  %801 = vmatprep.subr.bf16.mxu0 0
  %802 = vmatpush1.bf16.msra.mxu0 0
  %803 = vmatprep.subr.bf16.mxu0 0
  %804 = vmatpush1.bf16.msra.mxu0 0
  %805 = vmatprep.subr.bf16.mxu0 0
  %806 = vmatpush1.bf16.msra.mxu0 0
  %807 = vmatprep.subr.bf16.mxu0 0
  %808 = vmatpush1.bf16.msra.mxu0 0
  %809 = vmatprep.mubr.bf16.mxu0 0
  %810 = vmatmul.mubr.bf16.gmra.mrb[0].mxu0 %v776
  %v811 = vpop.f32.mrb[0].mxu0
  %v812 = vadd.f32 0.0, %v811
  %v813 = vpop.f32.mrb[0].mxu0
  %v814 = vadd.f32 0.0, %v813
  %v815 = vpop.f32.mrb[0].mxu0
  %v816 = vpop.f32.mrb[0].mxu0
  %817 = vdwg.mxu0
  %818 = vmatprep.subr.bf16.mxu0 %v591
  %819 = vmatpush1.bf16.msra.mxu0 %v590
  %820 = vmatprep.subr.bf16.mxu0 %v595
  %821 = vmatpush1.bf16.msra.mxu0 %v594
  %822 = vmatprep.subr.bf16.mxu0 %v599
  %823 = vmatpush1.bf16.msra.mxu0 %v598
  %824 = vmatprep.subr.bf16.mxu0 %v603
  %825 = vmatpush1.bf16.msra.mxu0 %v602
  %826 = vmatprep.subr.bf16.mxu0 %v607
  %827 = vmatpush1.bf16.msra.mxu0 %v606
  %828 = vmatprep.subr.bf16.mxu0 %v611
  %829 = vmatpush1.bf16.msra.mxu0 %v610
  %830 = vmatprep.subr.bf16.mxu0 %v615
  %831 = vmatpush1.bf16.msra.mxu0 %v614
  %832 = vmatprep.subr.bf16.mxu0 %v619
  %833 = vmatpush1.bf16.msra.mxu0 %v618
  %834 = vmatprep.subr.bf16.mxu0 0
  %835 = vmatpush1.bf16.msra.mxu0 0
  %836 = vmatprep.subr.bf16.mxu0 0
  %837 = vmatpush1.bf16.msra.mxu0 0
  %838 = vmatprep.subr.bf16.mxu0 0
  %839 = vmatpush1.bf16.msra.mxu0 0
  %840 = vmatprep.subr.bf16.mxu0 0
  %841 = vmatpush1.bf16.msra.mxu0 0
  %842 = vmatprep.subr.bf16.mxu0 0
  %843 = vmatpush1.bf16.msra.mxu0 0
  %844 = vmatprep.subr.bf16.mxu0 0
  %845 = vmatpush1.bf16.msra.mxu0 0
  %846 = vmatprep.subr.bf16.mxu0 0
  %847 = vmatpush1.bf16.msra.mxu0 0
  %848 = vmatprep.subr.bf16.mxu0 0
  %849 = vmatpush1.bf16.msra.mxu0 0
  %850 = vmatprep.mubr.bf16.mxu0 0
  %851 = vmatmul.mubr.bf16.gmra.mrb[0].mxu0 %v776
  %v852 = vpop.f32.mrb[0].mxu0
  %v853 = vadd.f32 0.0, %v852
  %v854 = vpop.f32.mrb[0].mxu0
  %v855 = vadd.f32 0.0, %v854
  %v856 = vpop.f32.mrb[0].mxu0
  %v857 = vpop.f32.mrb[0].mxu0
  %858 = vdwg.mxu0
  %v859 = vadd.f32 %v772, %v812
  %v860 = vadd.f32 %v773, %v814
  %v861 = vadd.f32 %v774, %v853
  %v862 = vadd.f32 %v775, %v855
  %v863 = vxor.u32 %v859, 2147483648
  %v864 = vxor.u32 %v860, 2147483648
  %v865 = vxor.u32 %v861, 2147483648
  %v866 = vmul.f32 %v863, 1.442695
  %v867 = vpow.pop %v866
  %v868 = vmul.f32 %v864, 1.442695
  %v869 = vpow.pop %v868
  %v870 = vmul.f32 %v865, 1.442695
  %v871 = vpow.pop %v870
  %v872 = vadd.f32 %v867, 1.0
  %v873 = vadd.f32 %v869, 1.0
  %v874 = vadd.f32 %v871, 1.0
  %v875 = vrcp.pop %v872
  %v876 = vmul.f32 1.0, %v875
  %v877 = vrcp.pop %v873
  %v878 = vmul.f32 1.0, %v877
  %v879 = vrcp.pop %v874
  %v880 = vmul.f32 1.0, %v879
  %v881 = vtanh.pop %v862
  %v882 = vmul.f32 %v878, %v768
  %v883 = vmul.f32 %v876, %v881
  %v884 = vadd.f32 %v882, %v883
  %v885 = vtanh.pop %v884
  %v886 = vmul.f32 %v880, %v885
  %s887 = sadd.s32 %s762, 1
  %p888 = scmp.lt.s32.totalorder %s887, 8
  %s889 = scalar_select %p888, 1, 0
  %v890 = vstv %s889
  %vm891 = vcmp.eq.s32.totalorder %v890, 1
  %v892 = vsel %vm891, %v886, %v767
  %v893 = vsel %vm891, %v884, %v768
  %s894 = smul.u32 2, 4
  %s895 = smul.addr %s894, 8
  %s896 = scalar_lea.vmem [#allocation4], %s895
  %v897 = vld [vmem:[%s896] sm:$0xff]
  %v898 = vld [vmem:[%s896 + $0x8] sm:$0xff]
  %v899 = vld [vmem:[%s896 + $0x10] sm:$0xff]
  %v900 = vld [vmem:[%s896 + $0x18] sm:$0xff]
  %v901 = vpack.c.bf16 %v892, %v892
  %902 = vmatprep.subr.bf16.mxu0 %v589
  %903 = vmatpush1.bf16.msra.mxu0 %v588
  %904 = vmatprep.subr.bf16.mxu0 %v593
  %905 = vmatpush1.bf16.msra.mxu0 %v592
  %906 = vmatprep.subr.bf16.mxu0 %v597
  %907 = vmatpush1.bf16.msra.mxu0 %v596
  %908 = vmatprep.subr.bf16.mxu0 %v601
  %909 = vmatpush1.bf16.msra.mxu0 %v600
  %910 = vmatprep.subr.bf16.mxu0 %v605
  %911 = vmatpush1.bf16.msra.mxu0 %v604
  %912 = vmatprep.subr.bf16.mxu0 %v609
  %913 = vmatpush1.bf16.msra.mxu0 %v608
  %914 = vmatprep.subr.bf16.mxu0 %v613
  %915 = vmatpush1.bf16.msra.mxu0 %v612
  %916 = vmatprep.subr.bf16.mxu0 %v617
  %917 = vmatpush1.bf16.msra.mxu0 %v616
  %918 = vmatprep.subr.bf16.mxu0 0
  %919 = vmatpush1.bf16.msra.mxu0 0
  %920 = vmatprep.subr.bf16.mxu0 0
  %921 = vmatpush1.bf16.msra.mxu0 0
  %922 = vmatprep.subr.bf16.mxu0 0
  %923 = vmatpush1.bf16.msra.mxu0 0
  %924 = vmatprep.subr.bf16.mxu0 0
  %925 = vmatpush1.bf16.msra.mxu0 0
  %926 = vmatprep.subr.bf16.mxu0 0
  %927 = vmatpush1.bf16.msra.mxu0 0
  %928 = vmatprep.subr.bf16.mxu0 0
  %929 = vmatpush1.bf16.msra.mxu0 0
  %930 = vmatprep.subr.bf16.mxu0 0
  %931 = vmatpush1.bf16.msra.mxu0 0
  %932 = vmatprep.subr.bf16.mxu0 0
  %933 = vmatpush1.bf16.msra.mxu0 0
  %934 = vmatprep.mubr.bf16.mxu0 0
  %935 = vmatmul.mubr.bf16.gmra.mrb[0].mxu0 %v901
  %v936 = vpop.f32.mrb[0].mxu0
  %v937 = vadd.f32 0.0, %v936
  %v938 = vpop.f32.mrb[0].mxu0
  %v939 = vadd.f32 0.0, %v938
  %v940 = vpop.f32.mrb[0].mxu0
  %v941 = vpop.f32.mrb[0].mxu0
  %942 = vdwg.mxu0
  %943 = vmatprep.subr.bf16.mxu0 %v591
  %944 = vmatpush1.bf16.msra.mxu0 %v590
  %945 = vmatprep.subr.bf16.mxu0 %v595
  %946 = vmatpush1.bf16.msra.mxu0 %v594
  %947 = vmatprep.subr.bf16.mxu0 %v599
  %948 = vmatpush1.bf16.msra.mxu0 %v598
  %949 = vmatprep.subr.bf16.mxu0 %v603
  %950 = vmatpush1.bf16.msra.mxu0 %v602
  %951 = vmatprep.subr.bf16.mxu0 %v607
  %952 = vmatpush1.bf16.msra.mxu0 %v606
  %953 = vmatprep.subr.bf16.mxu0 %v611
  %954 = vmatpush1.bf16.msra.mxu0 %v610
  %955 = vmatprep.subr.bf16.mxu0 %v615
  %956 = vmatpush1.bf16.msra.mxu0 %v614
  %957 = vmatprep.subr.bf16.mxu0 %v619
  %958 = vmatpush1.bf16.msra.mxu0 %v618
  %959 = vmatprep.subr.bf16.mxu0 0
  %960 = vmatpush1.bf16.msra.mxu0 0
  %961 = vmatprep.subr.bf16.mxu0 0
  %962 = vmatpush1.bf16.msra.mxu0 0
  %963 = vmatprep.subr.bf16.mxu0 0
  %964 = vmatpush1.bf16.msra.mxu0 0
  %965 = vmatprep.subr.bf16.mxu0 0
  %966 = vmatpush1.bf16.msra.mxu0 0
  %967 = vmatprep.subr.bf16.mxu0 0
  %968 = vmatpush1.bf16.msra.mxu0 0
  %969 = vmatprep.subr.bf16.mxu0 0
  %970 = vmatpush1.bf16.msra.mxu0 0
  %971 = vmatprep.subr.bf16.mxu0 0
  %972 = vmatpush1.bf16.msra.mxu0 0
  %973 = vmatprep.subr.bf16.mxu0 0
  %974 = vmatpush1.bf16.msra.mxu0 0
  %975 = vmatprep.mubr.bf16.mxu0 0
  %976 = vmatmul.mubr.bf16.gmra.mrb[0].mxu0 %v901
  %v977 = vpop.f32.mrb[0].mxu0
  %v978 = vadd.f32 0.0, %v977
  %v979 = vpop.f32.mrb[0].mxu0
  %v980 = vadd.f32 0.0, %v979
  %v981 = vpop.f32.mrb[0].mxu0
  %v982 = vpop.f32.mrb[0].mxu0
  %983 = vdwg.mxu0
  %v984 = vadd.f32 %v897, %v937
  %v985 = vadd.f32 %v898, %v939
  %v986 = vadd.f32 %v899, %v978
  %v987 = vadd.f32 %v900, %v980
  %v988 = vxor.u32 %v984, 2147483648
  %v989 = vxor.u32 %v985, 2147483648
  %v990 = vxor.u32 %v986, 2147483648
  %v991 = vmul.f32 %v988, 1.442695
  %v992 = vpow.pop %v991
  %v993 = vmul.f32 %v989, 1.442695
  %v994 = vpow.pop %v993
  %v995 = vmul.f32 %v990, 1.442695
  %v996 = vpow.pop %v995
  %v997 = vadd.f32 %v992, 1.0
  %v998 = vadd.f32 %v994, 1.0
  %v999 = vadd.f32 %v996, 1.0
  %v1000 = vrcp.pop %v997
  %v1001 = vmul.f32 1.0, %v1000
  %v1002 = vrcp.pop %v998
  %v1003 = vmul.f32 1.0, %v1002
  %v1004 = vrcp.pop %v999
  %v1005 = vmul.f32 1.0, %v1004
  %v1006 = vtanh.pop %v987
  %v1007 = vmul.f32 %v1003, %v893
  %v1008 = vmul.f32 %v1001, %v1006
  %v1009 = vadd.f32 %v1007, %v1008
  %v1010 = vtanh.pop %v1009
  %v1011 = vmul.f32 %v1005, %v1010
  %s1012 = sadd.s32 %s762, 2
  %p1013 = scmp.lt.s32.totalorder %s1012, 8
  %s1014 = scalar_select %p1013, 1, 0
  %v1015 = vstv %s1014
  %vm1016 = vcmp.eq.s32.totalorder %v1015, 1
  %v1017 = vsel %vm1016, %v1011, %v892
  %v1018 = vsel %vm1016, %v1009, %v893
  %s1019 = smul.u32 3, 4
  %s1020 = smul.addr %s1019, 8
  %s1021 = scalar_lea.vmem [#allocation4], %s1020
  %v1022 = vld [vmem:[%s1021] sm:$0xff]
  %v1023 = vld [vmem:[%s1021 + $0x8] sm:$0xff]
  %v1024 = vld [vmem:[%s1021 + $0x10] sm:$0xff]
  %v1025 = vld [vmem:[%s1021 + $0x18] sm:$0xff]
  %v1026 = vpack.c.bf16 %v1017, %v1017
  %1027 = vmatprep.subr.bf16.mxu0 %v589
  %1028 = vmatpush1.bf16.msra.mxu0 %v588
  %1029 = vmatprep.subr.bf16.mxu0 %v593
  %1030 = vmatpush1.bf16.msra.mxu0 %v592
  %1031 = vmatprep.subr.bf16.mxu0 %v597
  %1032 = vmatpush1.bf16.msra.mxu0 %v596
  %1033 = vmatprep.subr.bf16.mxu0 %v601
  %1034 = vmatpush1.bf16.msra.mxu0 %v600
  %1035 = vmatprep.subr.bf16.mxu0 %v605
  %1036 = vmatpush1.bf16.msra.mxu0 %v604
  %1037 = vmatprep.subr.bf16.mxu0 %v609
  %1038 = vmatpush1.bf16.msra.mxu0 %v608
  %1039 = vmatprep.subr.bf16.mxu0 %v613
  %1040 = vmatpush1.bf16.msra.mxu0 %v612
  %1041 = vmatprep.subr.bf16.mxu0 %v617
  %1042 = vmatpush1.bf16.msra.mxu0 %v616
  %1043 = vmatprep.subr.bf16.mxu0 0
  %1044 = vmatpush1.bf16.msra.mxu0 0
  %1045 = vmatprep.subr.bf16.mxu0 0
  %1046 = vmatpush1.bf16.msra.mxu0 0
  %1047 = vmatprep.subr.bf16.mxu0 0
  %1048 = vmatpush1.bf16.msra.mxu0 0
  %1049 = vmatprep.subr.bf16.mxu0 0
  %1050 = vmatpush1.bf16.msra.mxu0 0
  %1051 = vmatprep.subr.bf16.mxu0 0
  %1052 = vmatpush1.bf16.msra.mxu0 0
  %1053 = vmatprep.subr.bf16.mxu0 0
  %1054 = vmatpush1.bf16.msra.mxu0 0
  %1055 = vmatprep.subr.bf16.mxu0 0
  %1056 = vmatpush1.bf16.msra.mxu0 0
  %1057 = vmatprep.subr.bf16.mxu0 0
  %1058 = vmatpush1.bf16.msra.mxu0 0
  %1059 = vmatprep.mubr.bf16.mxu0 0
  %1060 = vmatmul.mubr.bf16.gmra.mrb[0].mxu0 %v1026
  %v1061 = vpop.f32.mrb[0].mxu0
  %v1062 = vadd.f32 0.0, %v1061
  %v1063 = vpop.f32.mrb[0].mxu0
  %v1064 = vadd.f32 0.0, %v1063
  %v1065 = vpop.f32.mrb[0].mxu0
  %v1066 = vpop.f32.mrb[0].mxu0
  %1067 = vdwg.mxu0
  %1068 = vmatprep.subr.bf16.mxu0 %v591
  %1069 = vmatpush1.bf16.msra.mxu0 %v590
  %1070 = vmatprep.subr.bf16.mxu0 %v595
  %1071 = vmatpush1.bf16.msra.mxu0 %v594
  %1072 = vmatprep.subr.bf16.mxu0 %v599
  %1073 = vmatpush1.bf16.msra.mxu0 %v598
  %1074 = vmatprep.subr.bf16.mxu0 %v603
  %1075 = vmatpush1.bf16.msra.mxu0 %v602
  %1076 = vmatprep.subr.bf16.mxu0 %v607
  %1077 = vmatpush1.bf16.msra.mxu0 %v606
  %1078 = vmatprep.subr.bf16.mxu0 %v611
  %1079 = vmatpush1.bf16.msra.mxu0 %v610
  %1080 = vmatprep.subr.bf16.mxu0 %v615
  %1081 = vmatpush1.bf16.msra.mxu0 %v614
  %1082 = vmatprep.subr.bf16.mxu0 %v619
  %1083 = vmatpush1.bf16.msra.mxu0 %v618
  %1084 = vmatprep.subr.bf16.mxu0 0
  %1085 = vmatpush1.bf16.msra.mxu0 0
  %1086 = vmatprep.subr.bf16.mxu0 0
  %1087 = vmatpush1.bf16.msra.mxu0 0
  %1088 = vmatprep.subr.bf16.mxu0 0
  %1089 = vmatpush1.bf16.msra.mxu0 0
  %1090 = vmatprep.subr.bf16.mxu0 0
  %1091 = vmatpush1.bf16.msra.mxu0 0
  %1092 = vmatprep.subr.bf16.mxu0 0
  %1093 = vmatpush1.bf16.msra.mxu0 0
  %1094 = vmatprep.subr.bf16.mxu0 0
  %1095 = vmatpush1.bf16.msra.mxu0 0
  %1096 = vmatprep.subr.bf16.mxu0 0
  %1097 = vmatpush1.bf16.msra.mxu0 0
  %1098 = vmatprep.subr.bf16.mxu0 0
  %1099 = vmatpush1.bf16.msra.mxu0 0
  %1100 = vmatprep.mubr.bf16.mxu0 0
  %1101 = vmatmul.mubr.bf16.gmra.mrb[0].mxu0 %v1026
  %v1102 = vpop.f32.mrb[0].mxu0
  %v1103 = vadd.f32 0.0, %v1102
  %v1104 = vpop.f32.mrb[0].mxu0
  %v1105 = vadd.f32 0.0, %v1104
  %v1106 = vpop.f32.mrb[0].mxu0
  %v1107 = vpop.f32.mrb[0].mxu0
  %1108 = vdwg.mxu0
  %v1109 = vadd.f32 %v1022, %v1062
  %v1110 = vadd.f32 %v1023, %v1064
  %v1111 = vadd.f32 %v1024, %v1103
  %v1112 = vadd.f32 %v1025, %v1105
  %v1113 = vxor.u32 %v1109, 2147483648
  %v1114 = vxor.u32 %v1110, 2147483648
  %v1115 = vxor.u32 %v1111, 2147483648
  %v1116 = vmul.f32 %v1113, 1.442695
  %v1117 = vpow.pop %v1116
  %v1118 = vmul.f32 %v1114, 1.442695
  %v1119 = vpow.pop %v1118
  %v1120 = vmul.f32 %v1115, 1.442695
  %v1121 = vpow.pop %v1120
  %v1122 = vadd.f32 %v1117, 1.0
  %v1123 = vadd.f32 %v1119, 1.0
  %v1124 = vadd.f32 %v1121, 1.0
  %v1125 = vrcp.pop %v1122
  %v1126 = vmul.f32 1.0, %v1125
  %v1127 = vrcp.pop %v1123
  %v1128 = vmul.f32 1.0, %v1127
  %v1129 = vrcp.pop %v1124
  %v1130 = vmul.f32 1.0, %v1129
  %v1131 = vtanh.pop %v1112
  %v1132 = vmul.f32 %v1128, %v1018
  %v1133 = vmul.f32 %v1126, %v1131
  %v1134 = vadd.f32 %v1132, %v1133
  %v1135 = vtanh.pop %v1134
  %v1136 = vmul.f32 %v1130, %v1135
  %s1137 = sadd.s32 %s762, 3
  %p1138 = scmp.lt.s32.totalorder %s1137, 8
  %s1139 = scalar_select %p1138, 1, 0
  %v1140 = vstv %s1139
  %vm1141 = vcmp.eq.s32.totalorder %v1140, 1
  %v1142 = vsel %vm1141, %v1136, %v1017
  %v1143 = vsel %vm1141, %v1134, %v1018
  %s1144 = smul.u32 4, 4
  %s1145 = smul.addr %s1144, 8
  %s1146 = scalar_lea.vmem [#allocation4], %s1145
  %v1147 = vld [vmem:[%s1146] sm:$0xff]
  %v1148 = vld [vmem:[%s1146 + $0x8] sm:$0xff]
  %v1149 = vld [vmem:[%s1146 + $0x10] sm:$0xff]
  %v1150 = vld [vmem:[%s1146 + $0x18] sm:$0xff]
  %v1151 = vpack.c.bf16 %v1142, %v1142
  %1152 = vmatprep.subr.bf16.mxu0 %v589
  %1153 = vmatpush1.bf16.msra.mxu0 %v588
  %1154 = vmatprep.subr.bf16.mxu0 %v593
  %1155 = vmatpush1.bf16.msra.mxu0 %v592
  %1156 = vmatprep.subr.bf16.mxu0 %v597
  %1157 = vmatpush1.bf16.msra.mxu0 %v596
  %1158 = vmatprep.subr.bf16.mxu0 %v601
  %1159 = vmatpush1.bf16.msra.mxu0 %v600
  %1160 = vmatprep.subr.bf16.mxu0 %v605
  %1161 = vmatpush1.bf16.msra.mxu0 %v604
  %1162 = vmatprep.subr.bf16.mxu0 %v609
  %1163 = vmatpush1.bf16.msra.mxu0 %v608
  %1164 = vmatprep.subr.bf16.mxu0 %v613
  %1165 = vmatpush1.bf16.msra.mxu0 %v612
  %1166 = vmatprep.subr.bf16.mxu0 %v617
  %1167 = vmatpush1.bf16.msra.mxu0 %v616
  %1168 = vmatprep.subr.bf16.mxu0 0
  %1169 = vmatpush1.bf16.msra.mxu0 0
  %1170 = vmatprep.subr.bf16.mxu0 0
  %1171 = vmatpush1.bf16.msra.mxu0 0
  %1172 = vmatprep.subr.bf16.mxu0 0
  %1173 = vmatpush1.bf16.msra.mxu0 0
  %1174 = vmatprep.subr.bf16.mxu0 0
  %1175 = vmatpush1.bf16.msra.mxu0 0
  %1176 = vmatprep.subr.bf16.mxu0 0
  %1177 = vmatpush1.bf16.msra.mxu0 0
  %1178 = vmatprep.subr.bf16.mxu0 0
  %1179 = vmatpush1.bf16.msra.mxu0 0
  %1180 = vmatprep.subr.bf16.mxu0 0
  %1181 = vmatpush1.bf16.msra.mxu0 0
  %1182 = vmatprep.subr.bf16.mxu0 0
  %1183 = vmatpush1.bf16.msra.mxu0 0
  %1184 = vmatprep.mubr.bf16.mxu0 0
  %1185 = vmatmul.mubr.bf16.gmra.mrb[0].mxu0 %v1151
  %v1186 = vpop.f32.mrb[0].mxu0
  %v1187 = vadd.f32 0.0, %v1186
  %v1188 = vpop.f32.mrb[0].mxu0
  %v1189 = vadd.f32 0.0, %v1188
  %v1190 = vpop.f32.mrb[0].mxu0
  %v1191 = vpop.f32.mrb[0].mxu0
  %1192 = vdwg.mxu0
  %1193 = vmatprep.subr.bf16.mxu0 %v591
  %1194 = vmatpush1.bf16.msra.mxu0 %v590
  %1195 = vmatprep.subr.bf16.mxu0 %v595
  %1196 = vmatpush1.bf16.msra.mxu0 %v594
  %1197 = vmatprep.subr.bf16.mxu0 %v599
  %1198 = vmatpush1.bf16.msra.mxu0 %v598
  %1199 = vmatprep.subr.bf16.mxu0 %v603
  %1200 = vmatpush1.bf16.msra.mxu0 %v602
  %1201 = vmatprep.subr.bf16.mxu0 %v607
  %1202 = vmatpush1.bf16.msra.mxu0 %v606
  %1203 = vmatprep.subr.bf16.mxu0 %v611
  %1204 = vmatpush1.bf16.msra.mxu0 %v610
  %1205 = vmatprep.subr.bf16.mxu0 %v615
  %1206 = vmatpush1.bf16.msra.mxu0 %v614
  %1207 = vmatprep.subr.bf16.mxu0 %v619
  %1208 = vmatpush1.bf16.msra.mxu0 %v618
  %1209 = vmatprep.subr.bf16.mxu0 0
  %1210 = vmatpush1.bf16.msra.mxu0 0
  %1211 = vmatprep.subr.bf16.mxu0 0
  %1212 = vmatpush1.bf16.msra.mxu0 0
  %1213 = vmatprep.subr.bf16.mxu0 0
  %1214 = vmatpush1.bf16.msra.mxu0 0
  %1215 = vmatprep.subr.bf16.mxu0 0
  %1216 = vmatpush1.bf16.msra.mxu0 0
  %1217 = vmatprep.subr.bf16.mxu0 0
  %1218 = vmatpush1.bf16.msra.mxu0 0
  %1219 = vmatprep.subr.bf16.mxu0 0
  %1220 = vmatpush1.bf16.msra.mxu0 0
  %1221 = vmatprep.subr.bf16.mxu0 0
  %1222 = vmatpush1.bf16.msra.mxu0 0
  %1223 = vmatprep.subr.bf16.mxu0 0
  %1224 = vmatpush1.bf16.msra.mxu0 0
  %1225 = vmatprep.mubr.bf16.mxu0 0
  %1226 = vmatmul.mubr.bf16.gmra.mrb[0].mxu0 %v1151
  %v1227 = vpop.f32.mrb[0].mxu0
  %v1228 = vadd.f32 0.0, %v1227
  %v1229 = vpop.f32.mrb[0].mxu0
  %v1230 = vadd.f32 0.0, %v1229
  %v1231 = vpop.f32.mrb[0].mxu0
  %v1232 = vpop.f32.mrb[0].mxu0
  %1233 = vdwg.mxu0
  %v1234 = vadd.f32 %v1147, %v1187
  %v1235 = vadd.f32 %v1148, %v1189
  %v1236 = vadd.f32 %v1149, %v1228
  %v1237 = vadd.f32 %v1150, %v1230
  %v1238 = vxor.u32 %v1234, 2147483648
  %v1239 = vxor.u32 %v1235, 2147483648
  %v1240 = vxor.u32 %v1236, 2147483648
  %v1241 = vmul.f32 %v1238, 1.442695
  %v1242 = vpow.pop %v1241
  %v1243 = vmul.f32 %v1239, 1.442695
  %v1244 = vpow.pop %v1243
  %v1245 = vmul.f32 %v1240, 1.442695
  %v1246 = vpow.pop %v1245
  %v1247 = vadd.f32 %v1242, 1.0
  %v1248 = vadd.f32 %v1244, 1.0
  %v1249 = vadd.f32 %v1246, 1.0
  %v1250 = vrcp.pop %v1247
  %v1251 = vmul.f32 1.0, %v1250
  %v1252 = vrcp.pop %v1248
  %v1253 = vmul.f32 1.0, %v1252
  %v1254 = vrcp.pop %v1249
  %v1255 = vmul.f32 1.0, %v1254
  %v1256 = vtanh.pop %v1237
  %v1257 = vmul.f32 %v1253, %v1143
  %v1258 = vmul.f32 %v1251, %v1256
  %v1259 = vadd.f32 %v1257, %v1258
  %v1260 = vtanh.pop %v1259
  %v1261 = vmul.f32 %v1255, %v1260
  %s1262 = sadd.s32 %s762, 4
  %p1263 = scmp.lt.s32.totalorder %s1262, 8
  %s1264 = scalar_select %p1263, 1, 0
  %v1265 = vstv %s1264
  %vm1266 = vcmp.eq.s32.totalorder %v1265, 1
  %v1267 = vsel %vm1266, %v1261, %v1142
  %v1268 = vsel %vm1266, %v1259, %v1143
  %s1269 = smul.u32 5, 4
  %s1270 = smul.addr %s1269, 8
  %s1271 = scalar_lea.vmem [#allocation4], %s1270
  %v1272 = vld [vmem:[%s1271] sm:$0xff]
  %v1273 = vld [vmem:[%s1271 + $0x8] sm:$0xff]
  %v1274 = vld [vmem:[%s1271 + $0x10] sm:$0xff]
  %v1275 = vld [vmem:[%s1271 + $0x18] sm:$0xff]
  %v1276 = vpack.c.bf16 %v1267, %v1267
  %1277 = vmatprep.subr.bf16.mxu0 %v589
  %1278 = vmatpush1.bf16.msra.mxu0 %v588
  %1279 = vmatprep.subr.bf16.mxu0 %v593
  %1280 = vmatpush1.bf16.msra.mxu0 %v592
  %1281 = vmatprep.subr.bf16.mxu0 %v597
  %1282 = vmatpush1.bf16.msra.mxu0 %v596
  %1283 = vmatprep.subr.bf16.mxu0 %v601
  %1284 = vmatpush1.bf16.msra.mxu0 %v600
  %1285 = vmatprep.subr.bf16.mxu0 %v605
  %1286 = vmatpush1.bf16.msra.mxu0 %v604
  %1287 = vmatprep.subr.bf16.mxu0 %v609
  %1288 = vmatpush1.bf16.msra.mxu0 %v608
  %1289 = vmatprep.subr.bf16.mxu0 %v613
  %1290 = vmatpush1.bf16.msra.mxu0 %v612
  %1291 = vmatprep.subr.bf16.mxu0 %v617
  %1292 = vmatpush1.bf16.msra.mxu0 %v616
  %1293 = vmatprep.subr.bf16.mxu0 0
  %1294 = vmatpush1.bf16.msra.mxu0 0
  %1295 = vmatprep.subr.bf16.mxu0 0
  %1296 = vmatpush1.bf16.msra.mxu0 0
  %1297 = vmatprep.subr.bf16.mxu0 0
  %1298 = vmatpush1.bf16.msra.mxu0 0
  %1299 = vmatprep.subr.bf16.mxu0 0
  %1300 = vmatpush1.bf16.msra.mxu0 0
  %1301 = vmatprep.subr.bf16.mxu0 0
  %1302 = vmatpush1.bf16.msra.mxu0 0
  %1303 = vmatprep.subr.bf16.mxu0 0
  %1304 = vmatpush1.bf16.msra.mxu0 0
  %1305 = vmatprep.subr.bf16.mxu0 0
  %1306 = vmatpush1.bf16.msra.mxu0 0
  %1307 = vmatprep.subr.bf16.mxu0 0
  %1308 = vmatpush1.bf16.msra.mxu0 0
  %1309 = vmatprep.mubr.bf16.mxu0 0
  %1310 = vmatmul.mubr.bf16.gmra.mrb[0].mxu0 %v1276
  %v1311 = vpop.f32.mrb[0].mxu0
  %v1312 = vadd.f32 0.0, %v1311
  %v1313 = vpop.f32.mrb[0].mxu0
  %v1314 = vadd.f32 0.0, %v1313
  %v1315 = vpop.f32.mrb[0].mxu0
  %v1316 = vpop.f32.mrb[0].mxu0
  %1317 = vdwg.mxu0
  %1318 = vmatprep.subr.bf16.mxu0 %v591
  %1319 = vmatpush1.bf16.msra.mxu0 %v590
  %1320 = vmatprep.subr.bf16.mxu0 %v595
  %1321 = vmatpush1.bf16.msra.mxu0 %v594
  %1322 = vmatprep.subr.bf16.mxu0 %v599
  %1323 = vmatpush1.bf16.msra.mxu0 %v598
  %1324 = vmatprep.subr.bf16.mxu0 %v603
  %1325 = vmatpush1.bf16.msra.mxu0 %v602
  %1326 = vmatprep.subr.bf16.mxu0 %v607
  %1327 = vmatpush1.bf16.msra.mxu0 %v606
  %1328 = vmatprep.subr.bf16.mxu0 %v611
  %1329 = vmatpush1.bf16.msra.mxu0 %v610
  %1330 = vmatprep.subr.bf16.mxu0 %v615
  %1331 = vmatpush1.bf16.msra.mxu0 %v614
  %1332 = vmatprep.subr.bf16.mxu0 %v619
  %1333 = vmatpush1.bf16.msra.mxu0 %v618
  %1334 = vmatprep.subr.bf16.mxu0 0
  %1335 = vmatpush1.bf16.msra.mxu0 0
  %1336 = vmatprep.subr.bf16.mxu0 0
  %1337 = vmatpush1.bf16.msra.mxu0 0
  %1338 = vmatprep.subr.bf16.mxu0 0
  %1339 = vmatpush1.bf16.msra.mxu0 0
  %1340 = vmatprep.subr.bf16.mxu0 0
  %1341 = vmatpush1.bf16.msra.mxu0 0
  %1342 = vmatprep.subr.bf16.mxu0 0
  %1343 = vmatpush1.bf16.msra.mxu0 0
  %1344 = vmatprep.subr.bf16.mxu0 0
  %1345 = vmatpush1.bf16.msra.mxu0 0
  %1346 = vmatprep.subr.bf16.mxu0 0
  %1347 = vmatpush1.bf16.msra.mxu0 0
  %1348 = vmatprep.subr.bf16.mxu0 0
  %1349 = vmatpush1.bf16.msra.mxu0 0
  %1350 = vmatprep.mubr.bf16.mxu0 0
  %1351 = vmatmul.mubr.bf16.gmra.mrb[0].mxu0 %v1276
  %v1352 = vpop.f32.mrb[0].mxu0
  %v1353 = vadd.f32 0.0, %v1352
  %v1354 = vpop.f32.mrb[0].mxu0
  %v1355 = vadd.f32 0.0, %v1354
  %v1356 = vpop.f32.mrb[0].mxu0
  %v1357 = vpop.f32.mrb[0].mxu0
  %1358 = vdwg.mxu0
  %v1359 = vadd.f32 %v1272, %v1312
  %v1360 = vadd.f32 %v1273, %v1314
  %v1361 = vadd.f32 %v1274, %v1353
  %v1362 = vadd.f32 %v1275, %v1355
  %v1363 = vxor.u32 %v1359, 2147483648
  %v1364 = vxor.u32 %v1360, 2147483648
  %v1365 = vxor.u32 %v1361, 2147483648
  %v1366 = vmul.f32 %v1363, 1.442695
  %v1367 = vpow.pop %v1366
  %v1368 = vmul.f32 %v1364, 1.442695
  %v1369 = vpow.pop %v1368
  %v1370 = vmul.f32 %v1365, 1.442695
  %v1371 = vpow.pop %v1370
  %v1372 = vadd.f32 %v1367, 1.0
  %v1373 = vadd.f32 %v1369, 1.0
  %v1374 = vadd.f32 %v1371, 1.0
  %v1375 = vrcp.pop %v1372
  %v1376 = vmul.f32 1.0, %v1375
  %v1377 = vrcp.pop %v1373
  %v1378 = vmul.f32 1.0, %v1377
  %v1379 = vrcp.pop %v1374
  %v1380 = vmul.f32 1.0, %v1379
  %v1381 = vtanh.pop %v1362
  %v1382 = vmul.f32 %v1378, %v1268
  %v1383 = vmul.f32 %v1376, %v1381
  %v1384 = vadd.f32 %v1382, %v1383
  %v1385 = vtanh.pop %v1384
  %v1386 = vmul.f32 %v1380, %v1385
  %s1387 = sadd.s32 %s762, 5
  %p1388 = scmp.lt.s32.totalorder %s1387, 8
  %s1389 = scalar_select %p1388, 1, 0
  %v1390 = vstv %s1389
  %vm1391 = vcmp.eq.s32.totalorder %v1390, 1
  %v1392 = vsel %vm1391, %v1386, %v1267
  %v1393 = vsel %vm1391, %v1384, %v1268
  %s1394 = smul.u32 6, 4
  %s1395 = smul.addr %s1394, 8
  %s1396 = scalar_lea.vmem [#allocation4], %s1395
  %v1397 = vld [vmem:[%s1396] sm:$0xff]
  %v1398 = vld [vmem:[%s1396 + $0x8] sm:$0xff]
  %v1399 = vld [vmem:[%s1396 + $0x10] sm:$0xff]
  %v1400 = vld [vmem:[%s1396 + $0x18] sm:$0xff]
  %v1401 = vpack.c.bf16 %v1392, %v1392
  %1402 = vmatprep.subr.bf16.mxu0 %v589
  %1403 = vmatpush1.bf16.msra.mxu0 %v588
  %1404 = vmatprep.subr.bf16.mxu0 %v593
  %1405 = vmatpush1.bf16.msra.mxu0 %v592
  %1406 = vmatprep.subr.bf16.mxu0 %v597
  %1407 = vmatpush1.bf16.msra.mxu0 %v596
  %1408 = vmatprep.subr.bf16.mxu0 %v601
  %1409 = vmatpush1.bf16.msra.mxu0 %v600
  %1410 = vmatprep.subr.bf16.mxu0 %v605
  %1411 = vmatpush1.bf16.msra.mxu0 %v604
  %1412 = vmatprep.subr.bf16.mxu0 %v609
  %1413 = vmatpush1.bf16.msra.mxu0 %v608
  %1414 = vmatprep.subr.bf16.mxu0 %v613
  %1415 = vmatpush1.bf16.msra.mxu0 %v612
  %1416 = vmatprep.subr.bf16.mxu0 %v617
  %1417 = vmatpush1.bf16.msra.mxu0 %v616
  %1418 = vmatprep.subr.bf16.mxu0 0
  %1419 = vmatpush1.bf16.msra.mxu0 0
  %1420 = vmatprep.subr.bf16.mxu0 0
  %1421 = vmatpush1.bf16.msra.mxu0 0
  %1422 = vmatprep.subr.bf16.mxu0 0
  %1423 = vmatpush1.bf16.msra.mxu0 0
  %1424 = vmatprep.subr.bf16.mxu0 0
  %1425 = vmatpush1.bf16.msra.mxu0 0
  %1426 = vmatprep.subr.bf16.mxu0 0
  %1427 = vmatpush1.bf16.msra.mxu0 0
  %1428 = vmatprep.subr.bf16.mxu0 0
  %1429 = vmatpush1.bf16.msra.mxu0 0
  %1430 = vmatprep.subr.bf16.mxu0 0
  %1431 = vmatpush1.bf16.msra.mxu0 0
  %1432 = vmatprep.subr.bf16.mxu0 0
  %1433 = vmatpush1.bf16.msra.mxu0 0
  %1434 = vmatprep.mubr.bf16.mxu0 0
  %1435 = vmatmul.mubr.bf16.gmra.mrb[0].mxu0 %v1401
  %v1436 = vpop.f32.mrb[0].mxu0
  %v1437 = vadd.f32 0.0, %v1436
  %v1438 = vpop.f32.mrb[0].mxu0
  %v1439 = vadd.f32 0.0, %v1438
  %v1440 = vpop.f32.mrb[0].mxu0
  %v1441 = vpop.f32.mrb[0].mxu0
  %1442 = vdwg.mxu0
  %1443 = vmatprep.subr.bf16.mxu0 %v591
  %1444 = vmatpush1.bf16.msra.mxu0 %v590
  %1445 = vmatprep.subr.bf16.mxu0 %v595
  %1446 = vmatpush1.bf16.msra.mxu0 %v594
  %1447 = vmatprep.subr.bf16.mxu0 %v599
  %1448 = vmatpush1.bf16.msra.mxu0 %v598
  %1449 = vmatprep.subr.bf16.mxu0 %v603
  %1450 = vmatpush1.bf16.msra.mxu0 %v602
  %1451 = vmatprep.subr.bf16.mxu0 %v607
  %1452 = vmatpush1.bf16.msra.mxu0 %v606
  %1453 = vmatprep.subr.bf16.mxu0 %v611
  %1454 = vmatpush1.bf16.msra.mxu0 %v610
  %1455 = vmatprep.subr.bf16.mxu0 %v615
  %1456 = vmatpush1.bf16.msra.mxu0 %v614
  %1457 = vmatprep.subr.bf16.mxu0 %v619
  %1458 = vmatpush1.bf16.msra.mxu0 %v618
  %1459 = vmatprep.subr.bf16.mxu0 0
  %1460 = vmatpush1.bf16.msra.mxu0 0
  %1461 = vmatprep.subr.bf16.mxu0 0
  %1462 = vmatpush1.bf16.msra.mxu0 0
  %1463 = vmatprep.subr.bf16.mxu0 0
  %1464 = vmatpush1.bf16.msra.mxu0 0
  %1465 = vmatprep.subr.bf16.mxu0 0
  %1466 = vmatpush1.bf16.msra.mxu0 0
  %1467 = vmatprep.subr.bf16.mxu0 0
  %1468 = vmatpush1.bf16.msra.mxu0 0
  %1469 = vmatprep.subr.bf16.mxu0 0
  %1470 = vmatpush1.bf16.msra.mxu0 0
  %1471 = vmatprep.subr.bf16.mxu0 0
  %1472 = vmatpush1.bf16.msra.mxu0 0
  %1473 = vmatprep.subr.bf16.mxu0 0
  %1474 = vmatpush1.bf16.msra.mxu0 0
  %1475 = vmatprep.mubr.bf16.mxu0 0
  %1476 = vmatmul.mubr.bf16.gmra.mrb[0].mxu0 %v1401
  %v1477 = vpop.f32.mrb[0].mxu0
  %v1478 = vadd.f32 0.0, %v1477
  %v1479 = vpop.f32.mrb[0].mxu0
  %v1480 = vadd.f32 0.0, %v1479
  %v1481 = vpop.f32.mrb[0].mxu0
  %v1482 = vpop.f32.mrb[0].mxu0
  %1483 = vdwg.mxu0
  %v1484 = vadd.f32 %v1397, %v1437
  %v1485 = vadd.f32 %v1398, %v1439
  %v1486 = vadd.f32 %v1399, %v1478
  %v1487 = vadd.f32 %v1400, %v1480
  %v1488 = vxor.u32 %v1484, 2147483648
  %v1489 = vxor.u32 %v1485, 2147483648
  %v1490 = vxor.u32 %v1486, 2147483648
  %v1491 = vmul.f32 %v1488, 1.442695
  %v1492 = vpow.pop %v1491
  %v1493 = vmul.f32 %v1489, 1.442695
  %v1494 = vpow.pop %v1493
  %v1495 = vmul.f32 %v1490, 1.442695
  %v1496 = vpow.pop %v1495
  %v1497 = vadd.f32 %v1492, 1.0
  %v1498 = vadd.f32 %v1494, 1.0
  %v1499 = vadd.f32 %v1496, 1.0
  %v1500 = vrcp.pop %v1497
  %v1501 = vmul.f32 1.0, %v1500
  %v1502 = vrcp.pop %v1498
  %v1503 = vmul.f32 1.0, %v1502
  %v1504 = vrcp.pop %v1499
  %v1505 = vmul.f32 1.0, %v1504
  %v1506 = vtanh.pop %v1487
  %v1507 = vmul.f32 %v1503, %v1393
  %v1508 = vmul.f32 %v1501, %v1506
  %v1509 = vadd.f32 %v1507, %v1508
  %v1510 = vtanh.pop %v1509
  %v1511 = vmul.f32 %v1505, %v1510
  %s1512 = sadd.s32 %s762, 6
  %p1513 = scmp.lt.s32.totalorder %s1512, 8
  %s1514 = scalar_select %p1513, 1, 0
  %v1515 = vstv %s1514
  %vm1516 = vcmp.eq.s32.totalorder %v1515, 1
  %v1517 = vsel %vm1516, %v1511, %v1392
  %v1518 = vsel %vm1516, %v1509, %v1393
  %s1519 = smul.u32 7, 4
  %s1520 = smul.addr %s1519, 8
  %s1521 = scalar_lea.vmem [#allocation4], %s1520
  %v1522 = vld [vmem:[%s1521] sm:$0xff]
  %v1523 = vld [vmem:[%s1521 + $0x8] sm:$0xff]
  %v1524 = vld [vmem:[%s1521 + $0x10] sm:$0xff]
  %v1525 = vld [vmem:[%s1521 + $0x18] sm:$0xff]
  %v1526 = vpack.c.bf16 %v1517, %v1517
  %1527 = vmatprep.subr.bf16.mxu0 %v589
  %1528 = vmatpush1.bf16.msra.mxu0 %v588
  %1529 = vmatprep.subr.bf16.mxu0 %v593
  %1530 = vmatpush1.bf16.msra.mxu0 %v592
  %1531 = vmatprep.subr.bf16.mxu0 %v597
  %1532 = vmatpush1.bf16.msra.mxu0 %v596
  %1533 = vmatprep.subr.bf16.mxu0 %v601
  %1534 = vmatpush1.bf16.msra.mxu0 %v600
  %1535 = vmatprep.subr.bf16.mxu0 %v605
  %1536 = vmatpush1.bf16.msra.mxu0 %v604
  %1537 = vmatprep.subr.bf16.mxu0 %v609
  %1538 = vmatpush1.bf16.msra.mxu0 %v608
  %1539 = vmatprep.subr.bf16.mxu0 %v613
  %1540 = vmatpush1.bf16.msra.mxu0 %v612
  %1541 = vmatprep.subr.bf16.mxu0 %v617
  %1542 = vmatpush1.bf16.msra.mxu0 %v616
  %1543 = vmatprep.subr.bf16.mxu0 0
  %1544 = vmatpush1.bf16.msra.mxu0 0
  %1545 = vmatprep.subr.bf16.mxu0 0
  %1546 = vmatpush1.bf16.msra.mxu0 0
  %1547 = vmatprep.subr.bf16.mxu0 0
  %1548 = vmatpush1.bf16.msra.mxu0 0
  %1549 = vmatprep.subr.bf16.mxu0 0
  %1550 = vmatpush1.bf16.msra.mxu0 0
  %1551 = vmatprep.subr.bf16.mxu0 0
  %1552 = vmatpush1.bf16.msra.mxu0 0
  %1553 = vmatprep.subr.bf16.mxu0 0
  %1554 = vmatpush1.bf16.msra.mxu0 0
  %1555 = vmatprep.subr.bf16.mxu0 0
  %1556 = vmatpush1.bf16.msra.mxu0 0
  %1557 = vmatprep.subr.bf16.mxu0 0
  %1558 = vmatpush1.bf16.msra.mxu0 0
  %1559 = vmatprep.mubr.bf16.mxu0 0
  %1560 = vmatmul.mubr.bf16.gmra.mrb[0].mxu0 %v1526
  %v1561 = vpop.f32.mrb[0].mxu0
  %v1562 = vadd.f32 0.0, %v1561
  %v1563 = vpop.f32.mrb[0].mxu0
  %v1564 = vadd.f32 0.0, %v1563
  %v1565 = vpop.f32.mrb[0].mxu0
  %v1566 = vpop.f32.mrb[0].mxu0
  %1567 = vdwg.mxu0
  %1568 = vmatprep.subr.bf16.mxu0 %v591
  %1569 = vmatpush1.bf16.msra.mxu0 %v590
  %1570 = vmatprep.subr.bf16.mxu0 %v595
  %1571 = vmatpush1.bf16.msra.mxu0 %v594
  %1572 = vmatprep.subr.bf16.mxu0 %v599
  %1573 = vmatpush1.bf16.msra.mxu0 %v598
  %1574 = vmatprep.subr.bf16.mxu0 %v603
  %1575 = vmatpush1.bf16.msra.mxu0 %v602
  %1576 = vmatprep.subr.bf16.mxu0 %v607
  %1577 = vmatpush1.bf16.msra.mxu0 %v606
  %1578 = vmatprep.subr.bf16.mxu0 %v611
  %1579 = vmatpush1.bf16.msra.mxu0 %v610
  %1580 = vmatprep.subr.bf16.mxu0 %v615
  %1581 = vmatpush1.bf16.msra.mxu0 %v614
  %1582 = vmatprep.subr.bf16.mxu0 %v619
  %1583 = vmatpush1.bf16.msra.mxu0 %v618
  %1584 = vmatprep.subr.bf16.mxu0 0
  %1585 = vmatpush1.bf16.msra.mxu0 0
  %1586 = vmatprep.subr.bf16.mxu0 0
  %1587 = vmatpush1.bf16.msra.mxu0 0
  %1588 = vmatprep.subr.bf16.mxu0 0
  %1589 = vmatpush1.bf16.msra.mxu0 0
  %1590 = vmatprep.subr.bf16.mxu0 0
  %1591 = vmatpush1.bf16.msra.mxu0 0
  %1592 = vmatprep.subr.bf16.mxu0 0
  %1593 = vmatpush1.bf16.msra.mxu0 0
  %1594 = vmatprep.subr.bf16.mxu0 0
  %1595 = vmatpush1.bf16.msra.mxu0 0
  %1596 = vmatprep.subr.bf16.mxu0 0
  %1597 = vmatpush1.bf16.msra.mxu0 0
  %1598 = vmatprep.subr.bf16.mxu0 0
  %1599 = vmatpush1.bf16.msra.mxu0 0
  %1600 = vmatprep.mubr.bf16.mxu0 0
  %1601 = vmatmul.mubr.bf16.gmra.mrb[0].mxu0 %v1526
  %v1602 = vpop.f32.mrb[0].mxu0
  %v1603 = vadd.f32 0.0, %v1602
  %v1604 = vpop.f32.mrb[0].mxu0
  %v1605 = vadd.f32 0.0, %v1604
  %v1606 = vpop.f32.mrb[0].mxu0
  %v1607 = vpop.f32.mrb[0].mxu0
  %1608 = vdwg.mxu0
  %v1609 = vadd.f32 %v1522, %v1562
  %v1610 = vadd.f32 %v1523, %v1564
  %v1611 = vadd.f32 %v1524, %v1603
  %v1612 = vadd.f32 %v1525, %v1605
  %v1613 = vxor.u32 %v1609, 2147483648
  %v1614 = vxor.u32 %v1610, 2147483648
  %v1615 = vxor.u32 %v1611, 2147483648
  %v1616 = vmul.f32 %v1613, 1.442695
  %v1617 = vpow.pop %v1616
  %v1618 = vmul.f32 %v1614, 1.442695
  %v1619 = vpow.pop %v1618
  %v1620 = vmul.f32 %v1615, 1.442695
  %v1621 = vpow.pop %v1620
  %v1622 = vadd.f32 %v1617, 1.0
  %v1623 = vadd.f32 %v1619, 1.0
  %v1624 = vadd.f32 %v1621, 1.0
  %v1625 = vrcp.pop %v1622
  %v1626 = vmul.f32 1.0, %v1625
  %v1627 = vrcp.pop %v1623
  %v1628 = vmul.f32 1.0, %v1627
  %v1629 = vrcp.pop %v1624
  %v1630 = vmul.f32 1.0, %v1629
  %v1631 = vtanh.pop %v1612
  %v1632 = vmul.f32 %v1628, %v1518
  %v1633 = vmul.f32 %v1626, %v1631
  %v1634 = vadd.f32 %v1632, %v1633
  %v1635 = vtanh.pop %v1634
  %v1636 = vmul.f32 %v1630, %v1635
  %s1637 = sadd.s32 %s762, 7
  %p1638 = scmp.lt.s32.totalorder %s1637, 8
  %s1639 = scalar_select %p1638, 1, 0
  %v1640 = vstv %s1639
  %vm1641 = vcmp.eq.s32.totalorder %v1640, 1
  %v1642 = vsel %vm1641, %v1636, %v1517
  %v1643 = vsel %vm1641, %v1634, %v1518
  %1644 = vst [vmem:[#allocation2] sm:$0xff] %v1642
  %1645 = vst [vmem:[#allocation3] sm:$0xff] %v1643
  // Predicated region
  $region22: #{seq2seq_forward.2} parent=0 // pred_check
    %p1646 = pneg %p20
  $region23: #{seq2seq_forward.2} parent=0 // pred_check_branch
    %1648 = sbr.rel (%p1646) target = $region25
  $region24: #{seq2seq_forward.2} parent=0 // pred_region
    %1649 = vst [vmem:[%s4] sm:$0xff] %v1642
    %1650 = vst [vmem:[%s5] sm:$0xff] %v1643
  $region25: #{seq2seq_forward.2} parent=0 // pred_fallthru
    _
  // Predicated region
  $region26: #{seq2seq_forward.2} parent=0 // pred_check
    _
  $region27: #{seq2seq_forward.2} parent=0 // pred_check_branch
    %1652 = sbr.rel (0) target = $region29
  $region28: #{seq2seq_forward.2} parent=0 // pred_region
    _
  $region29: #{seq2seq_forward.2} parent=0 // pred_fallthru
    _
  // Predicated region
  $region30: #{seq2seq_forward.2} parent=0 // pred_check
    _
  $region31: #{seq2seq_forward.2} parent=0 // pred_check_branch
    %1654 = sbr.rel (0) target = $region33
  $region32: #{seq2seq_forward.2} parent=0 // pred_region
    _
  $region33: #{seq2seq_forward.2} parent=0 // pred_fallthru
    _
  // Predicated region
  $region34: #{seq2seq_forward.2} parent=0 // pred_check
    _
  $region35: #{seq2seq_forward.2} parent=0 // pred_check_branch
    %1656 = sbr.rel (0) target = $region37
  $region36: #{seq2seq_forward.2} parent=0 // pred_region
    _
  $region37: #{seq2seq_forward.2} parent=0 // pred_fallthru
    _
  // Predicated region
  $region38: #{seq2seq_forward.2} parent=0 // pred_check
    _
  $region39: #{seq2seq_forward.2} parent=0 // pred_check_branch
    %1658 = sbr.rel (0) target = $region41
  $region40: #{seq2seq_forward.2} parent=0 // pred_region
    _
  $region41: #{seq2seq_forward.2} parent=0 // pred_fallthru
    _

// kernel: seq2seq_forward.3
$region0: #{seq2seq_forward.3}
  #allocation0 [shape = 'u32[]', space=smem, size = 0x4, offset = 0x4, fixed_abs, tag = 'smem constant byte address 0x4 - core index']
  #allocation1 [shape = 'u32[144,128]{1,0:T(1,128)}', space=vmem, size = 0x12000, scoped, tag = 'internal scratch']
  #allocation2 [shape = 'f32[8,128]{1,0:T(8,128)}', space=vmem, size = 0x1000, scoped, tag = 'scratch operand']
  #allocation3 [shape = 'f32[8,128]{1,0:T(8,128)}', space=vmem, size = 0x1000, scoped, tag = 'scratch operand']
  #allocation4 [shape = 'f32[64,512]{1,0:T(8,128)}', space=vmem, size = 0x20000, scoped, tag = 'scratch operand']
  #allocation5 [shape = 'f32[64,128]{1,0:T(8,128)}', space=vmem, size = 0x8000, scoped, tag = 'scratch operand']
  %s0 = inlined_call_operand.vmem [shape: bf16[64,128], index: 0, kind: input, shape index: {}]
  %s1 = inlined_call_operand.vmem [shape: f32[8,128], index: 1, kind: input, shape index: {}]
  %s2 = inlined_call_operand.vmem [shape: f32[8,128], index: 2, kind: input, shape index: {}]
  %s3 = inlined_call_operand.vmem [shape: bf16[128,512], index: 3, kind: input, shape index: {}]
  %s4 = inlined_call_operand.vmem [shape: bf16[128,512], index: 4, kind: input, shape index: {}]
  %s5 = inlined_call_operand.vmem [shape: f32[1,512], index: 5, kind: input, shape index: {}]
  %s6 = inlined_call_operand.vmem [shape: bf16[128,128], index: 6, kind: input, shape index: {}]
  %s7 = inlined_call_operand.vmem [shape: f32[1,128], index: 7, kind: input, shape index: {}]
  %s8 = inlined_call_operand.vmem [shape: f32[64,128], index: 8, kind: output, shape index: {}]
  %s9 = sld [smem:[#allocation0]]
  $region46: #{seq2seq_forward.3} parent=0
    _
  %s11 = ssub.s32 1, %s9
  %s12 = scalar_select 0, %s11, %s9
  // Predicated region
  $region2: #{seq2seq_forward.3} parent=0 // pred_check
    _
  $region3: #{seq2seq_forward.3} parent=0 // pred_check_branch
    %14 = sbr.rel (0) target = $region5
  $region4: #{seq2seq_forward.3} parent=0 // pred_region
    _
  $region5: #{seq2seq_forward.3} parent=0 // pred_fallthru
    _
  // Predicated region
  $region6: #{seq2seq_forward.3} parent=0 // pred_check
    _
  $region7: #{seq2seq_forward.3} parent=0 // pred_check_branch
    %16 = sbr.rel (0) target = $region9
  $region8: #{seq2seq_forward.3} parent=0 // pred_region
    _
  $region9: #{seq2seq_forward.3} parent=0 // pred_fallthru
    _
  // Predicated region
  $region10: #{seq2seq_forward.3} parent=0 // pred_check
    _
  $region11: #{seq2seq_forward.3} parent=0 // pred_check_branch
    %18 = sbr.rel (0) target = $region13
  $region12: #{seq2seq_forward.3} parent=0 // pred_region
    _
  $region13: #{seq2seq_forward.3} parent=0 // pred_fallthru
    _
  // Predicated region
  $region14: #{seq2seq_forward.3} parent=0 // pred_check
    _
  $region15: #{seq2seq_forward.3} parent=0 // pred_check_branch
    %20 = sbr.rel (0) target = $region17
  $region16: #{seq2seq_forward.3} parent=0 // pred_region
    _
  $region17: #{seq2seq_forward.3} parent=0 // pred_fallthru
    _
  // Predicated region
  $region18: #{seq2seq_forward.3} parent=0 // pred_check
    _
  $region19: #{seq2seq_forward.3} parent=0 // pred_check_branch
    %22 = sbr.rel (0) target = $region21
  $region20: #{seq2seq_forward.3} parent=0 // pred_region
    _
  $region21: #{seq2seq_forward.3} parent=0 // pred_fallthru
    _
  // Predicated region
  $region22: #{seq2seq_forward.3} parent=0 // pred_check
    _
  $region23: #{seq2seq_forward.3} parent=0 // pred_check_branch
    %24 = sbr.rel (0) target = $region25
  $region24: #{seq2seq_forward.3} parent=0 // pred_region
    _
  $region25: #{seq2seq_forward.3} parent=0 // pred_fallthru
    _
  // Predicated region
  $region26: #{seq2seq_forward.3} parent=0 // pred_check
    _
  $region27: #{seq2seq_forward.3} parent=0 // pred_check_branch
    %26 = sbr.rel (0) target = $region29
  $region28: #{seq2seq_forward.3} parent=0 // pred_region
    _
  $region29: #{seq2seq_forward.3} parent=0 // pred_fallthru
    _
  // Predicated region
  $region30: #{seq2seq_forward.3} parent=0 // pred_check
    _
  $region31: #{seq2seq_forward.3} parent=0 // pred_check_branch
    %28 = sbr.rel (0) target = $region33
  $region32: #{seq2seq_forward.3} parent=0 // pred_region
    _
  $region33: #{seq2seq_forward.3} parent=0 // pred_fallthru
    _
  %p30 = scmp.eq.s32.totalorder 0, 0
  // Predicated region
  $region34: #{seq2seq_forward.3} parent=0 // pred_check
    %p31 = pneg %p30
  $region35: #{seq2seq_forward.3} parent=0 // pred_check_branch
    %33 = sbr.rel (%p31) target = $region37
  $region36: #{seq2seq_forward.3} parent=0 // pred_region
    %v34 = vld [vmem:[%s1] sm:$0xff]
    %35 = vst [vmem:[#allocation2] sm:$0xff] %v34
    %v36 = vld [vmem:[%s2] sm:$0xff]
    %37 = vst [vmem:[#allocation3] sm:$0xff] %v36
  $region37: #{seq2seq_forward.3} parent=0 // pred_fallthru
    _
  %v38 = vld [vmem:[%s0] sm:$0xf]
  %v39 = vld [vmem:[%s0 + $0x4] sm:$0xf]
  %v40 = vld [vmem:[%s0 + $0x8] sm:$0xf]
  %v41 = vld [vmem:[%s0 + $0xc] sm:$0xf]
  %v42 = vld [vmem:[%s0 + $0x10] sm:$0xf]
  %v43 = vld [vmem:[%s0 + $0x14] sm:$0xf]
  %v44 = vld [vmem:[%s0 + $0x18] sm:$0xf]
  %v45 = vld [vmem:[%s0 + $0x1c] sm:$0xf]
  %v46 = vld [vmem:[%s3] sm:$0xff]
  %v47 = vld [vmem:[%s3 + $0x8] sm:$0xff]
  %v48 = vld [vmem:[%s3 + $0x10] sm:$0xff]
  %v49 = vld [vmem:[%s3 + $0x18] sm:$0xff]
  %v50 = vld [vmem:[%s3 + $0x20] sm:$0xff]
  %v51 = vld [vmem:[%s3 + $0x28] sm:$0xff]
  %v52 = vld [vmem:[%s3 + $0x30] sm:$0xff]
  %v53 = vld [vmem:[%s3 + $0x38] sm:$0xff]
  %v54 = vld [vmem:[%s3 + $0x40] sm:$0xff]
  %v55 = vld [vmem:[%s3 + $0x48] sm:$0xff]
  %v56 = vld [vmem:[%s3 + $0x50] sm:$0xff]
  %v57 = vld [vmem:[%s3 + $0x58] sm:$0xff]
  %v58 = vld [vmem:[%s3 + $0x60] sm:$0xff]
  %v59 = vld [vmem:[%s3 + $0x68] sm:$0xff]
  %v60 = vld [vmem:[%s3 + $0x70] sm:$0xff]
  %v61 = vld [vmem:[%s3 + $0x78] sm:$0xff]
  %v62 = vld [vmem:[%s3 + $0x80] sm:$0xff]
  %v63 = vld [vmem:[%s3 + $0x88] sm:$0xff]
  %v64 = vld [vmem:[%s3 + $0x90] sm:$0xff]
  %v65 = vld [vmem:[%s3 + $0x98] sm:$0xff]
  %v66 = vld [vmem:[%s3 + $0xa0] sm:$0xff]
  %v67 = vld [vmem:[%s3 + $0xa8] sm:$0xff]
  %v68 = vld [vmem:[%s3 + $0xb0] sm:$0xff]
  %v69 = vld [vmem:[%s3 + $0xb8] sm:$0xff]
  %v70 = vld [vmem:[%s3 + $0xc0] sm:$0xff]
  %v71 = vld [vmem:[%s3 + $0xc8] sm:$0xff]
  %v72 = vld [vmem:[%s3 + $0xd0] sm:$0xff]
  %v73 = vld [vmem:[%s3 + $0xd8] sm:$0xff]
  %v74 = vld [vmem:[%s3 + $0xe0] sm:$0xff]
  %v75 = vld [vmem:[%s3 + $0xe8] sm:$0xff]
  %v76 = vld [vmem:[%s3 + $0xf0] sm:$0xff]
  %v77 = vld [vmem:[%s3 + $0xf8] sm:$0xff]
  %v78 = vld [vmem:[%s5] sm:$0xf]
  %v80 = vlaneseq
  %v81 = vshrl.u32 %v80, 7
  %v82 = vsub.s32 0, %v81
  %v83 = vrot.slane %v78, %v82
  %v84 = vlaneseq
  %v85 = vshrl.u32 %v84, 7
  %v86 = vsub.s32 1, %v85
  %v87 = vrot.slane %v78, %v86
  %v88 = vlaneseq
  %v89 = vshrl.u32 %v88, 7
  %v90 = vsub.s32 2, %v89
  %v91 = vrot.slane %v78, %v90
  %v92 = vlaneseq
  %v93 = vshrl.u32 %v92, 7
  %v94 = vsub.s32 3, %v93
  %v95 = vrot.slane %v78, %v94
  %v108 = vunpack.c.l.b16 %v38
  %v109 = vunpack.c.l.b16 %v39
  %v110 = vunpack.c.l.b16 %v40
  %v111 = vunpack.c.l.b16 %v41
  %v112 = vunpack.c.l.b16 %v42
  %v113 = vunpack.c.l.b16 %v43
  %v114 = vunpack.c.l.b16 %v44
  %v115 = vunpack.c.l.b16 %v45
  %v116 = vpack.c.b16 %v109, %v108
  %v117 = vpack.c.b16 %v111, %v110
  %v118 = vpack.c.b16 %v113, %v112
  %v119 = vpack.c.b16 %v115, %v114
  %v156 = vunpack.c.l.b16 %v46
  %v157 = vunpack.c.h.b16 %v46
  %v158 = vunpack.c.l.b16 %v47
  %v159 = vunpack.c.h.b16 %v47
  %v160 = vunpack.c.l.b16 %v48
  %v161 = vunpack.c.h.b16 %v48
  %v162 = vunpack.c.l.b16 %v49
  %v163 = vunpack.c.h.b16 %v49
  %v164 = vunpack.c.l.b16 %v50
  %v165 = vunpack.c.h.b16 %v50
  %v166 = vunpack.c.l.b16 %v51
  %v167 = vunpack.c.h.b16 %v51
  %v168 = vunpack.c.l.b16 %v52
  %v169 = vunpack.c.h.b16 %v52
  %v170 = vunpack.c.l.b16 %v53
  %v171 = vunpack.c.h.b16 %v53
  %v172 = vunpack.c.l.b16 %v54
  %v173 = vunpack.c.h.b16 %v54
  %v174 = vunpack.c.l.b16 %v55
  %v175 = vunpack.c.h.b16 %v55
  %v176 = vunpack.c.l.b16 %v56
  %v177 = vunpack.c.h.b16 %v56
  %v178 = vunpack.c.l.b16 %v57
  %v179 = vunpack.c.h.b16 %v57
  %v180 = vunpack.c.l.b16 %v58
  %v181 = vunpack.c.h.b16 %v58
  %v182 = vunpack.c.l.b16 %v59
  %v183 = vunpack.c.h.b16 %v59
  %v184 = vunpack.c.l.b16 %v60
  %v185 = vunpack.c.h.b16 %v60
  %v186 = vunpack.c.l.b16 %v61
  %v187 = vunpack.c.h.b16 %v61
  %v188 = vunpack.c.l.b16 %v62
  %v189 = vunpack.c.h.b16 %v62
  %v190 = vunpack.c.l.b16 %v63
  %v191 = vunpack.c.h.b16 %v63
  %v192 = vunpack.c.l.b16 %v64
  %v193 = vunpack.c.h.b16 %v64
  %v194 = vunpack.c.l.b16 %v65
  %v195 = vunpack.c.h.b16 %v65
  %v196 = vunpack.c.l.b16 %v66
  %v197 = vunpack.c.h.b16 %v66
  %v198 = vunpack.c.l.b16 %v67
  %v199 = vunpack.c.h.b16 %v67
  %v200 = vunpack.c.l.b16 %v68
  %v201 = vunpack.c.h.b16 %v68
  %v202 = vunpack.c.l.b16 %v69
  %v203 = vunpack.c.h.b16 %v69
  %v204 = vunpack.c.l.b16 %v70
  %v205 = vunpack.c.h.b16 %v70
  %v206 = vunpack.c.l.b16 %v71
  %v207 = vunpack.c.h.b16 %v71
  %v208 = vunpack.c.l.b16 %v72
  %v209 = vunpack.c.h.b16 %v72
  %v210 = vunpack.c.l.b16 %v73
  %v211 = vunpack.c.h.b16 %v73
  %v212 = vunpack.c.l.b16 %v74
  %v213 = vunpack.c.h.b16 %v74
  %v214 = vunpack.c.l.b16 %v75
  %v215 = vunpack.c.h.b16 %v75
  %v216 = vunpack.c.l.b16 %v76
  %v217 = vunpack.c.h.b16 %v76
  %v218 = vunpack.c.l.b16 %v77
  %v219 = vunpack.c.h.b16 %v77
  %v220 = vpack.c.b16 %v160, %v156
  %v221 = vpack.c.b16 %v161, %v157
  %v222 = vpack.c.b16 %v162, %v158
  %v223 = vpack.c.b16 %v163, %v159
  %v224 = vpack.c.b16 %v168, %v164
  %v225 = vpack.c.b16 %v169, %v165
  %v226 = vpack.c.b16 %v170, %v166
  %v227 = vpack.c.b16 %v171, %v167
  %v228 = vpack.c.b16 %v176, %v172
  %v229 = vpack.c.b16 %v177, %v173
  %v230 = vpack.c.b16 %v178, %v174
  %v231 = vpack.c.b16 %v179, %v175
  %v232 = vpack.c.b16 %v184, %v180
  %v233 = vpack.c.b16 %v185, %v181
  %v234 = vpack.c.b16 %v186, %v182
  %v235 = vpack.c.b16 %v187, %v183
  %v236 = vpack.c.b16 %v192, %v188
  %v237 = vpack.c.b16 %v193, %v189
  %v238 = vpack.c.b16 %v194, %v190
  %v239 = vpack.c.b16 %v195, %v191
  %v240 = vpack.c.b16 %v200, %v196
  %v241 = vpack.c.b16 %v201, %v197
  %v242 = vpack.c.b16 %v202, %v198
  %v243 = vpack.c.b16 %v203, %v199
  %v244 = vpack.c.b16 %v208, %v204
  %v245 = vpack.c.b16 %v209, %v205
  %v246 = vpack.c.b16 %v210, %v206
  %v247 = vpack.c.b16 %v211, %v207
  %v248 = vpack.c.b16 %v216, %v212
  %v249 = vpack.c.b16 %v217, %v213
  %v250 = vpack.c.b16 %v218, %v214
  %v251 = vpack.c.b16 %v219, %v215
  %284 = vmatprep.subr.bf16.mxu0 %v221
  %285 = vmatpush1.bf16.msra.mxu0 %v220
  %286 = vmatprep.subr.bf16.mxu0 %v225
  %287 = vmatpush1.bf16.msra.mxu0 %v224
  %288 = vmatprep.subr.bf16.mxu0 %v229
  %289 = vmatpush1.bf16.msra.mxu0 %v228
  %290 = vmatprep.subr.bf16.mxu0 %v233
  %291 = vmatpush1.bf16.msra.mxu0 %v232
  %292 = vmatprep.subr.bf16.mxu0 %v237
  %293 = vmatpush1.bf16.msra.mxu0 %v236
  %294 = vmatprep.subr.bf16.mxu0 %v241
  %295 = vmatpush1.bf16.msra.mxu0 %v240
  %296 = vmatprep.subr.bf16.mxu0 %v245
  %297 = vmatpush1.bf16.msra.mxu0 %v244
  %298 = vmatprep.subr.bf16.mxu0 %v249
  %299 = vmatpush1.bf16.msra.mxu0 %v248
  %300 = vmatprep.subr.bf16.mxu0 0
  %301 = vmatpush1.bf16.msra.mxu0 0
  %302 = vmatprep.subr.bf16.mxu0 0
  %303 = vmatpush1.bf16.msra.mxu0 0
  %304 = vmatprep.subr.bf16.mxu0 0
  %305 = vmatpush1.bf16.msra.mxu0 0
  %306 = vmatprep.subr.bf16.mxu0 0
  %307 = vmatpush1.bf16.msra.mxu0 0
  %308 = vmatprep.subr.bf16.mxu0 0
  %309 = vmatpush1.bf16.msra.mxu0 0
  %310 = vmatprep.subr.bf16.mxu0 0
  %311 = vmatpush1.bf16.msra.mxu0 0
  %312 = vmatprep.subr.bf16.mxu0 0
  %313 = vmatpush1.bf16.msra.mxu0 0
  %314 = vmatprep.subr.bf16.mxu0 0
  %315 = vmatpush1.bf16.msra.mxu0 0
  %316 = vmatprep.mubr.bf16.mxu0 0
  %317 = vmatmul.mubr.bf16.gmra.mrb[0].mxu0 %v116
  %v318 = vpop.f32.mrb[0].mxu0
  %v319 = vadd.f32 %v83, %v318
  %v320 = vpop.f32.mrb[0].mxu0
  %v321 = vadd.f32 %v87, %v320
  %v322 = vpop.f32.mrb[0].mxu0
  %v323 = vadd.f32 %v83, %v322
  %v324 = vpop.f32.mrb[0].mxu0
  %v325 = vadd.f32 %v87, %v324
  %326 = vmatprep.mubr.bf16.mxu0 0
  %327 = vmatmul.mubr.bf16.gmra.mrb[0].mxu0 %v117
  %v328 = vpop.f32.mrb[0].mxu0
  %v329 = vadd.f32 %v83, %v328
  %v330 = vpop.f32.mrb[0].mxu0
  %v331 = vadd.f32 %v87, %v330
  %v332 = vpop.f32.mrb[0].mxu0
  %v333 = vadd.f32 %v83, %v332
  %v334 = vpop.f32.mrb[0].mxu0
  %v335 = vadd.f32 %v87, %v334
  %336 = vmatprep.mubr.bf16.mxu0 0
  %337 = vmatmul.mubr.bf16.gmra.mrb[0].mxu0 %v118
  %v338 = vpop.f32.mrb[0].mxu0
  %v339 = vadd.f32 %v83, %v338
  %v340 = vpop.f32.mrb[0].mxu0
  %v341 = vadd.f32 %v87, %v340
  %v342 = vpop.f32.mrb[0].mxu0
  %v343 = vadd.f32 %v83, %v342
  %v344 = vpop.f32.mrb[0].mxu0
  %v345 = vadd.f32 %v87, %v344
  %346 = vmatprep.mubr.bf16.mxu0 0
  %347 = vmatmul.mubr.bf16.gmra.mrb[0].mxu0 %v119
  %v348 = vpop.f32.mrb[0].mxu0
  %v349 = vadd.f32 %v83, %v348
  %v350 = vpop.f32.mrb[0].mxu0
  %v351 = vadd.f32 %v87, %v350
  %v352 = vpop.f32.mrb[0].mxu0
  %v353 = vadd.f32 %v83, %v352
  %v354 = vpop.f32.mrb[0].mxu0
  %v355 = vadd.f32 %v87, %v354
  %356 = vdwg.mxu0
  %357 = vmatprep.subr.bf16.mxu0 %v223
  %358 = vmatpush1.bf16.msra.mxu0 %v222
  %359 = vmatprep.subr.bf16.mxu0 %v227
  %360 = vmatpush1.bf16.msra.mxu0 %v226
  %361 = vmatprep.subr.bf16.mxu0 %v231
  %362 = vmatpush1.bf16.msra.mxu0 %v230
  %363 = vmatprep.subr.bf16.mxu0 %v235
  %364 = vmatpush1.bf16.msra.mxu0 %v234
  %365 = vmatprep.subr.bf16.mxu0 %v239
  %366 = vmatpush1.bf16.msra.mxu0 %v238
  %367 = vmatprep.subr.bf16.mxu0 %v243
  %368 = vmatpush1.bf16.msra.mxu0 %v242
  %369 = vmatprep.subr.bf16.mxu0 %v247
  %370 = vmatpush1.bf16.msra.mxu0 %v246
  %371 = vmatprep.subr.bf16.mxu0 %v251
  %372 = vmatpush1.bf16.msra.mxu0 %v250
  %373 = vmatprep.subr.bf16.mxu0 0
  %374 = vmatpush1.bf16.msra.mxu0 0
  %375 = vmatprep.subr.bf16.mxu0 0
  %376 = vmatpush1.bf16.msra.mxu0 0
  %377 = vmatprep.subr.bf16.mxu0 0
  %378 = vmatpush1.bf16.msra.mxu0 0
  %379 = vmatprep.subr.bf16.mxu0 0
  %380 = vmatpush1.bf16.msra.mxu0 0
  %381 = vmatprep.subr.bf16.mxu0 0
  %382 = vmatpush1.bf16.msra.mxu0 0
  %383 = vmatprep.subr.bf16.mxu0 0
  %384 = vmatpush1.bf16.msra.mxu0 0
  %385 = vmatprep.subr.bf16.mxu0 0
  %386 = vmatpush1.bf16.msra.mxu0 0
  %387 = vmatprep.subr.bf16.mxu0 0
  %388 = vmatpush1.bf16.msra.mxu0 0
  %389 = vmatprep.mubr.bf16.mxu0 0
  %390 = vmatmul.mubr.bf16.gmra.mrb[0].mxu0 %v116
  %v391 = vpop.f32.mrb[0].mxu0
  %v392 = vadd.f32 %v91, %v391
  %v393 = vpop.f32.mrb[0].mxu0
  %v394 = vadd.f32 %v95, %v393
  %v395 = vpop.f32.mrb[0].mxu0
  %v396 = vadd.f32 %v91, %v395
  %v397 = vpop.f32.mrb[0].mxu0
  %v398 = vadd.f32 %v95, %v397
  %399 = vmatprep.mubr.bf16.mxu0 0
  %400 = vmatmul.mubr.bf16.gmra.mrb[0].mxu0 %v117
  %v401 = vpop.f32.mrb[0].mxu0
  %v402 = vadd.f32 %v91, %v401
  %v403 = vpop.f32.mrb[0].mxu0
  %v404 = vadd.f32 %v95, %v403
  %v405 = vpop.f32.mrb[0].mxu0
  %v406 = vadd.f32 %v91, %v405
  %v407 = vpop.f32.mrb[0].mxu0
  %v408 = vadd.f32 %v95, %v407
  %409 = vmatprep.mubr.bf16.mxu0 0
  %410 = vmatmul.mubr.bf16.gmra.mrb[0].mxu0 %v118
  %v411 = vpop.f32.mrb[0].mxu0
  %v412 = vadd.f32 %v91, %v411
  %v413 = vpop.f32.mrb[0].mxu0
  %v414 = vadd.f32 %v95, %v413
  %v415 = vpop.f32.mrb[0].mxu0
  %v416 = vadd.f32 %v91, %v415
  %v417 = vpop.f32.mrb[0].mxu0
  %v418 = vadd.f32 %v95, %v417
  %419 = vmatprep.mubr.bf16.mxu0 0
  %420 = vmatmul.mubr.bf16.gmra.mrb[0].mxu0 %v119
  %v421 = vpop.f32.mrb[0].mxu0
  %v422 = vadd.f32 %v91, %v421
  %v423 = vpop.f32.mrb[0].mxu0
  %v424 = vadd.f32 %v95, %v423
  %v425 = vpop.f32.mrb[0].mxu0
  %v426 = vadd.f32 %v91, %v425
  %v427 = vpop.f32.mrb[0].mxu0
  %v428 = vadd.f32 %v95, %v427
  %429 = vdwg.mxu0
  %430 = vst [vmem:[#allocation4] sm:$0xff] %v319
  %431 = vst [vmem:[#allocation4 + $0x8] sm:$0xff] %v321
  %432 = vst [vmem:[#allocation4 + $0x10] sm:$0xff] %v392
  %433 = vst [vmem:[#allocation4 + $0x18] sm:$0xff] %v394
  %434 = vst [vmem:[#allocation4 + $0x20] sm:$0xff] %v323
  %435 = vst [vmem:[#allocation4 + $0x28] sm:$0xff] %v325
  %436 = vst [vmem:[#allocation4 + $0x30] sm:$0xff] %v396
  %437 = vst [vmem:[#allocation4 + $0x38] sm:$0xff] %v398
  %438 = vst [vmem:[#allocation4 + $0x40] sm:$0xff] %v329
  %439 = vst [vmem:[#allocation4 + $0x48] sm:$0xff] %v331
  %440 = vst [vmem:[#allocation4 + $0x50] sm:$0xff] %v402
  %441 = vst [vmem:[#allocation4 + $0x58] sm:$0xff] %v404
  %442 = vst [vmem:[#allocation4 + $0x60] sm:$0xff] %v333
  %443 = vst [vmem:[#allocation4 + $0x68] sm:$0xff] %v335
  %444 = vst [vmem:[#allocation4 + $0x70] sm:$0xff] %v406
  %445 = vst [vmem:[#allocation4 + $0x78] sm:$0xff] %v408
  %446 = vst [vmem:[#allocation4 + $0x80] sm:$0xff] %v339
  %447 = vst [vmem:[#allocation4 + $0x88] sm:$0xff] %v341
  %448 = vst [vmem:[#allocation4 + $0x90] sm:$0xff] %v412
  %449 = vst [vmem:[#allocation4 + $0x98] sm:$0xff] %v414
  %450 = vst [vmem:[#allocation4 + $0xa0] sm:$0xff] %v343
  %451 = vst [vmem:[#allocation4 + $0xa8] sm:$0xff] %v345
  %452 = vst [vmem:[#allocation4 + $0xb0] sm:$0xff] %v416
  %453 = vst [vmem:[#allocation4 + $0xb8] sm:$0xff] %v418
  %454 = vst [vmem:[#allocation4 + $0xc0] sm:$0xff] %v349
  %455 = vst [vmem:[#allocation4 + $0xc8] sm:$0xff] %v351
  %456 = vst [vmem:[#allocation4 + $0xd0] sm:$0xff] %v422
  %457 = vst [vmem:[#allocation4 + $0xd8] sm:$0xff] %v424
  %458 = vst [vmem:[#allocation4 + $0xe0] sm:$0xff] %v353
  %459 = vst [vmem:[#allocation4 + $0xe8] sm:$0xff] %v355
  %460 = vst [vmem:[#allocation4 + $0xf0] sm:$0xff] %v426
  %461 = vst [vmem:[#allocation4 + $0xf8] sm:$0xff] %v428
  %v462 = vld [vmem:[%s4] sm:$0xff]
  %v463 = vld [vmem:[%s4 + $0x8] sm:$0xff]
  %v464 = vld [vmem:[%s4 + $0x10] sm:$0xff]
  %v465 = vld [vmem:[%s4 + $0x18] sm:$0xff]
  %v466 = vld [vmem:[%s4 + $0x20] sm:$0xff]
  %v467 = vld [vmem:[%s4 + $0x28] sm:$0xff]
  %v468 = vld [vmem:[%s4 + $0x30] sm:$0xff]
  %v469 = vld [vmem:[%s4 + $0x38] sm:$0xff]
  %v470 = vld [vmem:[%s4 + $0x40] sm:$0xff]
  %v471 = vld [vmem:[%s4 + $0x48] sm:$0xff]
  %v472 = vld [vmem:[%s4 + $0x50] sm:$0xff]
  %v473 = vld [vmem:[%s4 + $0x58] sm:$0xff]
  %v474 = vld [vmem:[%s4 + $0x60] sm:$0xff]
  %v475 = vld [vmem:[%s4 + $0x68] sm:$0xff]
  %v476 = vld [vmem:[%s4 + $0x70] sm:$0xff]
  %v477 = vld [vmem:[%s4 + $0x78] sm:$0xff]
  %v478 = vld [vmem:[%s4 + $0x80] sm:$0xff]
  %v479 = vld [vmem:[%s4 + $0x88] sm:$0xff]
  %v480 = vld [vmem:[%s4 + $0x90] sm:$0xff]
  %v481 = vld [vmem:[%s4 + $0x98] sm:$0xff]
  %v482 = vld [vmem:[%s4 + $0xa0] sm:$0xff]
  %v483 = vld [vmem:[%s4 + $0xa8] sm:$0xff]
  %v484 = vld [vmem:[%s4 + $0xb0] sm:$0xff]
  %v485 = vld [vmem:[%s4 + $0xb8] sm:$0xff]
  %v486 = vld [vmem:[%s4 + $0xc0] sm:$0xff]
  %v487 = vld [vmem:[%s4 + $0xc8] sm:$0xff]
  %v488 = vld [vmem:[%s4 + $0xd0] sm:$0xff]
  %v489 = vld [vmem:[%s4 + $0xd8] sm:$0xff]
  %v490 = vld [vmem:[%s4 + $0xe0] sm:$0xff]
  %v491 = vld [vmem:[%s4 + $0xe8] sm:$0xff]
  %v492 = vld [vmem:[%s4 + $0xf0] sm:$0xff]
  %v493 = vld [vmem:[%s4 + $0xf8] sm:$0xff]
  %v494 = vld [vmem:[#allocation2] sm:$0xff]
  %v495 = vld [vmem:[#allocation3] sm:$0xff]
  %s496 = smul.u32 0, 4
  %s497 = smul.addr %s496, 8
  %s498 = scalar_lea.vmem [#allocation4], %s497
  %v499 = vld [vmem:[%s498] sm:$0xff]
  %v500 = vld [vmem:[%s498 + $0x8] sm:$0xff]
  %v501 = vld [vmem:[%s498 + $0x10] sm:$0xff]
  %v502 = vld [vmem:[%s498 + $0x18] sm:$0xff]
  %v503 = vpack.c.bf16 %v494, %v494
  %v536 = vunpack.c.l.b16 %v462
  %v537 = vunpack.c.h.b16 %v462
  %v538 = vunpack.c.l.b16 %v463
  %v539 = vunpack.c.h.b16 %v463
  %v540 = vunpack.c.l.b16 %v464
  %v541 = vunpack.c.h.b16 %v464
  %v542 = vunpack.c.l.b16 %v465
  %v543 = vunpack.c.h.b16 %v465
  %v544 = vunpack.c.l.b16 %v466
  %v545 = vunpack.c.h.b16 %v466
  %v546 = vunpack.c.l.b16 %v467
  %v547 = vunpack.c.h.b16 %v467
  %v548 = vunpack.c.l.b16 %v468
  %v549 = vunpack.c.h.b16 %v468
  %v550 = vunpack.c.l.b16 %v469
  %v551 = vunpack.c.h.b16 %v469
  %v552 = vunpack.c.l.b16 %v470
  %v553 = vunpack.c.h.b16 %v470
  %v554 = vunpack.c.l.b16 %v471
  %v555 = vunpack.c.h.b16 %v471
  %v556 = vunpack.c.l.b16 %v472
  %v557 = vunpack.c.h.b16 %v472
  %v558 = vunpack.c.l.b16 %v473
  %v559 = vunpack.c.h.b16 %v473
  %v560 = vunpack.c.l.b16 %v474
  %v561 = vunpack.c.h.b16 %v474
  %v562 = vunpack.c.l.b16 %v475
  %v563 = vunpack.c.h.b16 %v475
  %v564 = vunpack.c.l.b16 %v476
  %v565 = vunpack.c.h.b16 %v476
  %v566 = vunpack.c.l.b16 %v477
  %v567 = vunpack.c.h.b16 %v477
  %v568 = vunpack.c.l.b16 %v478
  %v569 = vunpack.c.h.b16 %v478
  %v570 = vunpack.c.l.b16 %v479
  %v571 = vunpack.c.h.b16 %v479
  %v572 = vunpack.c.l.b16 %v480
  %v573 = vunpack.c.h.b16 %v480
  %v574 = vunpack.c.l.b16 %v481
  %v575 = vunpack.c.h.b16 %v481
  %v576 = vunpack.c.l.b16 %v482
  %v577 = vunpack.c.h.b16 %v482
  %v578 = vunpack.c.l.b16 %v483
  %v579 = vunpack.c.h.b16 %v483
  %v580 = vunpack.c.l.b16 %v484
  %v581 = vunpack.c.h.b16 %v484
  %v582 = vunpack.c.l.b16 %v485
  %v583 = vunpack.c.h.b16 %v485
  %v584 = vunpack.c.l.b16 %v486
  %v585 = vunpack.c.h.b16 %v486
  %v586 = vunpack.c.l.b16 %v487
  %v587 = vunpack.c.h.b16 %v487
  %v588 = vunpack.c.l.b16 %v488
  %v589 = vunpack.c.h.b16 %v488
  %v590 = vunpack.c.l.b16 %v489
  %v591 = vunpack.c.h.b16 %v489
  %v592 = vunpack.c.l.b16 %v490
  %v593 = vunpack.c.h.b16 %v490
  %v594 = vunpack.c.l.b16 %v491
  %v595 = vunpack.c.h.b16 %v491
  %v596 = vunpack.c.l.b16 %v492
  %v597 = vunpack.c.h.b16 %v492
  %v598 = vunpack.c.l.b16 %v493
  %v599 = vunpack.c.h.b16 %v493
  %v600 = vpack.c.b16 %v540, %v536
  %v601 = vpack.c.b16 %v541, %v537
  %v602 = vpack.c.b16 %v542, %v538
  %v603 = vpack.c.b16 %v543, %v539
  %v604 = vpack.c.b16 %v548, %v544
  %v605 = vpack.c.b16 %v549, %v545
  %v606 = vpack.c.b16 %v550, %v546
  %v607 = vpack.c.b16 %v551, %v547
  %v608 = vpack.c.b16 %v556, %v552
  %v609 = vpack.c.b16 %v557, %v553
  %v610 = vpack.c.b16 %v558, %v554
  %v611 = vpack.c.b16 %v559, %v555
  %v612 = vpack.c.b16 %v564, %v560
  %v613 = vpack.c.b16 %v565, %v561
  %v614 = vpack.c.b16 %v566, %v562
  %v615 = vpack.c.b16 %v567, %v563
  %v616 = vpack.c.b16 %v572, %v568
  %v617 = vpack.c.b16 %v573, %v569
  %v618 = vpack.c.b16 %v574, %v570
  %v619 = vpack.c.b16 %v575, %v571
  %v620 = vpack.c.b16 %v580, %v576
  %v621 = vpack.c.b16 %v581, %v577
  %v622 = vpack.c.b16 %v582, %v578
  %v623 = vpack.c.b16 %v583, %v579
  %v624 = vpack.c.b16 %v588, %v584
  %v625 = vpack.c.b16 %v589, %v585
  %v626 = vpack.c.b16 %v590, %v586
  %v627 = vpack.c.b16 %v591, %v587
  %v628 = vpack.c.b16 %v596, %v592
  %v629 = vpack.c.b16 %v597, %v593
  %v630 = vpack.c.b16 %v598, %v594
  %v631 = vpack.c.b16 %v599, %v595
  %664 = vmatprep.subr.bf16.mxu0 %v601
  %665 = vmatpush1.bf16.msra.mxu0 %v600
  %666 = vmatprep.subr.bf16.mxu0 %v605
  %667 = vmatpush1.bf16.msra.mxu0 %v604
  %668 = vmatprep.subr.bf16.mxu0 %v609
  %669 = vmatpush1.bf16.msra.mxu0 %v608
  %670 = vmatprep.subr.bf16.mxu0 %v613
  %671 = vmatpush1.bf16.msra.mxu0 %v612
  %672 = vmatprep.subr.bf16.mxu0 %v617
  %673 = vmatpush1.bf16.msra.mxu0 %v616
  %674 = vmatprep.subr.bf16.mxu0 %v621
  %675 = vmatpush1.bf16.msra.mxu0 %v620
  %676 = vmatprep.subr.bf16.mxu0 %v625
  %677 = vmatpush1.bf16.msra.mxu0 %v624
  %678 = vmatprep.subr.bf16.mxu0 %v629
  %679 = vmatpush1.bf16.msra.mxu0 %v628
  %680 = vmatprep.subr.bf16.mxu0 0
  %681 = vmatpush1.bf16.msra.mxu0 0
  %682 = vmatprep.subr.bf16.mxu0 0
  %683 = vmatpush1.bf16.msra.mxu0 0
  %684 = vmatprep.subr.bf16.mxu0 0
  %685 = vmatpush1.bf16.msra.mxu0 0
  %686 = vmatprep.subr.bf16.mxu0 0
  %687 = vmatpush1.bf16.msra.mxu0 0
  %688 = vmatprep.subr.bf16.mxu0 0
  %689 = vmatpush1.bf16.msra.mxu0 0
  %690 = vmatprep.subr.bf16.mxu0 0
  %691 = vmatpush1.bf16.msra.mxu0 0
  %692 = vmatprep.subr.bf16.mxu0 0
  %693 = vmatpush1.bf16.msra.mxu0 0
  %694 = vmatprep.subr.bf16.mxu0 0
  %695 = vmatpush1.bf16.msra.mxu0 0
  %696 = vmatprep.mubr.bf16.mxu0 0
  %697 = vmatmul.mubr.bf16.gmra.mrb[0].mxu0 %v503
  %v698 = vpop.f32.mrb[0].mxu0
  %v699 = vadd.f32 0.0, %v698
  %v700 = vpop.f32.mrb[0].mxu0
  %v701 = vadd.f32 0.0, %v700
  %v702 = vpop.f32.mrb[0].mxu0
  %v703 = vpop.f32.mrb[0].mxu0
  %704 = vdwg.mxu0
  %705 = vmatprep.subr.bf16.mxu0 %v603
  %706 = vmatpush1.bf16.msra.mxu0 %v602
  %707 = vmatprep.subr.bf16.mxu0 %v607
  %708 = vmatpush1.bf16.msra.mxu0 %v606
  %709 = vmatprep.subr.bf16.mxu0 %v611
  %710 = vmatpush1.bf16.msra.mxu0 %v610
  %711 = vmatprep.subr.bf16.mxu0 %v615
  %712 = vmatpush1.bf16.msra.mxu0 %v614
  %713 = vmatprep.subr.bf16.mxu0 %v619
  %714 = vmatpush1.bf16.msra.mxu0 %v618
  %715 = vmatprep.subr.bf16.mxu0 %v623
  %716 = vmatpush1.bf16.msra.mxu0 %v622
  %717 = vmatprep.subr.bf16.mxu0 %v627
  %718 = vmatpush1.bf16.msra.mxu0 %v626
  %719 = vmatprep.subr.bf16.mxu0 %v631
  %720 = vmatpush1.bf16.msra.mxu0 %v630
  %721 = vmatprep.subr.bf16.mxu0 0
  %722 = vmatpush1.bf16.msra.mxu0 0
  %723 = vmatprep.subr.bf16.mxu0 0
  %724 = vmatpush1.bf16.msra.mxu0 0
  %725 = vmatprep.subr.bf16.mxu0 0
  %726 = vmatpush1.bf16.msra.mxu0 0
  %727 = vmatprep.subr.bf16.mxu0 0
  %728 = vmatpush1.bf16.msra.mxu0 0
  %729 = vmatprep.subr.bf16.mxu0 0
  %730 = vmatpush1.bf16.msra.mxu0 0
  %731 = vmatprep.subr.bf16.mxu0 0
  %732 = vmatpush1.bf16.msra.mxu0 0
  %733 = vmatprep.subr.bf16.mxu0 0
  %734 = vmatpush1.bf16.msra.mxu0 0
  %735 = vmatprep.subr.bf16.mxu0 0
  %736 = vmatpush1.bf16.msra.mxu0 0
  %737 = vmatprep.mubr.bf16.mxu0 0
  %738 = vmatmul.mubr.bf16.gmra.mrb[0].mxu0 %v503
  %v739 = vpop.f32.mrb[0].mxu0
  %v740 = vadd.f32 0.0, %v739
  %v741 = vpop.f32.mrb[0].mxu0
  %v742 = vadd.f32 0.0, %v741
  %v743 = vpop.f32.mrb[0].mxu0
  %v744 = vpop.f32.mrb[0].mxu0
  %745 = vdwg.mxu0
  %v746 = vadd.f32 %v499, %v699
  %v747 = vadd.f32 %v500, %v701
  %v748 = vadd.f32 %v501, %v740
  %v749 = vadd.f32 %v502, %v742
  %v750 = vxor.u32 %v746, 2147483648
  %v751 = vxor.u32 %v747, 2147483648
  %v752 = vxor.u32 %v748, 2147483648
  %v753 = vmul.f32 %v750, 1.442695
  %v754 = vpow.pop %v753
  %v755 = vmul.f32 %v751, 1.442695
  %v756 = vpow.pop %v755
  %v757 = vmul.f32 %v752, 1.442695
  %v758 = vpow.pop %v757
  %v759 = vadd.f32 %v754, 1.0
  %v760 = vadd.f32 %v756, 1.0
  %v761 = vadd.f32 %v758, 1.0
  %v762 = vrcp.pop %v759
  %v763 = vmul.f32 1.0, %v762
  %v764 = vrcp.pop %v760
  %v765 = vmul.f32 1.0, %v764
  %v766 = vrcp.pop %v761
  %v767 = vmul.f32 1.0, %v766
  %v768 = vtanh.pop %v749
  %v769 = vmul.f32 %v765, %v495
  %v770 = vmul.f32 %v763, %v768
  %v771 = vadd.f32 %v769, %v770
  %v772 = vtanh.pop %v771
  %v773 = vmul.f32 %v767, %v772
  %774 = vst [vmem:[#allocation5] sm:$0xff] %v773
  %s775 = smul.u32 1, 4
  %s776 = smul.addr %s775, 8
  %s777 = scalar_lea.vmem [#allocation4], %s776
  %v778 = vld [vmem:[%s777] sm:$0xff]
  %v779 = vld [vmem:[%s777 + $0x8] sm:$0xff]
  %v780 = vld [vmem:[%s777 + $0x10] sm:$0xff]
  %v781 = vld [vmem:[%s777 + $0x18] sm:$0xff]
  %v782 = vpack.c.bf16 %v773, %v773
  %783 = vmatprep.subr.bf16.mxu0 %v601
  %784 = vmatpush1.bf16.msra.mxu0 %v600
  %785 = vmatprep.subr.bf16.mxu0 %v605
  %786 = vmatpush1.bf16.msra.mxu0 %v604
  %787 = vmatprep.subr.bf16.mxu0 %v609
  %788 = vmatpush1.bf16.msra.mxu0 %v608
  %789 = vmatprep.subr.bf16.mxu0 %v613
  %790 = vmatpush1.bf16.msra.mxu0 %v612
  %791 = vmatprep.subr.bf16.mxu0 %v617
  %792 = vmatpush1.bf16.msra.mxu0 %v616
  %793 = vmatprep.subr.bf16.mxu0 %v621
  %794 = vmatpush1.bf16.msra.mxu0 %v620
  %795 = vmatprep.subr.bf16.mxu0 %v625
  %796 = vmatpush1.bf16.msra.mxu0 %v624
  %797 = vmatprep.subr.bf16.mxu0 %v629
  %798 = vmatpush1.bf16.msra.mxu0 %v628
  %799 = vmatprep.subr.bf16.mxu0 0
  %800 = vmatpush1.bf16.msra.mxu0 0
  %801 = vmatprep.subr.bf16.mxu0 0
  %802 = vmatpush1.bf16.msra.mxu0 0
  %803 = vmatprep.subr.bf16.mxu0 0
  %804 = vmatpush1.bf16.msra.mxu0 0
  %805 = vmatprep.subr.bf16.mxu0 0
  %806 = vmatpush1.bf16.msra.mxu0 0
  %807 = vmatprep.subr.bf16.mxu0 0
  %808 = vmatpush1.bf16.msra.mxu0 0
  %809 = vmatprep.subr.bf16.mxu0 0
  %810 = vmatpush1.bf16.msra.mxu0 0
  %811 = vmatprep.subr.bf16.mxu0 0
  %812 = vmatpush1.bf16.msra.mxu0 0
  %813 = vmatprep.subr.bf16.mxu0 0
  %814 = vmatpush1.bf16.msra.mxu0 0
  %815 = vmatprep.mubr.bf16.mxu0 0
  %816 = vmatmul.mubr.bf16.gmra.mrb[0].mxu0 %v782
  %v817 = vpop.f32.mrb[0].mxu0
  %v818 = vadd.f32 0.0, %v817
  %v819 = vpop.f32.mrb[0].mxu0
  %v820 = vadd.f32 0.0, %v819
  %v821 = vpop.f32.mrb[0].mxu0
  %v822 = vpop.f32.mrb[0].mxu0
  %823 = vdwg.mxu0
  %824 = vmatprep.subr.bf16.mxu0 %v603
  %825 = vmatpush1.bf16.msra.mxu0 %v602
  %826 = vmatprep.subr.bf16.mxu0 %v607
  %827 = vmatpush1.bf16.msra.mxu0 %v606
  %828 = vmatprep.subr.bf16.mxu0 %v611
  %829 = vmatpush1.bf16.msra.mxu0 %v610
  %830 = vmatprep.subr.bf16.mxu0 %v615
  %831 = vmatpush1.bf16.msra.mxu0 %v614
  %832 = vmatprep.subr.bf16.mxu0 %v619
  %833 = vmatpush1.bf16.msra.mxu0 %v618
  %834 = vmatprep.subr.bf16.mxu0 %v623
  %835 = vmatpush1.bf16.msra.mxu0 %v622
  %836 = vmatprep.subr.bf16.mxu0 %v627
  %837 = vmatpush1.bf16.msra.mxu0 %v626
  %838 = vmatprep.subr.bf16.mxu0 %v631
  %839 = vmatpush1.bf16.msra.mxu0 %v630
  %840 = vmatprep.subr.bf16.mxu0 0
  %841 = vmatpush1.bf16.msra.mxu0 0
  %842 = vmatprep.subr.bf16.mxu0 0
  %843 = vmatpush1.bf16.msra.mxu0 0
  %844 = vmatprep.subr.bf16.mxu0 0
  %845 = vmatpush1.bf16.msra.mxu0 0
  %846 = vmatprep.subr.bf16.mxu0 0
  %847 = vmatpush1.bf16.msra.mxu0 0
  %848 = vmatprep.subr.bf16.mxu0 0
  %849 = vmatpush1.bf16.msra.mxu0 0
  %850 = vmatprep.subr.bf16.mxu0 0
  %851 = vmatpush1.bf16.msra.mxu0 0
  %852 = vmatprep.subr.bf16.mxu0 0
  %853 = vmatpush1.bf16.msra.mxu0 0
  %854 = vmatprep.subr.bf16.mxu0 0
  %855 = vmatpush1.bf16.msra.mxu0 0
  %856 = vmatprep.mubr.bf16.mxu0 0
  %857 = vmatmul.mubr.bf16.gmra.mrb[0].mxu0 %v782
  %v858 = vpop.f32.mrb[0].mxu0
  %v859 = vadd.f32 0.0, %v858
  %v860 = vpop.f32.mrb[0].mxu0
  %v861 = vadd.f32 0.0, %v860
  %v862 = vpop.f32.mrb[0].mxu0
  %v863 = vpop.f32.mrb[0].mxu0
  %864 = vdwg.mxu0
  %v865 = vadd.f32 %v778, %v818
  %v866 = vadd.f32 %v779, %v820
  %v867 = vadd.f32 %v780, %v859
  %v868 = vadd.f32 %v781, %v861
  %v869 = vxor.u32 %v865, 2147483648
  %v870 = vxor.u32 %v866, 2147483648
  %v871 = vxor.u32 %v867, 2147483648
  %v872 = vmul.f32 %v869, 1.442695
  %v873 = vpow.pop %v872
  %v874 = vmul.f32 %v870, 1.442695
  %v875 = vpow.pop %v874
  %v876 = vmul.f32 %v871, 1.442695
  %v877 = vpow.pop %v876
  %v878 = vadd.f32 %v873, 1.0
  %v879 = vadd.f32 %v875, 1.0
  %v880 = vadd.f32 %v877, 1.0
  %v881 = vrcp.pop %v878
  %v882 = vmul.f32 1.0, %v881
  %v883 = vrcp.pop %v879
  %v884 = vmul.f32 1.0, %v883
  %v885 = vrcp.pop %v880
  %v886 = vmul.f32 1.0, %v885
  %v887 = vtanh.pop %v868
  %v888 = vmul.f32 %v884, %v771
  %v889 = vmul.f32 %v882, %v887
  %v890 = vadd.f32 %v888, %v889
  %v891 = vtanh.pop %v890
  %v892 = vmul.f32 %v886, %v891
  %s893 = scalar_lea.vmem [#allocation5], 8
  %894 = vst [vmem:[%s893] sm:$0xff] %v892
  %s895 = smul.u32 2, 4
  %s896 = smul.addr %s895, 8
  %s897 = scalar_lea.vmem [#allocation4], %s896
  %v898 = vld [vmem:[%s897] sm:$0xff]
  %v899 = vld [vmem:[%s897 + $0x8] sm:$0xff]
  %v900 = vld [vmem:[%s897 + $0x10] sm:$0xff]
  %v901 = vld [vmem:[%s897 + $0x18] sm:$0xff]
  %v902 = vpack.c.bf16 %v892, %v892
  %903 = vmatprep.subr.bf16.mxu0 %v601
  %904 = vmatpush1.bf16.msra.mxu0 %v600
  %905 = vmatprep.subr.bf16.mxu0 %v605
  %906 = vmatpush1.bf16.msra.mxu0 %v604
  %907 = vmatprep.subr.bf16.mxu0 %v609
  %908 = vmatpush1.bf16.msra.mxu0 %v608
  %909 = vmatprep.subr.bf16.mxu0 %v613
  %910 = vmatpush1.bf16.msra.mxu0 %v612
  %911 = vmatprep.subr.bf16.mxu0 %v617
  %912 = vmatpush1.bf16.msra.mxu0 %v616
  %913 = vmatprep.subr.bf16.mxu0 %v621
  %914 = vmatpush1.bf16.msra.mxu0 %v620
  %915 = vmatprep.subr.bf16.mxu0 %v625
  %916 = vmatpush1.bf16.msra.mxu0 %v624
  %917 = vmatprep.subr.bf16.mxu0 %v629
  %918 = vmatpush1.bf16.msra.mxu0 %v628
  %919 = vmatprep.subr.bf16.mxu0 0
  %920 = vmatpush1.bf16.msra.mxu0 0
  %921 = vmatprep.subr.bf16.mxu0 0
  %922 = vmatpush1.bf16.msra.mxu0 0
  %923 = vmatprep.subr.bf16.mxu0 0
  %924 = vmatpush1.bf16.msra.mxu0 0
  %925 = vmatprep.subr.bf16.mxu0 0
  %926 = vmatpush1.bf16.msra.mxu0 0
  %927 = vmatprep.subr.bf16.mxu0 0
  %928 = vmatpush1.bf16.msra.mxu0 0
  %929 = vmatprep.subr.bf16.mxu0 0
  %930 = vmatpush1.bf16.msra.mxu0 0
  %931 = vmatprep.subr.bf16.mxu0 0
  %932 = vmatpush1.bf16.msra.mxu0 0
  %933 = vmatprep.subr.bf16.mxu0 0
  %934 = vmatpush1.bf16.msra.mxu0 0
  %935 = vmatprep.mubr.bf16.mxu0 0
  %936 = vmatmul.mubr.bf16.gmra.mrb[0].mxu0 %v902
  %v937 = vpop.f32.mrb[0].mxu0
  %v938 = vadd.f32 0.0, %v937
  %v939 = vpop.f32.mrb[0].mxu0
  %v940 = vadd.f32 0.0, %v939
  %v941 = vpop.f32.mrb[0].mxu0
  %v942 = vpop.f32.mrb[0].mxu0
  %943 = vdwg.mxu0
  %944 = vmatprep.subr.bf16.mxu0 %v603
  %945 = vmatpush1.bf16.msra.mxu0 %v602
  %946 = vmatprep.subr.bf16.mxu0 %v607
  %947 = vmatpush1.bf16.msra.mxu0 %v606
  %948 = vmatprep.subr.bf16.mxu0 %v611
  %949 = vmatpush1.bf16.msra.mxu0 %v610
  %950 = vmatprep.subr.bf16.mxu0 %v615
  %951 = vmatpush1.bf16.msra.mxu0 %v614
  %952 = vmatprep.subr.bf16.mxu0 %v619
  %953 = vmatpush1.bf16.msra.mxu0 %v618
  %954 = vmatprep.subr.bf16.mxu0 %v623
  %955 = vmatpush1.bf16.msra.mxu0 %v622
  %956 = vmatprep.subr.bf16.mxu0 %v627
  %957 = vmatpush1.bf16.msra.mxu0 %v626
  %958 = vmatprep.subr.bf16.mxu0 %v631
  %959 = vmatpush1.bf16.msra.mxu0 %v630
  %960 = vmatprep.subr.bf16.mxu0 0
  %961 = vmatpush1.bf16.msra.mxu0 0
  %962 = vmatprep.subr.bf16.mxu0 0
  %963 = vmatpush1.bf16.msra.mxu0 0
  %964 = vmatprep.subr.bf16.mxu0 0
  %965 = vmatpush1.bf16.msra.mxu0 0
  %966 = vmatprep.subr.bf16.mxu0 0
  %967 = vmatpush1.bf16.msra.mxu0 0
  %968 = vmatprep.subr.bf16.mxu0 0
  %969 = vmatpush1.bf16.msra.mxu0 0
  %970 = vmatprep.subr.bf16.mxu0 0
  %971 = vmatpush1.bf16.msra.mxu0 0
  %972 = vmatprep.subr.bf16.mxu0 0
  %973 = vmatpush1.bf16.msra.mxu0 0
  %974 = vmatprep.subr.bf16.mxu0 0
  %975 = vmatpush1.bf16.msra.mxu0 0
  %976 = vmatprep.mubr.bf16.mxu0 0
  %977 = vmatmul.mubr.bf16.gmra.mrb[0].mxu0 %v902
  %v978 = vpop.f32.mrb[0].mxu0
  %v979 = vadd.f32 0.0, %v978
  %v980 = vpop.f32.mrb[0].mxu0
  %v981 = vadd.f32 0.0, %v980
  %v982 = vpop.f32.mrb[0].mxu0
  %v983 = vpop.f32.mrb[0].mxu0
  %984 = vdwg.mxu0
  %v985 = vadd.f32 %v898, %v938
  %v986 = vadd.f32 %v899, %v940
  %v987 = vadd.f32 %v900, %v979
  %v988 = vadd.f32 %v901, %v981
  %v989 = vxor.u32 %v985, 2147483648
  %v990 = vxor.u32 %v986, 2147483648
  %v991 = vxor.u32 %v987, 2147483648
  %v992 = vmul.f32 %v989, 1.442695
  %v993 = vpow.pop %v992
  %v994 = vmul.f32 %v990, 1.442695
  %v995 = vpow.pop %v994
  %v996 = vmul.f32 %v991, 1.442695
  %v997 = vpow.pop %v996
  %v998 = vadd.f32 %v993, 1.0
  %v999 = vadd.f32 %v995, 1.0
  %v1000 = vadd.f32 %v997, 1.0
  %v1001 = vrcp.pop %v998
  %v1002 = vmul.f32 1.0, %v1001
  %v1003 = vrcp.pop %v999
  %v1004 = vmul.f32 1.0, %v1003
  %v1005 = vrcp.pop %v1000
  %v1006 = vmul.f32 1.0, %v1005
  %v1007 = vtanh.pop %v988
  %v1008 = vmul.f32 %v1004, %v890
  %v1009 = vmul.f32 %v1002, %v1007
  %v1010 = vadd.f32 %v1008, %v1009
  %v1011 = vtanh.pop %v1010
  %v1012 = vmul.f32 %v1006, %v1011
  %s1013 = scalar_lea.vmem [#allocation5], 16
  %1014 = vst [vmem:[%s1013] sm:$0xff] %v1012
  %s1015 = smul.u32 3, 4
  %s1016 = smul.addr %s1015, 8
  %s1017 = scalar_lea.vmem [#allocation4], %s1016
  %v1018 = vld [vmem:[%s1017] sm:$0xff]
  %v1019 = vld [vmem:[%s1017 + $0x8] sm:$0xff]
  %v1020 = vld [vmem:[%s1017 + $0x10] sm:$0xff]
  %v1021 = vld [vmem:[%s1017 + $0x18] sm:$0xff]
  %v1022 = vpack.c.bf16 %v1012, %v1012
  %1023 = vmatprep.subr.bf16.mxu0 %v601
  %1024 = vmatpush1.bf16.msra.mxu0 %v600
  %1025 = vmatprep.subr.bf16.mxu0 %v605
  %1026 = vmatpush1.bf16.msra.mxu0 %v604
  %1027 = vmatprep.subr.bf16.mxu0 %v609
  %1028 = vmatpush1.bf16.msra.mxu0 %v608
  %1029 = vmatprep.subr.bf16.mxu0 %v613
  %1030 = vmatpush1.bf16.msra.mxu0 %v612
  %1031 = vmatprep.subr.bf16.mxu0 %v617
  %1032 = vmatpush1.bf16.msra.mxu0 %v616
  %1033 = vmatprep.subr.bf16.mxu0 %v621
  %1034 = vmatpush1.bf16.msra.mxu0 %v620
  %1035 = vmatprep.subr.bf16.mxu0 %v625
  %1036 = vmatpush1.bf16.msra.mxu0 %v624
  %1037 = vmatprep.subr.bf16.mxu0 %v629
  %1038 = vmatpush1.bf16.msra.mxu0 %v628
  %1039 = vmatprep.subr.bf16.mxu0 0
  %1040 = vmatpush1.bf16.msra.mxu0 0
  %1041 = vmatprep.subr.bf16.mxu0 0
  %1042 = vmatpush1.bf16.msra.mxu0 0
  %1043 = vmatprep.subr.bf16.mxu0 0
  %1044 = vmatpush1.bf16.msra.mxu0 0
  %1045 = vmatprep.subr.bf16.mxu0 0
  %1046 = vmatpush1.bf16.msra.mxu0 0
  %1047 = vmatprep.subr.bf16.mxu0 0
  %1048 = vmatpush1.bf16.msra.mxu0 0
  %1049 = vmatprep.subr.bf16.mxu0 0
  %1050 = vmatpush1.bf16.msra.mxu0 0
  %1051 = vmatprep.subr.bf16.mxu0 0
  %1052 = vmatpush1.bf16.msra.mxu0 0
  %1053 = vmatprep.subr.bf16.mxu0 0
  %1054 = vmatpush1.bf16.msra.mxu0 0
  %1055 = vmatprep.mubr.bf16.mxu0 0
  %1056 = vmatmul.mubr.bf16.gmra.mrb[0].mxu0 %v1022
  %v1057 = vpop.f32.mrb[0].mxu0
  %v1058 = vadd.f32 0.0, %v1057
  %v1059 = vpop.f32.mrb[0].mxu0
  %v1060 = vadd.f32 0.0, %v1059
  %v1061 = vpop.f32.mrb[0].mxu0
  %v1062 = vpop.f32.mrb[0].mxu0
  %1063 = vdwg.mxu0
  %1064 = vmatprep.subr.bf16.mxu0 %v603
  %1065 = vmatpush1.bf16.msra.mxu0 %v602
  %1066 = vmatprep.subr.bf16.mxu0 %v607
  %1067 = vmatpush1.bf16.msra.mxu0 %v606
  %1068 = vmatprep.subr.bf16.mxu0 %v611
  %1069 = vmatpush1.bf16.msra.mxu0 %v610
  %1070 = vmatprep.subr.bf16.mxu0 %v615
  %1071 = vmatpush1.bf16.msra.mxu0 %v614
  %1072 = vmatprep.subr.bf16.mxu0 %v619
  %1073 = vmatpush1.bf16.msra.mxu0 %v618
  %1074 = vmatprep.subr.bf16.mxu0 %v623
  %1075 = vmatpush1.bf16.msra.mxu0 %v622
  %1076 = vmatprep.subr.bf16.mxu0 %v627
  %1077 = vmatpush1.bf16.msra.mxu0 %v626
  %1078 = vmatprep.subr.bf16.mxu0 %v631
  %1079 = vmatpush1.bf16.msra.mxu0 %v630
  %1080 = vmatprep.subr.bf16.mxu0 0
  %1081 = vmatpush1.bf16.msra.mxu0 0
  %1082 = vmatprep.subr.bf16.mxu0 0
  %1083 = vmatpush1.bf16.msra.mxu0 0
  %1084 = vmatprep.subr.bf16.mxu0 0
  %1085 = vmatpush1.bf16.msra.mxu0 0
  %1086 = vmatprep.subr.bf16.mxu0 0
  %1087 = vmatpush1.bf16.msra.mxu0 0
  %1088 = vmatprep.subr.bf16.mxu0 0
  %1089 = vmatpush1.bf16.msra.mxu0 0
  %1090 = vmatprep.subr.bf16.mxu0 0
  %1091 = vmatpush1.bf16.msra.mxu0 0
  %1092 = vmatprep.subr.bf16.mxu0 0
  %1093 = vmatpush1.bf16.msra.mxu0 0
  %1094 = vmatprep.subr.bf16.mxu0 0
  %1095 = vmatpush1.bf16.msra.mxu0 0
  %1096 = vmatprep.mubr.bf16.mxu0 0
  %1097 = vmatmul.mubr.bf16.gmra.mrb[0].mxu0 %v1022
  %v1098 = vpop.f32.mrb[0].mxu0
  %v1099 = vadd.f32 0.0, %v1098
  %v1100 = vpop.f32.mrb[0].mxu0
  %v1101 = vadd.f32 0.0, %v1100
  %v1102 = vpop.f32.mrb[0].mxu0
  %v1103 = vpop.f32.mrb[0].mxu0
  %1104 = vdwg.mxu0
  %v1105 = vadd.f32 %v1018, %v1058
  %v1106 = vadd.f32 %v1019, %v1060
  %v1107 = vadd.f32 %v1020, %v1099
  %v1108 = vadd.f32 %v1021, %v1101
  %v1109 = vxor.u32 %v1105, 2147483648
  %v1110 = vxor.u32 %v1106, 2147483648
  %v1111 = vxor.u32 %v1107, 2147483648
  %v1112 = vmul.f32 %v1109, 1.442695
  %v1113 = vpow.pop %v1112
  %v1114 = vmul.f32 %v1110, 1.442695
  %v1115 = vpow.pop %v1114
  %v1116 = vmul.f32 %v1111, 1.442695
  %v1117 = vpow.pop %v1116
  %v1118 = vadd.f32 %v1113, 1.0
  %v1119 = vadd.f32 %v1115, 1.0
  %v1120 = vadd.f32 %v1117, 1.0
  %v1121 = vrcp.pop %v1118
  %v1122 = vmul.f32 1.0, %v1121
  %v1123 = vrcp.pop %v1119
  %v1124 = vmul.f32 1.0, %v1123
  %v1125 = vrcp.pop %v1120
  %v1126 = vmul.f32 1.0, %v1125
  %v1127 = vtanh.pop %v1108
  %v1128 = vmul.f32 %v1124, %v1010
  %v1129 = vmul.f32 %v1122, %v1127
  %v1130 = vadd.f32 %v1128, %v1129
  %v1131 = vtanh.pop %v1130
  %v1132 = vmul.f32 %v1126, %v1131
  %s1133 = scalar_lea.vmem [#allocation5], 24
  %1134 = vst [vmem:[%s1133] sm:$0xff] %v1132
  %s1135 = smul.u32 4, 4
  %s1136 = smul.addr %s1135, 8
  %s1137 = scalar_lea.vmem [#allocation4], %s1136
  %v1138 = vld [vmem:[%s1137] sm:$0xff]
  %v1139 = vld [vmem:[%s1137 + $0x8] sm:$0xff]
  %v1140 = vld [vmem:[%s1137 + $0x10] sm:$0xff]
  %v1141 = vld [vmem:[%s1137 + $0x18] sm:$0xff]
  %v1142 = vpack.c.bf16 %v1132, %v1132
  %1143 = vmatprep.subr.bf16.mxu0 %v601
  %1144 = vmatpush1.bf16.msra.mxu0 %v600
  %1145 = vmatprep.subr.bf16.mxu0 %v605
  %1146 = vmatpush1.bf16.msra.mxu0 %v604
  %1147 = vmatprep.subr.bf16.mxu0 %v609
  %1148 = vmatpush1.bf16.msra.mxu0 %v608
  %1149 = vmatprep.subr.bf16.mxu0 %v613
  %1150 = vmatpush1.bf16.msra.mxu0 %v612
  %1151 = vmatprep.subr.bf16.mxu0 %v617
  %1152 = vmatpush1.bf16.msra.mxu0 %v616
  %1153 = vmatprep.subr.bf16.mxu0 %v621
  %1154 = vmatpush1.bf16.msra.mxu0 %v620
  %1155 = vmatprep.subr.bf16.mxu0 %v625
  %1156 = vmatpush1.bf16.msra.mxu0 %v624
  %1157 = vmatprep.subr.bf16.mxu0 %v629
  %1158 = vmatpush1.bf16.msra.mxu0 %v628
  %1159 = vmatprep.subr.bf16.mxu0 0
  %1160 = vmatpush1.bf16.msra.mxu0 0
  %1161 = vmatprep.subr.bf16.mxu0 0
  %1162 = vmatpush1.bf16.msra.mxu0 0
  %1163 = vmatprep.subr.bf16.mxu0 0
  %1164 = vmatpush1.bf16.msra.mxu0 0
  %1165 = vmatprep.subr.bf16.mxu0 0
  %1166 = vmatpush1.bf16.msra.mxu0 0
  %1167 = vmatprep.subr.bf16.mxu0 0
  %1168 = vmatpush1.bf16.msra.mxu0 0
  %1169 = vmatprep.subr.bf16.mxu0 0
  %1170 = vmatpush1.bf16.msra.mxu0 0
  %1171 = vmatprep.subr.bf16.mxu0 0
  %1172 = vmatpush1.bf16.msra.mxu0 0
  %1173 = vmatprep.subr.bf16.mxu0 0
  %1174 = vmatpush1.bf16.msra.mxu0 0
  %1175 = vmatprep.mubr.bf16.mxu0 0
  %1176 = vmatmul.mubr.bf16.gmra.mrb[0].mxu0 %v1142
  %v1177 = vpop.f32.mrb[0].mxu0
  %v1178 = vadd.f32 0.0, %v1177
  %v1179 = vpop.f32.mrb[0].mxu0
  %v1180 = vadd.f32 0.0, %v1179
  %v1181 = vpop.f32.mrb[0].mxu0
  %v1182 = vpop.f32.mrb[0].mxu0
  %1183 = vdwg.mxu0
  %1184 = vmatprep.subr.bf16.mxu0 %v603
  %1185 = vmatpush1.bf16.msra.mxu0 %v602
  %1186 = vmatprep.subr.bf16.mxu0 %v607
  %1187 = vmatpush1.bf16.msra.mxu0 %v606
  %1188 = vmatprep.subr.bf16.mxu0 %v611
  %1189 = vmatpush1.bf16.msra.mxu0 %v610
  %1190 = vmatprep.subr.bf16.mxu0 %v615
  %1191 = vmatpush1.bf16.msra.mxu0 %v614
  %1192 = vmatprep.subr.bf16.mxu0 %v619
  %1193 = vmatpush1.bf16.msra.mxu0 %v618
  %1194 = vmatprep.subr.bf16.mxu0 %v623
  %1195 = vmatpush1.bf16.msra.mxu0 %v622
  %1196 = vmatprep.subr.bf16.mxu0 %v627
  %1197 = vmatpush1.bf16.msra.mxu0 %v626
  %1198 = vmatprep.subr.bf16.mxu0 %v631
  %1199 = vmatpush1.bf16.msra.mxu0 %v630
  %1200 = vmatprep.subr.bf16.mxu0 0
  %1201 = vmatpush1.bf16.msra.mxu0 0
  %1202 = vmatprep.subr.bf16.mxu0 0
  %1203 = vmatpush1.bf16.msra.mxu0 0
  %1204 = vmatprep.subr.bf16.mxu0 0
  %1205 = vmatpush1.bf16.msra.mxu0 0
  %1206 = vmatprep.subr.bf16.mxu0 0
  %1207 = vmatpush1.bf16.msra.mxu0 0
  %1208 = vmatprep.subr.bf16.mxu0 0
  %1209 = vmatpush1.bf16.msra.mxu0 0
  %1210 = vmatprep.subr.bf16.mxu0 0
  %1211 = vmatpush1.bf16.msra.mxu0 0
  %1212 = vmatprep.subr.bf16.mxu0 0
  %1213 = vmatpush1.bf16.msra.mxu0 0
  %1214 = vmatprep.subr.bf16.mxu0 0
  %1215 = vmatpush1.bf16.msra.mxu0 0
  %1216 = vmatprep.mubr.bf16.mxu0 0
  %1217 = vmatmul.mubr.bf16.gmra.mrb[0].mxu0 %v1142
  %v1218 = vpop.f32.mrb[0].mxu0
  %v1219 = vadd.f32 0.0, %v1218
  %v1220 = vpop.f32.mrb[0].mxu0
  %v1221 = vadd.f32 0.0, %v1220
  %v1222 = vpop.f32.mrb[0].mxu0
  %v1223 = vpop.f32.mrb[0].mxu0
  %1224 = vdwg.mxu0
  %v1225 = vadd.f32 %v1138, %v1178
  %v1226 = vadd.f32 %v1139, %v1180
  %v1227 = vadd.f32 %v1140, %v1219
  %v1228 = vadd.f32 %v1141, %v1221
  %v1229 = vxor.u32 %v1225, 2147483648
  %v1230 = vxor.u32 %v1226, 2147483648
  %v1231 = vxor.u32 %v1227, 2147483648
  %v1232 = vmul.f32 %v1229, 1.442695
  %v1233 = vpow.pop %v1232
  %v1234 = vmul.f32 %v1230, 1.442695
  %v1235 = vpow.pop %v1234
  %v1236 = vmul.f32 %v1231, 1.442695
  %v1237 = vpow.pop %v1236
  %v1238 = vadd.f32 %v1233, 1.0
  %v1239 = vadd.f32 %v1235, 1.0
  %v1240 = vadd.f32 %v1237, 1.0
  %v1241 = vrcp.pop %v1238
  %v1242 = vmul.f32 1.0, %v1241
  %v1243 = vrcp.pop %v1239
  %v1244 = vmul.f32 1.0, %v1243
  %v1245 = vrcp.pop %v1240
  %v1246 = vmul.f32 1.0, %v1245
  %v1247 = vtanh.pop %v1228
  %v1248 = vmul.f32 %v1244, %v1130
  %v1249 = vmul.f32 %v1242, %v1247
  %v1250 = vadd.f32 %v1248, %v1249
  %v1251 = vtanh.pop %v1250
  %v1252 = vmul.f32 %v1246, %v1251
  %s1253 = scalar_lea.vmem [#allocation5], 32
  %1254 = vst [vmem:[%s1253] sm:$0xff] %v1252
  %s1255 = smul.u32 5, 4
  %s1256 = smul.addr %s1255, 8
  %s1257 = scalar_lea.vmem [#allocation4], %s1256
  %v1258 = vld [vmem:[%s1257] sm:$0xff]
  %v1259 = vld [vmem:[%s1257 + $0x8] sm:$0xff]
  %v1260 = vld [vmem:[%s1257 + $0x10] sm:$0xff]
  %v1261 = vld [vmem:[%s1257 + $0x18] sm:$0xff]
  %v1262 = vpack.c.bf16 %v1252, %v1252
  %1263 = vmatprep.subr.bf16.mxu0 %v601
  %1264 = vmatpush1.bf16.msra.mxu0 %v600
  %1265 = vmatprep.subr.bf16.mxu0 %v605
  %1266 = vmatpush1.bf16.msra.mxu0 %v604
  %1267 = vmatprep.subr.bf16.mxu0 %v609
  %1268 = vmatpush1.bf16.msra.mxu0 %v608
  %1269 = vmatprep.subr.bf16.mxu0 %v613
  %1270 = vmatpush1.bf16.msra.mxu0 %v612
  %1271 = vmatprep.subr.bf16.mxu0 %v617
  %1272 = vmatpush1.bf16.msra.mxu0 %v616
  %1273 = vmatprep.subr.bf16.mxu0 %v621
  %1274 = vmatpush1.bf16.msra.mxu0 %v620
  %1275 = vmatprep.subr.bf16.mxu0 %v625
  %1276 = vmatpush1.bf16.msra.mxu0 %v624
  %1277 = vmatprep.subr.bf16.mxu0 %v629
  %1278 = vmatpush1.bf16.msra.mxu0 %v628
  %1279 = vmatprep.subr.bf16.mxu0 0
  %1280 = vmatpush1.bf16.msra.mxu0 0
  %1281 = vmatprep.subr.bf16.mxu0 0
  %1282 = vmatpush1.bf16.msra.mxu0 0
  %1283 = vmatprep.subr.bf16.mxu0 0
  %1284 = vmatpush1.bf16.msra.mxu0 0
  %1285 = vmatprep.subr.bf16.mxu0 0
  %1286 = vmatpush1.bf16.msra.mxu0 0
  %1287 = vmatprep.subr.bf16.mxu0 0
  %1288 = vmatpush1.bf16.msra.mxu0 0
  %1289 = vmatprep.subr.bf16.mxu0 0
  %1290 = vmatpush1.bf16.msra.mxu0 0
  %1291 = vmatprep.subr.bf16.mxu0 0
  %1292 = vmatpush1.bf16.msra.mxu0 0
  %1293 = vmatprep.subr.bf16.mxu0 0
  %1294 = vmatpush1.bf16.msra.mxu0 0
  %1295 = vmatprep.mubr.bf16.mxu0 0
  %1296 = vmatmul.mubr.bf16.gmra.mrb[0].mxu0 %v1262
  %v1297 = vpop.f32.mrb[0].mxu0
  %v1298 = vadd.f32 0.0, %v1297
  %v1299 = vpop.f32.mrb[0].mxu0
  %v1300 = vadd.f32 0.0, %v1299
  %v1301 = vpop.f32.mrb[0].mxu0
  %v1302 = vpop.f32.mrb[0].mxu0
  %1303 = vdwg.mxu0
  %1304 = vmatprep.subr.bf16.mxu0 %v603
  %1305 = vmatpush1.bf16.msra.mxu0 %v602
  %1306 = vmatprep.subr.bf16.mxu0 %v607
  %1307 = vmatpush1.bf16.msra.mxu0 %v606
  %1308 = vmatprep.subr.bf16.mxu0 %v611
  %1309 = vmatpush1.bf16.msra.mxu0 %v610
  %1310 = vmatprep.subr.bf16.mxu0 %v615
  %1311 = vmatpush1.bf16.msra.mxu0 %v614
  %1312 = vmatprep.subr.bf16.mxu0 %v619
  %1313 = vmatpush1.bf16.msra.mxu0 %v618
  %1314 = vmatprep.subr.bf16.mxu0 %v623
  %1315 = vmatpush1.bf16.msra.mxu0 %v622
  %1316 = vmatprep.subr.bf16.mxu0 %v627
  %1317 = vmatpush1.bf16.msra.mxu0 %v626
  %1318 = vmatprep.subr.bf16.mxu0 %v631
  %1319 = vmatpush1.bf16.msra.mxu0 %v630
  %1320 = vmatprep.subr.bf16.mxu0 0
  %1321 = vmatpush1.bf16.msra.mxu0 0
  %1322 = vmatprep.subr.bf16.mxu0 0
  %1323 = vmatpush1.bf16.msra.mxu0 0
  %1324 = vmatprep.subr.bf16.mxu0 0
  %1325 = vmatpush1.bf16.msra.mxu0 0
  %1326 = vmatprep.subr.bf16.mxu0 0
  %1327 = vmatpush1.bf16.msra.mxu0 0
  %1328 = vmatprep.subr.bf16.mxu0 0
  %1329 = vmatpush1.bf16.msra.mxu0 0
  %1330 = vmatprep.subr.bf16.mxu0 0
  %1331 = vmatpush1.bf16.msra.mxu0 0
  %1332 = vmatprep.subr.bf16.mxu0 0
  %1333 = vmatpush1.bf16.msra.mxu0 0
  %1334 = vmatprep.subr.bf16.mxu0 0
  %1335 = vmatpush1.bf16.msra.mxu0 0
  %1336 = vmatprep.mubr.bf16.mxu0 0
  %1337 = vmatmul.mubr.bf16.gmra.mrb[0].mxu0 %v1262
  %v1338 = vpop.f32.mrb[0].mxu0
  %v1339 = vadd.f32 0.0, %v1338
  %v1340 = vpop.f32.mrb[0].mxu0
  %v1341 = vadd.f32 0.0, %v1340
  %v1342 = vpop.f32.mrb[0].mxu0
  %v1343 = vpop.f32.mrb[0].mxu0
  %1344 = vdwg.mxu0
  %v1345 = vadd.f32 %v1258, %v1298
  %v1346 = vadd.f32 %v1259, %v1300
  %v1347 = vadd.f32 %v1260, %v1339
  %v1348 = vadd.f32 %v1261, %v1341
  %v1349 = vxor.u32 %v1345, 2147483648
  %v1350 = vxor.u32 %v1346, 2147483648
  %v1351 = vxor.u32 %v1347, 2147483648
  %v1352 = vmul.f32 %v1349, 1.442695
  %v1353 = vpow.pop %v1352
  %v1354 = vmul.f32 %v1350, 1.442695
  %v1355 = vpow.pop %v1354
  %v1356 = vmul.f32 %v1351, 1.442695
  %v1357 = vpow.pop %v1356
  %v1358 = vadd.f32 %v1353, 1.0
  %v1359 = vadd.f32 %v1355, 1.0
  %v1360 = vadd.f32 %v1357, 1.0
  %v1361 = vrcp.pop %v1358
  %v1362 = vmul.f32 1.0, %v1361
  %v1363 = vrcp.pop %v1359
  %v1364 = vmul.f32 1.0, %v1363
  %v1365 = vrcp.pop %v1360
  %v1366 = vmul.f32 1.0, %v1365
  %v1367 = vtanh.pop %v1348
  %v1368 = vmul.f32 %v1364, %v1250
  %v1369 = vmul.f32 %v1362, %v1367
  %v1370 = vadd.f32 %v1368, %v1369
  %v1371 = vtanh.pop %v1370
  %v1372 = vmul.f32 %v1366, %v1371
  %s1373 = scalar_lea.vmem [#allocation5], 40
  %1374 = vst [vmem:[%s1373] sm:$0xff] %v1372
  %s1375 = smul.u32 6, 4
  %s1376 = smul.addr %s1375, 8
  %s1377 = scalar_lea.vmem [#allocation4], %s1376
  %v1378 = vld [vmem:[%s1377] sm:$0xff]
  %v1379 = vld [vmem:[%s1377 + $0x8] sm:$0xff]
  %v1380 = vld [vmem:[%s1377 + $0x10] sm:$0xff]
  %v1381 = vld [vmem:[%s1377 + $0x18] sm:$0xff]
  %v1382 = vpack.c.bf16 %v1372, %v1372
  %1383 = vmatprep.subr.bf16.mxu0 %v601
  %1384 = vmatpush1.bf16.msra.mxu0 %v600
  %1385 = vmatprep.subr.bf16.mxu0 %v605
  %1386 = vmatpush1.bf16.msra.mxu0 %v604
  %1387 = vmatprep.subr.bf16.mxu0 %v609
  %1388 = vmatpush1.bf16.msra.mxu0 %v608
  %1389 = vmatprep.subr.bf16.mxu0 %v613
  %1390 = vmatpush1.bf16.msra.mxu0 %v612
  %1391 = vmatprep.subr.bf16.mxu0 %v617
  %1392 = vmatpush1.bf16.msra.mxu0 %v616
  %1393 = vmatprep.subr.bf16.mxu0 %v621
  %1394 = vmatpush1.bf16.msra.mxu0 %v620
  %1395 = vmatprep.subr.bf16.mxu0 %v625
  %1396 = vmatpush1.bf16.msra.mxu0 %v624
  %1397 = vmatprep.subr.bf16.mxu0 %v629
  %1398 = vmatpush1.bf16.msra.mxu0 %v628
  %1399 = vmatprep.subr.bf16.mxu0 0
  %1400 = vmatpush1.bf16.msra.mxu0 0
  %1401 = vmatprep.subr.bf16.mxu0 0
  %1402 = vmatpush1.bf16.msra.mxu0 0
  %1403 = vmatprep.subr.bf16.mxu0 0
  %1404 = vmatpush1.bf16.msra.mxu0 0
  %1405 = vmatprep.subr.bf16.mxu0 0
  %1406 = vmatpush1.bf16.msra.mxu0 0
  %1407 = vmatprep.subr.bf16.mxu0 0
  %1408 = vmatpush1.bf16.msra.mxu0 0
  %1409 = vmatprep.subr.bf16.mxu0 0
  %1410 = vmatpush1.bf16.msra.mxu0 0
  %1411 = vmatprep.subr.bf16.mxu0 0
  %1412 = vmatpush1.bf16.msra.mxu0 0
  %1413 = vmatprep.subr.bf16.mxu0 0
  %1414 = vmatpush1.bf16.msra.mxu0 0
  %1415 = vmatprep.mubr.bf16.mxu0 0
  %1416 = vmatmul.mubr.bf16.gmra.mrb[0].mxu0 %v1382
  %v1417 = vpop.f32.mrb[0].mxu0
  %v1418 = vadd.f32 0.0, %v1417
  %v1419 = vpop.f32.mrb[0].mxu0
  %v1420 = vadd.f32 0.0, %v1419
  %v1421 = vpop.f32.mrb[0].mxu0
  %v1422 = vpop.f32.mrb[0].mxu0
  %1423 = vdwg.mxu0
  %1424 = vmatprep.subr.bf16.mxu0 %v603
  %1425 = vmatpush1.bf16.msra.mxu0 %v602
  %1426 = vmatprep.subr.bf16.mxu0 %v607
  %1427 = vmatpush1.bf16.msra.mxu0 %v606
  %1428 = vmatprep.subr.bf16.mxu0 %v611
  %1429 = vmatpush1.bf16.msra.mxu0 %v610
  %1430 = vmatprep.subr.bf16.mxu0 %v615
  %1431 = vmatpush1.bf16.msra.mxu0 %v614
  %1432 = vmatprep.subr.bf16.mxu0 %v619
  %1433 = vmatpush1.bf16.msra.mxu0 %v618
  %1434 = vmatprep.subr.bf16.mxu0 %v623
  %1435 = vmatpush1.bf16.msra.mxu0 %v622
  %1436 = vmatprep.subr.bf16.mxu0 %v627
  %1437 = vmatpush1.bf16.msra.mxu0 %v626
  %1438 = vmatprep.subr.bf16.mxu0 %v631
  %1439 = vmatpush1.bf16.msra.mxu0 %v630
  %1440 = vmatprep.subr.bf16.mxu0 0
  %1441 = vmatpush1.bf16.msra.mxu0 0
  %1442 = vmatprep.subr.bf16.mxu0 0
  %1443 = vmatpush1.bf16.msra.mxu0 0
  %1444 = vmatprep.subr.bf16.mxu0 0
  %1445 = vmatpush1.bf16.msra.mxu0 0
  %1446 = vmatprep.subr.bf16.mxu0 0
  %1447 = vmatpush1.bf16.msra.mxu0 0
  %1448 = vmatprep.subr.bf16.mxu0 0
  %1449 = vmatpush1.bf16.msra.mxu0 0
  %1450 = vmatprep.subr.bf16.mxu0 0
  %1451 = vmatpush1.bf16.msra.mxu0 0
  %1452 = vmatprep.subr.bf16.mxu0 0
  %1453 = vmatpush1.bf16.msra.mxu0 0
  %1454 = vmatprep.subr.bf16.mxu0 0
  %1455 = vmatpush1.bf16.msra.mxu0 0
  %1456 = vmatprep.mubr.bf16.mxu0 0
  %1457 = vmatmul.mubr.bf16.gmra.mrb[0].mxu0 %v1382
  %v1458 = vpop.f32.mrb[0].mxu0
  %v1459 = vadd.f32 0.0, %v1458
  %v1460 = vpop.f32.mrb[0].mxu0
  %v1461 = vadd.f32 0.0, %v1460
  %v1462 = vpop.f32.mrb[0].mxu0
  %v1463 = vpop.f32.mrb[0].mxu0
  %1464 = vdwg.mxu0
  %v1465 = vadd.f32 %v1378, %v1418
  %v1466 = vadd.f32 %v1379, %v1420
  %v1467 = vadd.f32 %v1380, %v1459
  %v1468 = vadd.f32 %v1381, %v1461
  %v1469 = vxor.u32 %v1465, 2147483648
  %v1470 = vxor.u32 %v1466, 2147483648
  %v1471 = vxor.u32 %v1467, 2147483648
  %v1472 = vmul.f32 %v1469, 1.442695
  %v1473 = vpow.pop %v1472
  %v1474 = vmul.f32 %v1470, 1.442695
  %v1475 = vpow.pop %v1474
  %v1476 = vmul.f32 %v1471, 1.442695
  %v1477 = vpow.pop %v1476
  %v1478 = vadd.f32 %v1473, 1.0
  %v1479 = vadd.f32 %v1475, 1.0
  %v1480 = vadd.f32 %v1477, 1.0
  %v1481 = vrcp.pop %v1478
  %v1482 = vmul.f32 1.0, %v1481
  %v1483 = vrcp.pop %v1479
  %v1484 = vmul.f32 1.0, %v1483
  %v1485 = vrcp.pop %v1480
  %v1486 = vmul.f32 1.0, %v1485
  %v1487 = vtanh.pop %v1468
  %v1488 = vmul.f32 %v1484, %v1370
  %v1489 = vmul.f32 %v1482, %v1487
  %v1490 = vadd.f32 %v1488, %v1489
  %v1491 = vtanh.pop %v1490
  %v1492 = vmul.f32 %v1486, %v1491
  %s1493 = scalar_lea.vmem [#allocation5], 48
  %1494 = vst [vmem:[%s1493] sm:$0xff] %v1492
  %s1495 = smul.u32 7, 4
  %s1496 = smul.addr %s1495, 8
  %s1497 = scalar_lea.vmem [#allocation4], %s1496
  %v1498 = vld [vmem:[%s1497] sm:$0xff]
  %v1499 = vld [vmem:[%s1497 + $0x8] sm:$0xff]
  %v1500 = vld [vmem:[%s1497 + $0x10] sm:$0xff]
  %v1501 = vld [vmem:[%s1497 + $0x18] sm:$0xff]
  %v1502 = vpack.c.bf16 %v1492, %v1492
  %1503 = vmatprep.subr.bf16.mxu0 %v601
  %1504 = vmatpush1.bf16.msra.mxu0 %v600
  %1505 = vmatprep.subr.bf16.mxu0 %v605
  %1506 = vmatpush1.bf16.msra.mxu0 %v604
  %1507 = vmatprep.subr.bf16.mxu0 %v609
  %1508 = vmatpush1.bf16.msra.mxu0 %v608
  %1509 = vmatprep.subr.bf16.mxu0 %v613
  %1510 = vmatpush1.bf16.msra.mxu0 %v612
  %1511 = vmatprep.subr.bf16.mxu0 %v617
  %1512 = vmatpush1.bf16.msra.mxu0 %v616
  %1513 = vmatprep.subr.bf16.mxu0 %v621
  %1514 = vmatpush1.bf16.msra.mxu0 %v620
  %1515 = vmatprep.subr.bf16.mxu0 %v625
  %1516 = vmatpush1.bf16.msra.mxu0 %v624
  %1517 = vmatprep.subr.bf16.mxu0 %v629
  %1518 = vmatpush1.bf16.msra.mxu0 %v628
  %1519 = vmatprep.subr.bf16.mxu0 0
  %1520 = vmatpush1.bf16.msra.mxu0 0
  %1521 = vmatprep.subr.bf16.mxu0 0
  %1522 = vmatpush1.bf16.msra.mxu0 0
  %1523 = vmatprep.subr.bf16.mxu0 0
  %1524 = vmatpush1.bf16.msra.mxu0 0
  %1525 = vmatprep.subr.bf16.mxu0 0
  %1526 = vmatpush1.bf16.msra.mxu0 0
  %1527 = vmatprep.subr.bf16.mxu0 0
  %1528 = vmatpush1.bf16.msra.mxu0 0
  %1529 = vmatprep.subr.bf16.mxu0 0
  %1530 = vmatpush1.bf16.msra.mxu0 0
  %1531 = vmatprep.subr.bf16.mxu0 0
  %1532 = vmatpush1.bf16.msra.mxu0 0
  %1533 = vmatprep.subr.bf16.mxu0 0
  %1534 = vmatpush1.bf16.msra.mxu0 0
  %1535 = vmatprep.mubr.bf16.mxu0 0
  %1536 = vmatmul.mubr.bf16.gmra.mrb[0].mxu0 %v1502
  %v1537 = vpop.f32.mrb[0].mxu0
  %v1538 = vadd.f32 0.0, %v1537
  %v1539 = vpop.f32.mrb[0].mxu0
  %v1540 = vadd.f32 0.0, %v1539
  %v1541 = vpop.f32.mrb[0].mxu0
  %v1542 = vpop.f32.mrb[0].mxu0
  %1543 = vdwg.mxu0
  %1544 = vmatprep.subr.bf16.mxu0 %v603
  %1545 = vmatpush1.bf16.msra.mxu0 %v602
  %1546 = vmatprep.subr.bf16.mxu0 %v607
  %1547 = vmatpush1.bf16.msra.mxu0 %v606
  %1548 = vmatprep.subr.bf16.mxu0 %v611
  %1549 = vmatpush1.bf16.msra.mxu0 %v610
  %1550 = vmatprep.subr.bf16.mxu0 %v615
  %1551 = vmatpush1.bf16.msra.mxu0 %v614
  %1552 = vmatprep.subr.bf16.mxu0 %v619
  %1553 = vmatpush1.bf16.msra.mxu0 %v618
  %1554 = vmatprep.subr.bf16.mxu0 %v623
  %1555 = vmatpush1.bf16.msra.mxu0 %v622
  %1556 = vmatprep.subr.bf16.mxu0 %v627
  %1557 = vmatpush1.bf16.msra.mxu0 %v626
  %1558 = vmatprep.subr.bf16.mxu0 %v631
  %1559 = vmatpush1.bf16.msra.mxu0 %v630
  %1560 = vmatprep.subr.bf16.mxu0 0
  %1561 = vmatpush1.bf16.msra.mxu0 0
  %1562 = vmatprep.subr.bf16.mxu0 0
  %1563 = vmatpush1.bf16.msra.mxu0 0
  %1564 = vmatprep.subr.bf16.mxu0 0
  %1565 = vmatpush1.bf16.msra.mxu0 0
  %1566 = vmatprep.subr.bf16.mxu0 0
  %1567 = vmatpush1.bf16.msra.mxu0 0
  %1568 = vmatprep.subr.bf16.mxu0 0
  %1569 = vmatpush1.bf16.msra.mxu0 0
  %1570 = vmatprep.subr.bf16.mxu0 0
  %1571 = vmatpush1.bf16.msra.mxu0 0
  %1572 = vmatprep.subr.bf16.mxu0 0
  %1573 = vmatpush1.bf16.msra.mxu0 0
  %1574 = vmatprep.subr.bf16.mxu0 0
  %1575 = vmatpush1.bf16.msra.mxu0 0
  %1576 = vmatprep.mubr.bf16.mxu0 0
  %1577 = vmatmul.mubr.bf16.gmra.mrb[0].mxu0 %v1502
  %v1578 = vpop.f32.mrb[0].mxu0
  %v1579 = vadd.f32 0.0, %v1578
  %v1580 = vpop.f32.mrb[0].mxu0
  %v1581 = vadd.f32 0.0, %v1580
  %v1582 = vpop.f32.mrb[0].mxu0
  %v1583 = vpop.f32.mrb[0].mxu0
  %1584 = vdwg.mxu0
  %v1585 = vadd.f32 %v1498, %v1538
  %v1586 = vadd.f32 %v1499, %v1540
  %v1587 = vadd.f32 %v1500, %v1579
  %v1588 = vadd.f32 %v1501, %v1581
  %v1589 = vxor.u32 %v1585, 2147483648
  %v1590 = vxor.u32 %v1586, 2147483648
  %v1591 = vxor.u32 %v1587, 2147483648
  %v1592 = vmul.f32 %v1589, 1.442695
  %v1593 = vpow.pop %v1592
  %v1594 = vmul.f32 %v1590, 1.442695
  %v1595 = vpow.pop %v1594
  %v1596 = vmul.f32 %v1591, 1.442695
  %v1597 = vpow.pop %v1596
  %v1598 = vadd.f32 %v1593, 1.0
  %v1599 = vadd.f32 %v1595, 1.0
  %v1600 = vadd.f32 %v1597, 1.0
  %v1601 = vrcp.pop %v1598
  %v1602 = vmul.f32 1.0, %v1601
  %v1603 = vrcp.pop %v1599
  %v1604 = vmul.f32 1.0, %v1603
  %v1605 = vrcp.pop %v1600
  %v1606 = vmul.f32 1.0, %v1605
  %v1607 = vtanh.pop %v1588
  %v1608 = vmul.f32 %v1604, %v1490
  %v1609 = vmul.f32 %v1602, %v1607
  %v1610 = vadd.f32 %v1608, %v1609
  %v1611 = vtanh.pop %v1610
  %v1612 = vmul.f32 %v1606, %v1611
  %s1613 = scalar_lea.vmem [#allocation5], 56
  %1614 = vst [vmem:[%s1613] sm:$0xff] %v1612
  %1615 = vst [vmem:[#allocation2] sm:$0xff] %v1612
  %1616 = vst [vmem:[#allocation3] sm:$0xff] %v1610
  %v1617 = vld [vmem:[#allocation5] sm:$0xff]
  %v1618 = vld [vmem:[#allocation5 + $0x8] sm:$0xff]
  %v1619 = vld [vmem:[#allocation5 + $0x10] sm:$0xff]
  %v1620 = vld [vmem:[#allocation5 + $0x18] sm:$0xff]
  %v1621 = vld [vmem:[#allocation5 + $0x20] sm:$0xff]
  %v1622 = vld [vmem:[#allocation5 + $0x28] sm:$0xff]
  %v1623 = vld [vmem:[#allocation5 + $0x30] sm:$0xff]
  %v1624 = vld [vmem:[#allocation5 + $0x38] sm:$0xff]
  %v1625 = vpack.c.bf16 %v1618, %v1617
  %v1626 = vpack.c.bf16 %v1620, %v1619
  %v1627 = vpack.c.bf16 %v1622, %v1621
  %v1628 = vpack.c.bf16 %v1624, %v1623
  %v1629 = vld [vmem:[%s6] sm:$0xf]
  %v1630 = vld [vmem:[%s6 + $0x4] sm:$0xf]
  %v1631 = vld [vmem:[%s6 + $0x8] sm:$0xf]
  %v1632 = vld [vmem:[%s6 + $0xc] sm:$0xf]
  %v1633 = vld [vmem:[%s6 + $0x10] sm:$0xf]
  %v1634 = vld [vmem:[%s6 + $0x14] sm:$0xf]
  %v1635 = vld [vmem:[%s6 + $0x18] sm:$0xf]
  %v1636 = vld [vmem:[%s6 + $0x1c] sm:$0xf]
  %v1637 = vld [vmem:[%s6 + $0x20] sm:$0xf]
  %v1638 = vld [vmem:[%s6 + $0x24] sm:$0xf]
  %v1639 = vld [vmem:[%s6 + $0x28] sm:$0xf]
  %v1640 = vld [vmem:[%s6 + $0x2c] sm:$0xf]
  %v1641 = vld [vmem:[%s6 + $0x30] sm:$0xf]
  %v1642 = vld [vmem:[%s6 + $0x34] sm:$0xf]
  %v1643 = vld [vmem:[%s6 + $0x38] sm:$0xf]
  %v1644 = vld [vmem:[%s6 + $0x3c] sm:$0xf]
  %v1645 = vld [vmem:[%s7] sm:$0x1]
  %v1647 = vlaneseq
  %v1648 = vshrl.u32 %v1647, 7
  %v1649 = vsub.s32 0, %v1648
  %v1650 = vrot.slane %v1645, %v1649
  %v1668 = vunpack.c.l.b16 %v1629
  %v1669 = vunpack.c.l.b16 %v1630
  %v1670 = vunpack.c.l.b16 %v1631
  %v1671 = vunpack.c.l.b16 %v1632
  %v1672 = vunpack.c.l.b16 %v1633
  %v1673 = vunpack.c.l.b16 %v1634
  %v1674 = vunpack.c.l.b16 %v1635
  %v1675 = vunpack.c.l.b16 %v1636
  %v1676 = vunpack.c.l.b16 %v1637
  %v1677 = vunpack.c.l.b16 %v1638
  %v1678 = vunpack.c.l.b16 %v1639
  %v1679 = vunpack.c.l.b16 %v1640
  %v1680 = vunpack.c.l.b16 %v1641
  %v1681 = vunpack.c.l.b16 %v1642
  %v1682 = vunpack.c.l.b16 %v1643
  %v1683 = vunpack.c.l.b16 %v1644
  %v1684 = vpack.c.b16 %v1669, %v1668
  %v1685 = vpack.c.b16 %v1671, %v1670
  %v1686 = vpack.c.b16 %v1673, %v1672
  %v1687 = vpack.c.b16 %v1675, %v1674
  %v1688 = vpack.c.b16 %v1677, %v1676
  %v1689 = vpack.c.b16 %v1679, %v1678
  %v1690 = vpack.c.b16 %v1681, %v1680
  %v1691 = vpack.c.b16 %v1683, %v1682
  %1700 = vmatprep.subr.bf16.mxu0 0
  %1701 = vmatpush1.bf16.msra.mxu0 %v1684
  %1702 = vmatprep.subr.bf16.mxu0 0
  %1703 = vmatpush1.bf16.msra.mxu0 %v1685
  %1704 = vmatprep.subr.bf16.mxu0 0
  %1705 = vmatpush1.bf16.msra.mxu0 %v1686
  %1706 = vmatprep.subr.bf16.mxu0 0
  %1707 = vmatpush1.bf16.msra.mxu0 %v1687
  %1708 = vmatprep.subr.bf16.mxu0 0
  %1709 = vmatpush1.bf16.msra.mxu0 %v1688
  %1710 = vmatprep.subr.bf16.mxu0 0
  %1711 = vmatpush1.bf16.msra.mxu0 %v1689
  %1712 = vmatprep.subr.bf16.mxu0 0
  %1713 = vmatpush1.bf16.msra.mxu0 %v1690
  %1714 = vmatprep.subr.bf16.mxu0 0
  %1715 = vmatpush1.bf16.msra.mxu0 %v1691
  %1716 = vmatprep.subr.bf16.mxu0 0
  %1717 = vmatpush1.bf16.msra.mxu0 0
  %1718 = vmatprep.subr.bf16.mxu0 0
  %1719 = vmatpush1.bf16.msra.mxu0 0
  %1720 = vmatprep.subr.bf16.mxu0 0
  %1721 = vmatpush1.bf16.msra.mxu0 0
  %1722 = vmatprep.subr.bf16.mxu0 0
  %1723 = vmatpush1.bf16.msra.mxu0 0
  %1724 = vmatprep.subr.bf16.mxu0 0
  %1725 = vmatpush1.bf16.msra.mxu0 0
  %1726 = vmatprep.subr.bf16.mxu0 0
  %1727 = vmatpush1.bf16.msra.mxu0 0
  %1728 = vmatprep.subr.bf16.mxu0 0
  %1729 = vmatpush1.bf16.msra.mxu0 0
  %1730 = vmatprep.subr.bf16.mxu0 0
  %1731 = vmatpush1.bf16.msra.mxu0 0
  %1732 = vmatprep.mubr.bf16.mxu0 0
  %1733 = vmatmul.mubr.bf16.gmra.mrb[0].mxu0 %v1625
  %v1734 = vpop.f32.mrb[0].mxu0
  %v1735 = vadd.f32 %v1650, %v1734
  %v1736 = vpop.f32.mrb[0].mxu0
  %v1737 = vpop.f32.mrb[0].mxu0
  %v1738 = vadd.f32 %v1650, %v1737
  %v1739 = vpop.f32.mrb[0].mxu0
  %1740 = vmatprep.mubr.bf16.mxu0 0
  %1741 = vmatmul.mubr.bf16.gmra.mrb[0].mxu0 %v1626
  %v1742 = vpop.f32.mrb[0].mxu0
  %v1743 = vadd.f32 %v1650, %v1742
  %v1744 = vpop.f32.mrb[0].mxu0
  %v1745 = vpop.f32.mrb[0].mxu0
  %v1746 = vadd.f32 %v1650, %v1745
  %v1747 = vpop.f32.mrb[0].mxu0
  %1748 = vmatprep.mubr.bf16.mxu0 0
  %1749 = vmatmul.mubr.bf16.gmra.mrb[0].mxu0 %v1627
  %v1750 = vpop.f32.mrb[0].mxu0
  %v1751 = vadd.f32 %v1650, %v1750
  %v1752 = vpop.f32.mrb[0].mxu0
  %v1753 = vpop.f32.mrb[0].mxu0
  %v1754 = vadd.f32 %v1650, %v1753
  %v1755 = vpop.f32.mrb[0].mxu0
  %1756 = vmatprep.mubr.bf16.mxu0 0
  %1757 = vmatmul.mubr.bf16.gmra.mrb[0].mxu0 %v1628
  %v1758 = vpop.f32.mrb[0].mxu0
  %v1759 = vadd.f32 %v1650, %v1758
  %v1760 = vpop.f32.mrb[0].mxu0
  %v1761 = vpop.f32.mrb[0].mxu0
  %v1762 = vadd.f32 %v1650, %v1761
  %v1763 = vpop.f32.mrb[0].mxu0
  %1764 = vdwg.mxu0
  %1765 = vst [vmem:[%s8] sm:$0xff] %v1735
  %1766 = vst [vmem:[%s8 + $0x8] sm:$0xff] %v1738
  %1767 = vst [vmem:[%s8 + $0x10] sm:$0xff] %v1743
  %1768 = vst [vmem:[%s8 + $0x18] sm:$0xff] %v1746
  %1769 = vst [vmem:[%s8 + $0x20] sm:$0xff] %v1751
  %1770 = vst [vmem:[%s8 + $0x28] sm:$0xff] %v1754
  %1771 = vst [vmem:[%s8 + $0x30] sm:$0xff] %v1759
  %1772 = vst [vmem:[%s8 + $0x38] sm:$0xff] %v1762
  // Predicated region
  $region38: #{seq2seq_forward.3} parent=0 // pred_check
    _
  $region39: #{seq2seq_forward.3} parent=0 // pred_check_branch
    %1774 = sbr.rel (0) target = $region41
  $region40: #{seq2seq_forward.3} parent=0 // pred_region
    _
  $region41: #{seq2seq_forward.3} parent=0 // pred_fallthru
    _
  // Predicated region
  $region42: #{seq2seq_forward.3} parent=0 // pred_check
    _
  $region43: #{seq2seq_forward.3} parent=0 // pred_check_branch
    %1776 = sbr.rel (0) target = $region45
  $region44: #{seq2seq_forward.3} parent=0 // pred_region
    _
  $region45: #{seq2seq_forward.3} parent=0 // pred_fallthru
    _

</llo_original>
